<compile_context>
chip_gen: v7x
topology: tpu7x:2x2x1
jax: 0.10.0
libtpu: 0.0.40
codegen_flags: <defaults>
</compile_context>

<pallas_src>
import functools

import jax
import jax.numpy as jnp
from jax.experimental import pallas as pl
from jax.experimental.pallas import tpu as pltpu


# Set to jnp.bfloat16 on v6e/v7x to halve VMEM / roll / store traffic
# (accumulation stays f32 via preferred_element_type); f32 here so the
# correctness check against the f32 reference is tight.
_FEAT_DTYPE = jnp.float32


# ------------------------------ fused kernel --------------------------------


def _rdb_kernel(*refs, n_layers, growth, C, W, lanes):
    # refs = (x_ref, mask_ref, w1_ref, wd_ref_0..wd_ref_{L-1}, o_ref, feats_ref)
    # x_ref:     (C, lanes)            lane-batched input slab
    # mask_ref:  (9, lanes) f32        per-tap boundary validity (periodic/img)
    # w1_ref:    (C, Cf)               1x1 conv weights, (out, in)
    # wd_ref_l:  (9, G, Cin_l)         per-layer 3x3 weights, exact Cin (no pad)
    # o_ref:     (C, lanes)
    # feats_ref: (Cf, lanes)           VMEM-resident growing feature map
    x_ref, m_ref, w1_ref = refs[0], refs[1], refs[2]
    wd_refs = refs[3:3 + n_layers]
    o_ref = refs[3 + n_layers]
    feats_ref = refs[4 + n_layers]

    feat_dt = feats_ref.dtype
    xv = x_ref[...]                                            # (C, lanes)
    feats_ref[pl.ds(0, C), :] = xv.astype(feat_dt)

    masks = m_ref[...]                                         # (9, lanes)
    shifts = [dy * W + dx for dy in (-1, 0, 1) for dx in (-1, 0, 1)]

    # Dense 3x3 + ReLU layers (static unrolled loop -> all slices static).
    for l in range(n_layers):
        cin = C + l * growth
        f = feats_ref[pl.ds(0, cin), :]                        # valid rows only
        wl = wd_refs[l][...]                                   # (9, G, cin)
        acc = jnp.zeros((growth, lanes), jnp.float32)
        for t, s in enumerate(shifts):
            # shifted[:, p] == f[:, p + s]; wrapped / cross-image lanes are
            # zeroed by the post-matmul boundary mask.
            shifted = pltpu.roll(f, (-s) % lanes, axis=1) if s else f
            part = jnp.dot(wl[t], shifted,
                           preferred_element_type=jnp.float32)  # (G, lanes)
            if s:                                   # center tap mask == 1
                part = part * masks[t:t + 1, :]
            acc = acc + part
        feats_ref[pl.ds(C + l * growth, growth), :] = (
            jnp.maximum(acc, 0.0).astype(feat_dt))

    # 1x1 conv over the concatenated features + residual, single HBM write.
    y = jnp.dot(w1_ref[...], feats_ref[...],
                preferred_element_type=jnp.float32)            # (C, lanes)
    o_ref[...] = (y + xv.astype(jnp.float32)).astype(o_ref.dtype)


# ------------------------------ JAX wrapper ----------------------------------


def _pack_dense_weight(w):
    """(3, 3, Cin, G) HWIO -> (9, G, Cin), tap index = ky*3 + kx."""
    kh, kw, cin, g = w.shape
    return jnp.transpose(w, (0, 1, 3, 2)).reshape(kh * kw, g, cin)


def _boundary_masks(H, W, bt):
    """(9, bt*H*W) f32, 1.0 where the tap is inside its own image."""
    HW = H * W
    q = jnp.arange(HW, dtype=jnp.int32)
    hh, ww = q // W, q % W
    rows = []
    for dy in (-1, 0, 1):
        for dx in (-1, 0, 1):
            valid = jnp.ones((HW,), dtype=bool)
            if dy:
                valid = valid & (hh + dy >= 0) & (hh + dy < H)
            if dx:
                valid = valid & (ww + dx >= 0) & (ww + dx < W)
            rows.append(valid)
    m = jnp.stack(rows).astype(jnp.float32)        # (9, HW)
    return jnp.tile(m, (1, bt))                    # periodic per image


def _pick_batch_tile(N):
    """Largest divisor of N that still leaves >= 2 grid steps (v7x megacore)."""
    best = 1
    for bt in range(1, N + 1):
        if N % bt == 0 and N // bt >= 2:
            best = bt
    return best


@jax.jit
def rdb_forward(x_nchw, dense_weights, w_1x1):
    """Fused RDB forward.  x_nchw: (N, C, H, W) -> (N, C, H, W)."""
    N, C, H, W = x_nchw.shape
    HW = H * W
    n_layers = len(dense_weights)
    G = dense_weights[0].shape[-1]
    cf = C + n_layers * G
    bt = _pick_batch_tile(N)
    lanes = bt * HW

    # Layout plumbing: (N, C, H, W) -> lane-dense (C, N*HW) slab.
    x2 = jnp.transpose(x_nchw.reshape(N, C, HW), (1, 0, 2)).reshape(C, N * HW)

    masks = _boundary_masks(H, W, bt)
    wds = [_pack_dense_weight(w).astype(_FEAT_DTYPE) for w in dense_weights]
    w1 = jnp.transpose(w_1x1, (1, 0)).astype(_FEAT_DTYPE)      # (C, Cf)

    flops = N * HW * (sum(2 * 9 * G * (C + l * G) for l in range(n_layers))
                      + 2 * C * cf + C)
    bytes_accessed = 4 * (2 * N * C * HW + 9 * lanes + C * cf
                          + sum(9 * G * (C + l * G) for l in range(n_layers)))

    kernel = functools.partial(_rdb_kernel, n_layers=n_layers, growth=G,
                               C=C, W=W, lanes=lanes)
    out = pl.pallas_call(
        kernel,
        out_shape=jax.ShapeDtypeStruct((C, N * HW), x_nchw.dtype),
        grid=(N // bt,),
        in_specs=[
            pl.BlockSpec((C, lanes), lambda n: (0, n)),
            pl.BlockSpec((9, lanes), lambda n: (0, 0)),
            pl.BlockSpec((C, cf), lambda n: (0, 0)),
        ] + [pl.BlockSpec(w.shape, lambda n: (0, 0, 0)) for w in wds],
        out_specs=pl.BlockSpec((C, lanes), lambda n: (0, n)),
        scratch_shapes=[pltpu.VMEM((cf, lanes), _FEAT_DTYPE)],
        compiler_params=pltpu.CompilerParams(
            dimension_semantics=("parallel",)),
        cost_estimate=pl.CostEstimate(flops=flops, transcendentals=0,
                                      bytes_accessed=bytes_accessed),
    )(x2, masks, w1, *wds)

    return jnp.transpose(out.reshape(C, N, HW), (1, 0, 2)).reshape(N, C, H, W)


# ----------------------------- pure-JAX reference ----------------------------


def rdb_reference(x_nchw, dense_weights, w_1x1):
    x = jnp.transpose(x_nchw, (0, 2, 3, 1))
    feats = x
    for w in dense_weights:
        out = jax.lax.conv_general_dilated(
            feats, w, (1, 1), "SAME",
            dimension_numbers=("NHWC", "HWIO", "NHWC"))
        feats = jnp.concatenate([feats, jnp.maximum(out, 0.0)], axis=-1)
    y = jax.lax.conv_general_dilated(
        feats, w_1x1[None, None], (1, 1), "SAME",
        dimension_numbers=("NHWC", "HWIO", "NHWC"))
    y = y + x
    return jnp.transpose(y, (0, 3, 1, 2))


# ---------------------------------- main -------------------------------------


if __name__ == "__main__":
    # Module hyperparameters (small, consistent with the PyTorch module).
    inChannels, nDenselayer, growthRate = 4, 3, 4
    N, H, W = 4, 16, 16        # N=4 -> grid of 2 parallel steps x 2 lane-batched images

    key = jax.random.PRNGKey(0)
    key, kx = jax.random.split(key)
    x = jax.random.normal(kx, (N, inChannels, H, W), dtype=jnp.float32)

    # Deterministic parameter init (Conv2d weights, bias=False), stored HWIO.
    dense_weights = []
    c = inChannels
    for _ in range(nDenselayer):
        key, kw = jax.random.split(key)
        w = jax.random.normal(kw, (3, 3, c, growthRate), dtype=jnp.float32)
        w = w * (1.0 / jnp.sqrt(9.0 * c))
        dense_weights.append(w)
        c += growthRate
    key, kw = jax.random.split(key)
    w_1x1 = jax.random.normal(kw, (c, inChannels), dtype=jnp.float32)
    w_1x1 = w_1x1 * (1.0 / jnp.sqrt(float(c)))

    out = rdb_forward(x, tuple(dense_weights), w_1x1)
    out = jax.block_until_ready(out)

    ref = jax.block_until_ready(rdb_reference(x, tuple(dense_weights), w_1x1))
    assert out.shape == (N, inChannels, H, W)
    assert jnp.allclose(out, ref, atol=2e-4, rtol=2e-4), "mismatch vs reference"

    print("KERNEL_OK")
</pallas_src>

<mosaic_0001>
module attributes {stable_mosaic.version = 11 : i64} {
  func.func @_rdb_kernel(%arg0: i32, %arg1: memref<4x512xf32, #tpu.memory_space<vmem>>, %arg2: memref<9x512xf32, #tpu.memory_space<vmem>>, %arg3: memref<4x16xf32, #tpu.memory_space<vmem>>, %arg4: memref<9x4x4xf32, #tpu.memory_space<vmem>>, %arg5: memref<9x4x8xf32, #tpu.memory_space<vmem>>, %arg6: memref<9x4x12xf32, #tpu.memory_space<vmem>>, %arg7: memref<4x512xf32, #tpu.memory_space<vmem>>, %arg8: memref<16x512xf32, #tpu.memory_space<vmem>>) attributes {dimension_semantics = [#tpu.dimension_semantics<parallel>], iteration_bounds = array<i64: 2>, scalar_prefetch = 0 : i64, scratch_operands = 1 : i64, tpu.core_type = #tpu.core_type<tc>, window_params = [{transform_indices = @transform_0, window_bounds = array<i64: 4, 512>}, {pipeline_mode = #tpu.pipeline_mode<synchronous>, transform_indices = @transform_1, window_bounds = array<i64: 9, 512>}, {pipeline_mode = #tpu.pipeline_mode<synchronous>, transform_indices = @transform_2, window_bounds = array<i64: 4, 16>}, {pipeline_mode = #tpu.pipeline_mode<synchronous>, transform_indices = @transform_3, window_bounds = array<i64: 9, 4, 4>}, {pipeline_mode = #tpu.pipeline_mode<synchronous>, transform_indices = @transform_4, window_bounds = array<i64: 9, 4, 8>}, {pipeline_mode = #tpu.pipeline_mode<synchronous>, transform_indices = @transform_5, window_bounds = array<i64: 9, 4, 12>}, {transform_indices = @transform_6, window_bounds = array<i64: 4, 512>}]} {
    %c0 = arith.constant 0 : index
    %c0_0 = arith.constant 0 : index
    %0 = vector.load %arg1[%c0, %c0_0] : memref<4x512xf32, #tpu.memory_space<vmem>>, vector<4x512xf32>
    %c0_1 = arith.constant 0 : index
    %c0_2 = arith.constant 0 : index
    %1 = vector.load %arg8[%c0_1, %c0_2] : memref<16x512xf32, #tpu.memory_space<vmem>>, vector<4x512xf32>
    tpu.vector_store %arg8[%c0_1, %c0_2], %0 {strides = array<i32>} : memref<16x512xf32, #tpu.memory_space<vmem>>, vector<4x512xf32>,
    %c0_3 = arith.constant 0 : index
    %c0_4 = arith.constant 0 : index
    %2 = vector.load %arg2[%c0_3, %c0_4] : memref<9x512xf32, #tpu.memory_space<vmem>>, vector<9x512xf32>
    %c0_5 = arith.constant 0 : index
    %c0_6 = arith.constant 0 : index
    %3 = vector.load %arg8[%c0_5, %c0_6] : memref<16x512xf32, #tpu.memory_space<vmem>>, vector<4x512xf32>
    %c0_7 = arith.constant 0 : index
    %c0_8 = arith.constant 0 : index
    %c0_9 = arith.constant 0 : index
    %4 = vector.load %arg4[%c0_7, %c0_8, %c0_9] : memref<9x4x4xf32, #tpu.memory_space<vmem>>, vector<9x4x4xf32>
    %cst = arith.constant 0.000000e+00 : f32
    %5 = vector.broadcast %cst : f32 to vector<4x512xf32>
    %c17_i32 = arith.constant 17 : i32
    %6 = tpu.dynamic_rotate %3 by %c17_i32 dim 1 : vector<4x512xf32>, i32 -> vector<4x512xf32>
    %7 = vector.extract_strided_slice %4 {offsets = [0, 0, 0], sizes = [1, 4, 4], strides = [1, 1, 1]} : vector<9x4x4xf32> to vector<1x4x4xf32>
    %8 = vector.shape_cast %7 : vector<1x4x4xf32> to vector<4x4xf32>
    %cst_10 = arith.constant dense<0.000000e+00> : vector<4x512xf32>
    %9 = tpu.matmul %8, %6, %cst_10 {dimension_numbers = #tpu.dot_dimension_numbers<[1], [0], [0], [1], [0, 0, 1, 1], [], []>} : vector<4x4xf32>, vector<4x512xf32>, vector<4x512xf32> -> vector<4x512xf32>
    %10 = vector.extract_strided_slice %2 {offsets = [0, 0], sizes = [1, 512], strides = [1, 1]} : vector<9x512xf32> to vector<1x512xf32>
    %11 = vector.broadcast %10 : vector<1x512xf32> to vector<4x512xf32>
    %12 = arith.mulf %9, %11 : vector<4x512xf32>
    %13 = arith.addf %5, %12 : vector<4x512xf32>
    %c16_i32 = arith.constant 16 : i32
    %14 = tpu.dynamic_rotate %3 by %c16_i32 dim 1 : vector<4x512xf32>, i32 -> vector<4x512xf32>
    %15 = vector.extract_strided_slice %4 {offsets = [1, 0, 0], sizes = [1, 4, 4], strides = [1, 1, 1]} : vector<9x4x4xf32> to vector<1x4x4xf32>
    %16 = vector.shape_cast %15 : vector<1x4x4xf32> to vector<4x4xf32>
    %cst_11 = arith.constant dense<0.000000e+00> : vector<4x512xf32>
    %17 = tpu.matmul %16, %14, %cst_11 {dimension_numbers = #tpu.dot_dimension_numbers<[1], [0], [0], [1], [0, 0, 1, 1], [], []>} : vector<4x4xf32>, vector<4x512xf32>, vector<4x512xf32> -> vector<4x512xf32>
    %18 = vector.extract_strided_slice %2 {offsets = [1, 0], sizes = [1, 512], strides = [1, 1]} : vector<9x512xf32> to vector<1x512xf32>
    %19 = vector.broadcast %18 : vector<1x512xf32> to vector<4x512xf32>
    %20 = arith.mulf %17, %19 : vector<4x512xf32>
    %21 = arith.addf %13, %20 : vector<4x512xf32>
    %c15_i32 = arith.constant 15 : i32
    %22 = tpu.dynamic_rotate %3 by %c15_i32 dim 1 : vector<4x512xf32>, i32 -> vector<4x512xf32>
    %23 = vector.extract_strided_slice %4 {offsets = [2, 0, 0], sizes = [1, 4, 4], strides = [1, 1, 1]} : vector<9x4x4xf32> to vector<1x4x4xf32>
    %24 = vector.shape_cast %23 : vector<1x4x4xf32> to vector<4x4xf32>
    %cst_12 = arith.constant dense<0.000000e+00> : vector<4x512xf32>
    %25 = tpu.matmul %24, %22, %cst_12 {dimension_numbers = #tpu.dot_dimension_numbers<[1], [0], [0], [1], [0, 0, 1, 1], [], []>} : vector<4x4xf32>, vector<4x512xf32>, vector<4x512xf32> -> vector<4x512xf32>
    %26 = vector.extract_strided_slice %2 {offsets = [2, 0], sizes = [1, 512], strides = [1, 1]} : vector<9x512xf32> to vector<1x512xf32>
    %27 = vector.broadcast %26 : vector<1x512xf32> to vector<4x512xf32>
    %28 = arith.mulf %25, %27 : vector<4x512xf32>
    %29 = arith.addf %21, %28 : vector<4x512xf32>
    %c1_i32 = arith.constant 1 : i32
    %30 = tpu.dynamic_rotate %3 by %c1_i32 dim 1 : vector<4x512xf32>, i32 -> vector<4x512xf32>
    %31 = vector.extract_strided_slice %4 {offsets = [3, 0, 0], sizes = [1, 4, 4], strides = [1, 1, 1]} : vector<9x4x4xf32> to vector<1x4x4xf32>
    %32 = vector.shape_cast %31 : vector<1x4x4xf32> to vector<4x4xf32>
    %cst_13 = arith.constant dense<0.000000e+00> : vector<4x512xf32>
    %33 = tpu.matmul %32, %30, %cst_13 {dimension_numbers = #tpu.dot_dimension_numbers<[1], [0], [0], [1], [0, 0, 1, 1], [], []>} : vector<4x4xf32>, vector<4x512xf32>, vector<4x512xf32> -> vector<4x512xf32>
    %34 = vector.extract_strided_slice %2 {offsets = [3, 0], sizes = [1, 512], strides = [1, 1]} : vector<9x512xf32> to vector<1x512xf32>
    %35 = vector.broadcast %34 : vector<1x512xf32> to vector<4x512xf32>
    %36 = arith.mulf %33, %35 : vector<4x512xf32>
    %37 = arith.addf %29, %36 : vector<4x512xf32>
    %38 = vector.extract_strided_slice %4 {offsets = [4, 0, 0], sizes = [1, 4, 4], strides = [1, 1, 1]} : vector<9x4x4xf32> to vector<1x4x4xf32>
    %39 = vector.shape_cast %38 : vector<1x4x4xf32> to vector<4x4xf32>
    %cst_14 = arith.constant dense<0.000000e+00> : vector<4x512xf32>
    %40 = tpu.matmul %39, %3, %cst_14 {dimension_numbers = #tpu.dot_dimension_numbers<[1], [0], [0], [1], [0, 0, 1, 1], [], []>} : vector<4x4xf32>, vector<4x512xf32>, vector<4x512xf32> -> vector<4x512xf32>
    %41 = arith.addf %37, %40 : vector<4x512xf32>
    %c511_i32 = arith.constant 511 : i32
    %42 = tpu.dynamic_rotate %3 by %c511_i32 dim 1 : vector<4x512xf32>, i32 -> vector<4x512xf32>
    %43 = vector.extract_strided_slice %4 {offsets = [5, 0, 0], sizes = [1, 4, 4], strides = [1, 1, 1]} : vector<9x4x4xf32> to vector<1x4x4xf32>
    %44 = vector.shape_cast %43 : vector<1x4x4xf32> to vector<4x4xf32>
    %cst_15 = arith.constant dense<0.000000e+00> : vector<4x512xf32>
    %45 = tpu.matmul %44, %42, %cst_15 {dimension_numbers = #tpu.dot_dimension_numbers<[1], [0], [0], [1], [0, 0, 1, 1], [], []>} : vector<4x4xf32>, vector<4x512xf32>, vector<4x512xf32> -> vector<4x512xf32>
    %46 = vector.extract_strided_slice %2 {offsets = [5, 0], sizes = [1, 512], strides = [1, 1]} : vector<9x512xf32> to vector<1x512xf32>
    %47 = vector.broadcast %46 : vector<1x512xf32> to vector<4x512xf32>
    %48 = arith.mulf %45, %47 : vector<4x512xf32>
    %49 = arith.addf %41, %48 : vector<4x512xf32>
    %c497_i32 = arith.constant 497 : i32
    %50 = tpu.dynamic_rotate %3 by %c497_i32 dim 1 : vector<4x512xf32>, i32 -> vector<4x512xf32>
    %51 = vector.extract_strided_slice %4 {offsets = [6, 0, 0], sizes = [1, 4, 4], strides = [1, 1, 1]} : vector<9x4x4xf32> to vector<1x4x4xf32>
    %52 = vector.shape_cast %51 : vector<1x4x4xf32> to vector<4x4xf32>
    %cst_16 = arith.constant dense<0.000000e+00> : vector<4x512xf32>
    %53 = tpu.matmul %52, %50, %cst_16 {dimension_numbers = #tpu.dot_dimension_numbers<[1], [0], [0], [1], [0, 0, 1, 1], [], []>} : vector<4x4xf32>, vector<4x512xf32>, vector<4x512xf32> -> vector<4x512xf32>
    %54 = vector.extract_strided_slice %2 {offsets = [6, 0], sizes = [1, 512], strides = [1, 1]} : vector<9x512xf32> to vector<1x512xf32>
    %55 = vector.broadcast %54 : vector<1x512xf32> to vector<4x512xf32>
    %56 = arith.mulf %53, %55 : vector<4x512xf32>
    %57 = arith.addf %49, %56 : vector<4x512xf32>
    %c496_i32 = arith.constant 496 : i32
    %58 = tpu.dynamic_rotate %3 by %c496_i32 dim 1 : vector<4x512xf32>, i32 -> vector<4x512xf32>
    %59 = vector.extract_strided_slice %4 {offsets = [7, 0, 0], sizes = [1, 4, 4], strides = [1, 1, 1]} : vector<9x4x4xf32> to vector<1x4x4xf32>
    %60 = vector.shape_cast %59 : vector<1x4x4xf32> to vector<4x4xf32>
    %cst_17 = arith.constant dense<0.000000e+00> : vector<4x512xf32>
    %61 = tpu.matmul %60, %58, %cst_17 {dimension_numbers = #tpu.dot_dimension_numbers<[1], [0], [0], [1], [0, 0, 1, 1], [], []>} : vector<4x4xf32>, vector<4x512xf32>, vector<4x512xf32> -> vector<4x512xf32>
    %62 = vector.extract_strided_slice %2 {offsets = [7, 0], sizes = [1, 512], strides = [1, 1]} : vector<9x512xf32> to vector<1x512xf32>
    %63 = vector.broadcast %62 : vector<1x512xf32> to vector<4x512xf32>
    %64 = arith.mulf %61, %63 : vector<4x512xf32>
    %65 = arith.addf %57, %64 : vector<4x512xf32>
    %c495_i32 = arith.constant 495 : i32
    %66 = tpu.dynamic_rotate %3 by %c495_i32 dim 1 : vector<4x512xf32>, i32 -> vector<4x512xf32>
    %67 = vector.extract_strided_slice %4 {offsets = [8, 0, 0], sizes = [1, 4, 4], strides = [1, 1, 1]} : vector<9x4x4xf32> to vector<1x4x4xf32>
    %68 = vector.shape_cast %67 : vector<1x4x4xf32> to vector<4x4xf32>
    %cst_18 = arith.constant dense<0.000000e+00> : vector<4x512xf32>
    %69 = tpu.matmul %68, %66, %cst_18 {dimension_numbers = #tpu.dot_dimension_numbers<[1], [0], [0], [1], [0, 0, 1, 1], [], []>} : vector<4x4xf32>, vector<4x512xf32>, vector<4x512xf32> -> vector<4x512xf32>
    %70 = vector.extract_strided_slice %2 {offsets = [8, 0], sizes = [1, 512], strides = [1, 1]} : vector<9x512xf32> to vector<1x512xf32>
    %71 = vector.broadcast %70 : vector<1x512xf32> to vector<4x512xf32>
    %72 = arith.mulf %69, %71 : vector<4x512xf32>
    %73 = arith.addf %65, %72 : vector<4x512xf32>
    %cst_19 = arith.constant 0.000000e+00 : f32
    %74 = vector.broadcast %cst_19 : f32 to vector<4x512xf32>
    %75 = arith.maximumf %73, %74 : vector<4x512xf32>
    %c4 = arith.constant 4 : index
    %c0_20 = arith.constant 0 : index
    %76 = vector.load %arg8[%c4, %c0_20] : memref<16x512xf32, #tpu.memory_space<vmem>>, vector<4x512xf32>
    tpu.vector_store %arg8[%c4, %c0_20], %75 {strides = array<i32>} : memref<16x512xf32, #tpu.memory_space<vmem>>, vector<4x512xf32>,
    %c0_21 = arith.constant 0 : index
    %c0_22 = arith.constant 0 : index
    %77 = vector.load %arg8[%c0_21, %c0_22] : memref<16x512xf32, #tpu.memory_space<vmem>>, vector<8x512xf32>
    %c0_23 = arith.constant 0 : index
    %c0_24 = arith.constant 0 : index
    %c0_25 = arith.constant 0 : index
    %78 = vector.load %arg5[%c0_23, %c0_24, %c0_25] : memref<9x4x8xf32, #tpu.memory_space<vmem>>, vector<9x4x8xf32>
    %cst_26 = arith.constant 0.000000e+00 : f32
    %79 = vector.broadcast %cst_26 : f32 to vector<4x512xf32>
    %c17_i32_27 = arith.constant 17 : i32
    %80 = tpu.dynamic_rotate %77 by %c17_i32_27 dim 1 : vector<8x512xf32>, i32 -> vector<8x512xf32>
    %81 = vector.extract_strided_slice %78 {offsets = [0, 0, 0], sizes = [1, 4, 8], strides = [1, 1, 1]} : vector<9x4x8xf32> to vector<1x4x8xf32>
    %82 = vector.shape_cast %81 : vector<1x4x8xf32> to vector<4x8xf32>
    %cst_28 = arith.constant dense<0.000000e+00> : vector<4x512xf32>
    %83 = tpu.matmul %82, %80, %cst_28 {dimension_numbers = #tpu.dot_dimension_numbers<[1], [0], [0], [1], [0, 0, 1, 1], [], []>} : vector<4x8xf32>, vector<8x512xf32>, vector<4x512xf32> -> vector<4x512xf32>
    %84 = vector.extract_strided_slice %2 {offsets = [0, 0], sizes = [1, 512], strides = [1, 1]} : vector<9x512xf32> to vector<1x512xf32>
    %85 = vector.broadcast %84 : vector<1x512xf32> to vector<4x512xf32>
    %86 = arith.mulf %83, %85 : vector<4x512xf32>
    %87 = arith.addf %79, %86 : vector<4x512xf32>
    %c16_i32_29 = arith.constant 16 : i32
    %88 = tpu.dynamic_rotate %77 by %c16_i32_29 dim 1 : vector<8x512xf32>, i32 -> vector<8x512xf32>
    %89 = vector.extract_strided_slice %78 {offsets = [1, 0, 0], sizes = [1, 4, 8], strides = [1, 1, 1]} : vector<9x4x8xf32> to vector<1x4x8xf32>
    %90 = vector.shape_cast %89 : vector<1x4x8xf32> to vector<4x8xf32>
    %cst_30 = arith.constant dense<0.000000e+00> : vector<4x512xf32>
    %91 = tpu.matmul %90, %88, %cst_30 {dimension_numbers = #tpu.dot_dimension_numbers<[1], [0], [0], [1], [0, 0, 1, 1], [], []>} : vector<4x8xf32>, vector<8x512xf32>, vector<4x512xf32> -> vector<4x512xf32>
    %92 = vector.extract_strided_slice %2 {offsets = [1, 0], sizes = [1, 512], strides = [1, 1]} : vector<9x512xf32> to vector<1x512xf32>
    %93 = vector.broadcast %92 : vector<1x512xf32> to vector<4x512xf32>
    %94 = arith.mulf %91, %93 : vector<4x512xf32>
    %95 = arith.addf %87, %94 : vector<4x512xf32>
    %c15_i32_31 = arith.constant 15 : i32
    %96 = tpu.dynamic_rotate %77 by %c15_i32_31 dim 1 : vector<8x512xf32>, i32 -> vector<8x512xf32>
    %97 = vector.extract_strided_slice %78 {offsets = [2, 0, 0], sizes = [1, 4, 8], strides = [1, 1, 1]} : vector<9x4x8xf32> to vector<1x4x8xf32>
    %98 = vector.shape_cast %97 : vector<1x4x8xf32> to vector<4x8xf32>
    %cst_32 = arith.constant dense<0.000000e+00> : vector<4x512xf32>
    %99 = tpu.matmul %98, %96, %cst_32 {dimension_numbers = #tpu.dot_dimension_numbers<[1], [0], [0], [1], [0, 0, 1, 1], [], []>} : vector<4x8xf32>, vector<8x512xf32>, vector<4x512xf32> -> vector<4x512xf32>
    %100 = vector.extract_strided_slice %2 {offsets = [2, 0], sizes = [1, 512], strides = [1, 1]} : vector<9x512xf32> to vector<1x512xf32>
    %101 = vector.broadcast %100 : vector<1x512xf32> to vector<4x512xf32>
    %102 = arith.mulf %99, %101 : vector<4x512xf32>
    %103 = arith.addf %95, %102 : vector<4x512xf32>
    %c1_i32_33 = arith.constant 1 : i32
    %104 = tpu.dynamic_rotate %77 by %c1_i32_33 dim 1 : vector<8x512xf32>, i32 -> vector<8x512xf32>
    %105 = vector.extract_strided_slice %78 {offsets = [3, 0, 0], sizes = [1, 4, 8], strides = [1, 1, 1]} : vector<9x4x8xf32> to vector<1x4x8xf32>
    %106 = vector.shape_cast %105 : vector<1x4x8xf32> to vector<4x8xf32>
    %cst_34 = arith.constant dense<0.000000e+00> : vector<4x512xf32>
    %107 = tpu.matmul %106, %104, %cst_34 {dimension_numbers = #tpu.dot_dimension_numbers<[1], [0], [0], [1], [0, 0, 1, 1], [], []>} : vector<4x8xf32>, vector<8x512xf32>, vector<4x512xf32> -> vector<4x512xf32>
    %108 = vector.extract_strided_slice %2 {offsets = [3, 0], sizes = [1, 512], strides = [1, 1]} : vector<9x512xf32> to vector<1x512xf32>
    %109 = vector.broadcast %108 : vector<1x512xf32> to vector<4x512xf32>
    %110 = arith.mulf %107, %109 : vector<4x512xf32>
    %111 = arith.addf %103, %110 : vector<4x512xf32>
    %112 = vector.extract_strided_slice %78 {offsets = [4, 0, 0], sizes = [1, 4, 8], strides = [1, 1, 1]} : vector<9x4x8xf32> to vector<1x4x8xf32>
    %113 = vector.shape_cast %112 : vector<1x4x8xf32> to vector<4x8xf32>
    %cst_35 = arith.constant dense<0.000000e+00> : vector<4x512xf32>
    %114 = tpu.matmul %113, %77, %cst_35 {dimension_numbers = #tpu.dot_dimension_numbers<[1], [0], [0], [1], [0, 0, 1, 1], [], []>} : vector<4x8xf32>, vector<8x512xf32>, vector<4x512xf32> -> vector<4x512xf32>
    %115 = arith.addf %111, %114 : vector<4x512xf32>
    %c511_i32_36 = arith.constant 511 : i32
    %116 = tpu.dynamic_rotate %77 by %c511_i32_36 dim 1 : vector<8x512xf32>, i32 -> vector<8x512xf32>
    %117 = vector.extract_strided_slice %78 {offsets = [5, 0, 0], sizes = [1, 4, 8], strides = [1, 1, 1]} : vector<9x4x8xf32> to vector<1x4x8xf32>
    %118 = vector.shape_cast %117 : vector<1x4x8xf32> to vector<4x8xf32>
    %cst_37 = arith.constant dense<0.000000e+00> : vector<4x512xf32>
    %119 = tpu.matmul %118, %116, %cst_37 {dimension_numbers = #tpu.dot_dimension_numbers<[1], [0], [0], [1], [0, 0, 1, 1], [], []>} : vector<4x8xf32>, vector<8x512xf32>, vector<4x512xf32> -> vector<4x512xf32>
    %120 = vector.extract_strided_slice %2 {offsets = [5, 0], sizes = [1, 512], strides = [1, 1]} : vector<9x512xf32> to vector<1x512xf32>
    %121 = vector.broadcast %120 : vector<1x512xf32> to vector<4x512xf32>
    %122 = arith.mulf %119, %121 : vector<4x512xf32>
    %123 = arith.addf %115, %122 : vector<4x512xf32>
    %c497_i32_38 = arith.constant 497 : i32
    %124 = tpu.dynamic_rotate %77 by %c497_i32_38 dim 1 : vector<8x512xf32>, i32 -> vector<8x512xf32>
    %125 = vector.extract_strided_slice %78 {offsets = [6, 0, 0], sizes = [1, 4, 8], strides = [1, 1, 1]} : vector<9x4x8xf32> to vector<1x4x8xf32>
    %126 = vector.shape_cast %125 : vector<1x4x8xf32> to vector<4x8xf32>
    %cst_39 = arith.constant dense<0.000000e+00> : vector<4x512xf32>
    %127 = tpu.matmul %126, %124, %cst_39 {dimension_numbers = #tpu.dot_dimension_numbers<[1], [0], [0], [1], [0, 0, 1, 1], [], []>} : vector<4x8xf32>, vector<8x512xf32>, vector<4x512xf32> -> vector<4x512xf32>
    %128 = vector.extract_strided_slice %2 {offsets = [6, 0], sizes = [1, 512], strides = [1, 1]} : vector<9x512xf32> to vector<1x512xf32>
    %129 = vector.broadcast %128 : vector<1x512xf32> to vector<4x512xf32>
    %130 = arith.mulf %127, %129 : vector<4x512xf32>
    %131 = arith.addf %123, %130 : vector<4x512xf32>
    %c496_i32_40 = arith.constant 496 : i32
    %132 = tpu.dynamic_rotate %77 by %c496_i32_40 dim 1 : vector<8x512xf32>, i32 -> vector<8x512xf32>
    %133 = vector.extract_strided_slice %78 {offsets = [7, 0, 0], sizes = [1, 4, 8], strides = [1, 1, 1]} : vector<9x4x8xf32> to vector<1x4x8xf32>
    %134 = vector.shape_cast %133 : vector<1x4x8xf32> to vector<4x8xf32>
    %cst_41 = arith.constant dense<0.000000e+00> : vector<4x512xf32>
    %135 = tpu.matmul %134, %132, %cst_41 {dimension_numbers = #tpu.dot_dimension_numbers<[1], [0], [0], [1], [0, 0, 1, 1], [], []>} : vector<4x8xf32>, vector<8x512xf32>, vector<4x512xf32> -> vector<4x512xf32>
    %136 = vector.extract_strided_slice %2 {offsets = [7, 0], sizes = [1, 512], strides = [1, 1]} : vector<9x512xf32> to vector<1x512xf32>
    %137 = vector.broadcast %136 : vector<1x512xf32> to vector<4x512xf32>
    %138 = arith.mulf %135, %137 : vector<4x512xf32>
    %139 = arith.addf %131, %138 : vector<4x512xf32>
    %c495_i32_42 = arith.constant 495 : i32
    %140 = tpu.dynamic_rotate %77 by %c495_i32_42 dim 1 : vector<8x512xf32>, i32 -> vector<8x512xf32>
    %141 = vector.extract_strided_slice %78 {offsets = [8, 0, 0], sizes = [1, 4, 8], strides = [1, 1, 1]} : vector<9x4x8xf32> to vector<1x4x8xf32>
    %142 = vector.shape_cast %141 : vector<1x4x8xf32> to vector<4x8xf32>
    %cst_43 = arith.constant dense<0.000000e+00> : vector<4x512xf32>
    %143 = tpu.matmul %142, %140, %cst_43 {dimension_numbers = #tpu.dot_dimension_numbers<[1], [0], [0], [1], [0, 0, 1, 1], [], []>} : vector<4x8xf32>, vector<8x512xf32>, vector<4x512xf32> -> vector<4x512xf32>
    %144 = vector.extract_strided_slice %2 {offsets = [8, 0], sizes = [1, 512], strides = [1, 1]} : vector<9x512xf32> to vector<1x512xf32>
    %145 = vector.broadcast %144 : vector<1x512xf32> to vector<4x512xf32>
    %146 = arith.mulf %143, %145 : vector<4x512xf32>
    %147 = arith.addf %139, %146 : vector<4x512xf32>
    %cst_44 = arith.constant 0.000000e+00 : f32
    %148 = vector.broadcast %cst_44 : f32 to vector<4x512xf32>
    %149 = arith.maximumf %147, %148 : vector<4x512xf32>
    %c8 = arith.constant 8 : index
    %c0_45 = arith.constant 0 : index
    %150 = vector.load %arg8[%c8, %c0_45] : memref<16x512xf32, #tpu.memory_space<vmem>>, vector<4x512xf32>
    tpu.vector_store %arg8[%c8, %c0_45], %149 {strides = array<i32>} : memref<16x512xf32, #tpu.memory_space<vmem>>, vector<4x512xf32>,
    %c0_46 = arith.constant 0 : index
    %c0_47 = arith.constant 0 : index
    %151 = vector.load %arg8[%c0_46, %c0_47] : memref<16x512xf32, #tpu.memory_space<vmem>>, vector<12x512xf32>
    %c0_48 = arith.constant 0 : index
    %c0_49 = arith.constant 0 : index
    %c0_50 = arith.constant 0 : index
    %152 = vector.load %arg6[%c0_48, %c0_49, %c0_50] : memref<9x4x12xf32, #tpu.memory_space<vmem>>, vector<9x4x12xf32>
    %cst_51 = arith.constant 0.000000e+00 : f32
    %153 = vector.broadcast %cst_51 : f32 to vector<4x512xf32>
    %c17_i32_52 = arith.constant 17 : i32
    %154 = tpu.dynamic_rotate %151 by %c17_i32_52 dim 1 : vector<12x512xf32>, i32 -> vector<12x512xf32>
    %155 = vector.extract_strided_slice %152 {offsets = [0, 0, 0], sizes = [1, 4, 12], strides = [1, 1, 1]} : vector<9x4x12xf32> to vector<1x4x12xf32>
    %156 = vector.shape_cast %155 : vector<1x4x12xf32> to vector<4x12xf32>
    %cst_53 = arith.constant dense<0.000000e+00> : vector<4x512xf32>
    %157 = tpu.matmul %156, %154, %cst_53 {dimension_numbers = #tpu.dot_dimension_numbers<[1], [0], [0], [1], [0, 0, 1, 1], [], []>} : vector<4x12xf32>, vector<12x512xf32>, vector<4x512xf32> -> vector<4x512xf32>
    %158 = vector.extract_strided_slice %2 {offsets = [0, 0], sizes = [1, 512], strides = [1, 1]} : vector<9x512xf32> to vector<1x512xf32>
    %159 = vector.broadcast %158 : vector<1x512xf32> to vector<4x512xf32>
    %160 = arith.mulf %157, %159 : vector<4x512xf32>
    %161 = arith.addf %153, %160 : vector<4x512xf32>
    %c16_i32_54 = arith.constant 16 : i32
    %162 = tpu.dynamic_rotate %151 by %c16_i32_54 dim 1 : vector<12x512xf32>, i32 -> vector<12x512xf32>
    %163 = vector.extract_strided_slice %152 {offsets = [1, 0, 0], sizes = [1, 4, 12], strides = [1, 1, 1]} : vector<9x4x12xf32> to vector<1x4x12xf32>
    %164 = vector.shape_cast %163 : vector<1x4x12xf32> to vector<4x12xf32>
    %cst_55 = arith.constant dense<0.000000e+00> : vector<4x512xf32>
    %165 = tpu.matmul %164, %162, %cst_55 {dimension_numbers = #tpu.dot_dimension_numbers<[1], [0], [0], [1], [0, 0, 1, 1], [], []>} : vector<4x12xf32>, vector<12x512xf32>, vector<4x512xf32> -> vector<4x512xf32>
    %166 = vector.extract_strided_slice %2 {offsets = [1, 0], sizes = [1, 512], strides = [1, 1]} : vector<9x512xf32> to vector<1x512xf32>
    %167 = vector.broadcast %166 : vector<1x512xf32> to vector<4x512xf32>
    %168 = arith.mulf %165, %167 : vector<4x512xf32>
    %169 = arith.addf %161, %168 : vector<4x512xf32>
    %c15_i32_56 = arith.constant 15 : i32
    %170 = tpu.dynamic_rotate %151 by %c15_i32_56 dim 1 : vector<12x512xf32>, i32 -> vector<12x512xf32>
    %171 = vector.extract_strided_slice %152 {offsets = [2, 0, 0], sizes = [1, 4, 12], strides = [1, 1, 1]} : vector<9x4x12xf32> to vector<1x4x12xf32>
    %172 = vector.shape_cast %171 : vector<1x4x12xf32> to vector<4x12xf32>
    %cst_57 = arith.constant dense<0.000000e+00> : vector<4x512xf32>
    %173 = tpu.matmul %172, %170, %cst_57 {dimension_numbers = #tpu.dot_dimension_numbers<[1], [0], [0], [1], [0, 0, 1, 1], [], []>} : vector<4x12xf32>, vector<12x512xf32>, vector<4x512xf32> -> vector<4x512xf32>
    %174 = vector.extract_strided_slice %2 {offsets = [2, 0], sizes = [1, 512], strides = [1, 1]} : vector<9x512xf32> to vector<1x512xf32>
    %175 = vector.broadcast %174 : vector<1x512xf32> to vector<4x512xf32>
    %176 = arith.mulf %173, %175 : vector<4x512xf32>
    %177 = arith.addf %169, %176 : vector<4x512xf32>
    %c1_i32_58 = arith.constant 1 : i32
    %178 = tpu.dynamic_rotate %151 by %c1_i32_58 dim 1 : vector<12x512xf32>, i32 -> vector<12x512xf32>
    %179 = vector.extract_strided_slice %152 {offsets = [3, 0, 0], sizes = [1, 4, 12], strides = [1, 1, 1]} : vector<9x4x12xf32> to vector<1x4x12xf32>
    %180 = vector.shape_cast %179 : vector<1x4x12xf32> to vector<4x12xf32>
    %cst_59 = arith.constant dense<0.000000e+00> : vector<4x512xf32>
    %181 = tpu.matmul %180, %178, %cst_59 {dimension_numbers = #tpu.dot_dimension_numbers<[1], [0], [0], [1], [0, 0, 1, 1], [], []>} : vector<4x12xf32>, vector<12x512xf32>, vector<4x512xf32> -> vector<4x512xf32>
    %182 = vector.extract_strided_slice %2 {offsets = [3, 0], sizes = [1, 512], strides = [1, 1]} : vector<9x512xf32> to vector<1x512xf32>
    %183 = vector.broadcast %182 : vector<1x512xf32> to vector<4x512xf32>
    %184 = arith.mulf %181, %183 : vector<4x512xf32>
    %185 = arith.addf %177, %184 : vector<4x512xf32>
    %186 = vector.extract_strided_slice %152 {offsets = [4, 0, 0], sizes = [1, 4, 12], strides = [1, 1, 1]} : vector<9x4x12xf32> to vector<1x4x12xf32>
    %187 = vector.shape_cast %186 : vector<1x4x12xf32> to vector<4x12xf32>
    %cst_60 = arith.constant dense<0.000000e+00> : vector<4x512xf32>
    %188 = tpu.matmul %187, %151, %cst_60 {dimension_numbers = #tpu.dot_dimension_numbers<[1], [0], [0], [1], [0, 0, 1, 1], [], []>} : vector<4x12xf32>, vector<12x512xf32>, vector<4x512xf32> -> vector<4x512xf32>
    %189 = arith.addf %185, %188 : vector<4x512xf32>
    %c511_i32_61 = arith.constant 511 : i32
    %190 = tpu.dynamic_rotate %151 by %c511_i32_61 dim 1 : vector<12x512xf32>, i32 -> vector<12x512xf32>
    %191 = vector.extract_strided_slice %152 {offsets = [5, 0, 0], sizes = [1, 4, 12], strides = [1, 1, 1]} : vector<9x4x12xf32> to vector<1x4x12xf32>
    %192 = vector.shape_cast %191 : vector<1x4x12xf32> to vector<4x12xf32>
    %cst_62 = arith.constant dense<0.000000e+00> : vector<4x512xf32>
    %193 = tpu.matmul %192, %190, %cst_62 {dimension_numbers = #tpu.dot_dimension_numbers<[1], [0], [0], [1], [0, 0, 1, 1], [], []>} : vector<4x12xf32>, vector<12x512xf32>, vector<4x512xf32> -> vector<4x512xf32>
    %194 = vector.extract_strided_slice %2 {offsets = [5, 0], sizes = [1, 512], strides = [1, 1]} : vector<9x512xf32> to vector<1x512xf32>
    %195 = vector.broadcast %194 : vector<1x512xf32> to vector<4x512xf32>
    %196 = arith.mulf %193, %195 : vector<4x512xf32>
    %197 = arith.addf %189, %196 : vector<4x512xf32>
    %c497_i32_63 = arith.constant 497 : i32
    %198 = tpu.dynamic_rotate %151 by %c497_i32_63 dim 1 : vector<12x512xf32>, i32 -> vector<12x512xf32>
    %199 = vector.extract_strided_slice %152 {offsets = [6, 0, 0], sizes = [1, 4, 12], strides = [1, 1, 1]} : vector<9x4x12xf32> to vector<1x4x12xf32>
    %200 = vector.shape_cast %199 : vector<1x4x12xf32> to vector<4x12xf32>
    %cst_64 = arith.constant dense<0.000000e+00> : vector<4x512xf32>
    %201 = tpu.matmul %200, %198, %cst_64 {dimension_numbers = #tpu.dot_dimension_numbers<[1], [0], [0], [1], [0, 0, 1, 1], [], []>} : vector<4x12xf32>, vector<12x512xf32>, vector<4x512xf32> -> vector<4x512xf32>
    %202 = vector.extract_strided_slice %2 {offsets = [6, 0], sizes = [1, 512], strides = [1, 1]} : vector<9x512xf32> to vector<1x512xf32>
    %203 = vector.broadcast %202 : vector<1x512xf32> to vector<4x512xf32>
    %204 = arith.mulf %201, %203 : vector<4x512xf32>
    %205 = arith.addf %197, %204 : vector<4x512xf32>
    %c496_i32_65 = arith.constant 496 : i32
    %206 = tpu.dynamic_rotate %151 by %c496_i32_65 dim 1 : vector<12x512xf32>, i32 -> vector<12x512xf32>
    %207 = vector.extract_strided_slice %152 {offsets = [7, 0, 0], sizes = [1, 4, 12], strides = [1, 1, 1]} : vector<9x4x12xf32> to vector<1x4x12xf32>
    %208 = vector.shape_cast %207 : vector<1x4x12xf32> to vector<4x12xf32>
    %cst_66 = arith.constant dense<0.000000e+00> : vector<4x512xf32>
    %209 = tpu.matmul %208, %206, %cst_66 {dimension_numbers = #tpu.dot_dimension_numbers<[1], [0], [0], [1], [0, 0, 1, 1], [], []>} : vector<4x12xf32>, vector<12x512xf32>, vector<4x512xf32> -> vector<4x512xf32>
    %210 = vector.extract_strided_slice %2 {offsets = [7, 0], sizes = [1, 512], strides = [1, 1]} : vector<9x512xf32> to vector<1x512xf32>
    %211 = vector.broadcast %210 : vector<1x512xf32> to vector<4x512xf32>
    %212 = arith.mulf %209, %211 : vector<4x512xf32>
    %213 = arith.addf %205, %212 : vector<4x512xf32>
    %c495_i32_67 = arith.constant 495 : i32
    %214 = tpu.dynamic_rotate %151 by %c495_i32_67 dim 1 : vector<12x512xf32>, i32 -> vector<12x512xf32>
    %215 = vector.extract_strided_slice %152 {offsets = [8, 0, 0], sizes = [1, 4, 12], strides = [1, 1, 1]} : vector<9x4x12xf32> to vector<1x4x12xf32>
    %216 = vector.shape_cast %215 : vector<1x4x12xf32> to vector<4x12xf32>
    %cst_68 = arith.constant dense<0.000000e+00> : vector<4x512xf32>
    %217 = tpu.matmul %216, %214, %cst_68 {dimension_numbers = #tpu.dot_dimension_numbers<[1], [0], [0], [1], [0, 0, 1, 1], [], []>} : vector<4x12xf32>, vector<12x512xf32>, vector<4x512xf32> -> vector<4x512xf32>
    %218 = vector.extract_strided_slice %2 {offsets = [8, 0], sizes = [1, 512], strides = [1, 1]} : vector<9x512xf32> to vector<1x512xf32>
    %219 = vector.broadcast %218 : vector<1x512xf32> to vector<4x512xf32>
    %220 = arith.mulf %217, %219 : vector<4x512xf32>
    %221 = arith.addf %213, %220 : vector<4x512xf32>
    %cst_69 = arith.constant 0.000000e+00 : f32
    %222 = vector.broadcast %cst_69 : f32 to vector<4x512xf32>
    %223 = arith.maximumf %221, %222 : vector<4x512xf32>
    %c12 = arith.constant 12 : index
    %c0_70 = arith.constant 0 : index
    %224 = vector.load %arg8[%c12, %c0_70] : memref<16x512xf32, #tpu.memory_space<vmem>>, vector<4x512xf32>
    tpu.vector_store %arg8[%c12, %c0_70], %223 {strides = array<i32>} : memref<16x512xf32, #tpu.memory_space<vmem>>, vector<4x512xf32>,
    %c0_71 = arith.constant 0 : index
    %c0_72 = arith.constant 0 : index
    %225 = vector.load %arg3[%c0_71, %c0_72] : memref<4x16xf32, #tpu.memory_space<vmem>>, vector<4x16xf32>
    %c0_73 = arith.constant 0 : index
    %c0_74 = arith.constant 0 : index
    %226 = vector.load %arg8[%c0_73, %c0_74] : memref<16x512xf32, #tpu.memory_space<vmem>>, vector<16x512xf32>
    %cst_75 = arith.constant dense<0.000000e+00> : vector<4x512xf32>
    %227 = tpu.matmul %225, %226, %cst_75 {dimension_numbers = #tpu.dot_dimension_numbers<[1], [0], [0], [1], [0, 0, 1, 1], [], []>} : vector<4x16xf32>, vector<16x512xf32>, vector<4x512xf32> -> vector<4x512xf32>
    %228 = arith.addf %227, %0 : vector<4x512xf32>
    %c0_76 = arith.constant 0 : index
    %c0_77 = arith.constant 0 : index
    %229 = vector.load %arg7[%c0_76, %c0_77] : memref<4x512xf32, #tpu.memory_space<vmem>>, vector<4x512xf32>
    tpu.vector_store %arg7[%c0_76, %c0_77], %228 {strides = array<i32>} : memref<4x512xf32, #tpu.memory_space<vmem>>, vector<4x512xf32>,
    return
  }
  func.func @transform_0(%arg0: i32) -> (i32, i32) {
    %c0_i32 = arith.constant 0 : i32
    %c0_i32_0 = arith.constant 0 : i32
    return %c0_i32, %arg0 : i32, i32
  }
  func.func @transform_1(%arg0: i32) -> (i32, i32) {
    %c0_i32 = arith.constant 0 : i32
    %c0_i32_0 = arith.constant 0 : i32
    %c0_i32_1 = arith.constant 0 : i32
    return %c0_i32, %c0_i32_0 : i32, i32
  }
  func.func @transform_2(%arg0: i32) -> (i32, i32) {
    %c0_i32 = arith.constant 0 : i32
    %c0_i32_0 = arith.constant 0 : i32
    %c0_i32_1 = arith.constant 0 : i32
    return %c0_i32, %c0_i32_0 : i32, i32
  }
  func.func @transform_3(%arg0: i32) -> (i32, i32, i32) {
    %c0_i32 = arith.constant 0 : i32
    %c0_i32_0 = arith.constant 0 : i32
    %c0_i32_1 = arith.constant 0 : i32
    %c0_i32_2 = arith.constant 0 : i32
    return %c0_i32, %c0_i32_0, %c0_i32_1 : i32, i32, i32
  }
  func.func @transform_4(%arg0: i32) -> (i32, i32, i32) {
    %c0_i32 = arith.constant 0 : i32
    %c0_i32_0 = arith.constant 0 : i32
    %c0_i32_1 = arith.constant 0 : i32
    %c0_i32_2 = arith.constant 0 : i32
    return %c0_i32, %c0_i32_0, %c0_i32_1 : i32, i32, i32
  }
  func.func @transform_5(%arg0: i32) -> (i32, i32, i32) {
    %c0_i32 = arith.constant 0 : i32
    %c0_i32_0 = arith.constant 0 : i32
    %c0_i32_1 = arith.constant 0 : i32
    %c0_i32_2 = arith.constant 0 : i32
    return %c0_i32, %c0_i32_0, %c0_i32_1 : i32, i32, i32
  }
  func.func @transform_6(%arg0: i32) -> (i32, i32) {
    %c0_i32 = arith.constant 0 : i32
    %c0_i32_0 = arith.constant 0 : i32
    return %c0_i32, %arg0 : i32, i32
  }
}

</mosaic_0001>

<llo_original>
// kernel: rdb_forward.1
$region0: #{rdb_forward.1}
  #allocation0 [shape = 'u32[]', space=smem, size = 0x4, offset = 0x4, fixed_abs, tag = 'smem constant byte address 0x4 - core index']
  #allocation1 [shape = 'u32[144,128]{1,0:T(1,128)}', space=vmem, size = 0x12000, scoped, tag = 'internal scratch']
  #allocation2 [shape = 'f32[16,512]{1,0:T(8,128)}', space=vmem, size = 0x8000, scoped, tag = 'scratch operand']
  %s0 = inlined_call_operand.vmem [shape: f32[4,1024], index: 0, kind: input, shape index: {}]
  %s1 = inlined_call_operand.vmem [shape: f32[9,512], index: 1, kind: input, shape index: {}]
  %s2 = inlined_call_operand.vmem [shape: f32[4,16], index: 2, kind: input, shape index: {}]
  %s3 = inlined_call_operand.vmem [shape: f32[9,4,4], index: 3, kind: input, shape index: {}]
  %s4 = inlined_call_operand.vmem [shape: f32[9,4,8], index: 4, kind: input, shape index: {}]
  %s5 = inlined_call_operand.vmem [shape: f32[9,4,12], index: 5, kind: input, shape index: {}]
  %s6 = inlined_call_operand.vmem [shape: f32[4,1024], index: 6, kind: output, shape index: {}]
  %s7 = sld [smem:[#allocation0]]
  $region57: #{rdb_forward.1} parent=0
    _
  %s9 = ssub.s32 1, %s7
  %s10 = scalar_select 0, %s9, %s7
  loop: start=0, step=1, limit=4
  $region2: #{rdb_forward.1} parent=0 // loop_pre_header
    _
  $region3: #{rdb_forward.1} parent=0 // loop_header
    %s12 = sphi 0, %s16
    %p13 = scmp.ge.s32.totalorder %s12, 4
    %s22 = sphi 0, %s24
    %s25 = sphi 0, %s22
    %s26 = sphi 0, %s25
    %s42 = sphi 0, %s26
    %s46 = sphi 0, %s46
    %s48 = sphi 0, %s46
    %s49 = sphi 0, %s48
    %s63 = sphi 0, %s49
    %s67 = sphi 0, %s67
    %s69 = sphi 0, %s67
    %s70 = sphi 0, %s69
    %s84 = sphi 0, %s70
    %s88 = sphi 0, %s88
    %s90 = sphi 0, %s88
    %s91 = sphi 0, %s90
    %s105 = sphi 0, %s91
    %s109 = sphi 0, %s109
    %s111 = sphi 0, %s109
    %s112 = sphi 0, %s111
    %s126 = sphi 0, %s112
    %s130 = sphi 0, %s130
    %s132 = sphi 0, %s130
    %s133 = sphi 0, %s132
    %s147 = sphi 0, %s133
    %s153 = sphi 0, %s155
    %s156 = sphi 0, %s153
    %s157 = sphi 0, %s156
    %s173 = sphi 0, %s157
  $region4: #{rdb_forward.1} parent=0 // loop_header_branch
    %15 = sbr.rel (%p13) target = $region8
  $region5: #{rdb_forward.1} parent=0 // loop_body
    %s17 = ssub.s32 %s12, 1
    %s18 = ssub.s32 %s12, 2
    %s19 = sadd.s32 %s12, 1
    %s20 = ssub.s32 %s12, %s19
    %p21 = scmp.eq.s32.totalorder %s20, 0
    %s23 = sadd.s32 %s22, 1
    %s24 = scalar_select %p21, %s22, %s23
    %p27 = pneg %p21
    %p28 = scmp.eq.s32.totalorder %s12, 1
    %p29 = por %p27, %p28
    %p30 = scmp.ne.s32.totalorder %s22, %s25
    %p31 = scmp.eq.s32.totalorder %s12, 0
    %p32 = por %p30, %p31
    %p33 = scmp.ne.s32.totalorder %s22, %s25
    %p34 = scmp.eq.s32.totalorder %s17, 1
    %p35 = por %p33, %p34
    %p36 = scmp.ne.s32.totalorder %s25, %s26
    %p37 = scmp.eq.s32.totalorder %s17, 0
    %p38 = por %p36, %p37
    %p39 = scmp.ne.s32.totalorder %s25, %s26
    %p40 = scmp.eq.s32.totalorder %s18, 1
    %p41 = por %p39, %p40
    %p43 = scmp.ne.s32.totalorder %s26, %s42
    %p44 = scmp.eq.s32.totalorder %s18, 0
    %p45 = por %p43, %p44
    %s47 = sadd.s32 %s46, 1
    %p50 = scmp.eq.s32.totalorder %s12, 1
    %p51 = scmp.ne.s32.totalorder %s46, %s48
    %p52 = scmp.eq.s32.totalorder %s12, 0
    %p53 = por %p51, %p52
    %p54 = scmp.ne.s32.totalorder %s46, %s48
    %p55 = scmp.eq.s32.totalorder %s17, 1
    %p56 = por %p54, %p55
    %p57 = scmp.ne.s32.totalorder %s48, %s49
    %p58 = scmp.eq.s32.totalorder %s17, 0
    %p59 = por %p57, %p58
    %p60 = scmp.ne.s32.totalorder %s48, %s49
    %p61 = scmp.eq.s32.totalorder %s18, 1
    %p62 = por %p60, %p61
    %p64 = scmp.ne.s32.totalorder %s49, %s63
    %p65 = scmp.eq.s32.totalorder %s18, 0
    %p66 = por %p64, %p65
    %s68 = sadd.s32 %s67, 1
    %p71 = scmp.eq.s32.totalorder %s12, 1
    %p72 = scmp.ne.s32.totalorder %s67, %s69
    %p73 = scmp.eq.s32.totalorder %s12, 0
    %p74 = por %p72, %p73
    %p75 = scmp.ne.s32.totalorder %s67, %s69
    %p76 = scmp.eq.s32.totalorder %s17, 1
    %p77 = por %p75, %p76
    %p78 = scmp.ne.s32.totalorder %s69, %s70
    %p79 = scmp.eq.s32.totalorder %s17, 0
    %p80 = por %p78, %p79
    %p81 = scmp.ne.s32.totalorder %s69, %s70
    %p82 = scmp.eq.s32.totalorder %s18, 1
    %p83 = por %p81, %p82
    %p85 = scmp.ne.s32.totalorder %s70, %s84
    %p86 = scmp.eq.s32.totalorder %s18, 0
    %p87 = por %p85, %p86
    %s89 = sadd.s32 %s88, 1
    %p92 = scmp.eq.s32.totalorder %s12, 1
    %p93 = scmp.ne.s32.totalorder %s88, %s90
    %p94 = scmp.eq.s32.totalorder %s12, 0
    %p95 = por %p93, %p94
    %p96 = scmp.ne.s32.totalorder %s88, %s90
    %p97 = scmp.eq.s32.totalorder %s17, 1
    %p98 = por %p96, %p97
    %p99 = scmp.ne.s32.totalorder %s90, %s91
    %p100 = scmp.eq.s32.totalorder %s17, 0
    %p101 = por %p99, %p100
    %p102 = scmp.ne.s32.totalorder %s90, %s91
    %p103 = scmp.eq.s32.totalorder %s18, 1
    %p104 = por %p102, %p103
    %p106 = scmp.ne.s32.totalorder %s91, %s105
    %p107 = scmp.eq.s32.totalorder %s18, 0
    %p108 = por %p106, %p107
    %s110 = sadd.s32 %s109, 1
    %p113 = scmp.eq.s32.totalorder %s12, 1
    %p114 = scmp.ne.s32.totalorder %s109, %s111
    %p115 = scmp.eq.s32.totalorder %s12, 0
    %p116 = por %p114, %p115
    %p117 = scmp.ne.s32.totalorder %s109, %s111
    %p118 = scmp.eq.s32.totalorder %s17, 1
    %p119 = por %p117, %p118
    %p120 = scmp.ne.s32.totalorder %s111, %s112
    %p121 = scmp.eq.s32.totalorder %s17, 0
    %p122 = por %p120, %p121
    %p123 = scmp.ne.s32.totalorder %s111, %s112
    %p124 = scmp.eq.s32.totalorder %s18, 1
    %p125 = por %p123, %p124
    %p127 = scmp.ne.s32.totalorder %s112, %s126
    %p128 = scmp.eq.s32.totalorder %s18, 0
    %p129 = por %p127, %p128
    %s131 = sadd.s32 %s130, 1
    %p134 = scmp.eq.s32.totalorder %s12, 1
    %p135 = scmp.ne.s32.totalorder %s130, %s132
    %p136 = scmp.eq.s32.totalorder %s12, 0
    %p137 = por %p135, %p136
    %p138 = scmp.ne.s32.totalorder %s130, %s132
    %p139 = scmp.eq.s32.totalorder %s17, 1
    %p140 = por %p138, %p139
    %p141 = scmp.ne.s32.totalorder %s132, %s133
    %p142 = scmp.eq.s32.totalorder %s17, 0
    %p143 = por %p141, %p142
    %p144 = scmp.ne.s32.totalorder %s132, %s133
    %p145 = scmp.eq.s32.totalorder %s18, 1
    %p146 = por %p144, %p145
    %p148 = scmp.ne.s32.totalorder %s133, %s147
    %p149 = scmp.eq.s32.totalorder %s18, 0
    %p150 = por %p148, %p149
    %s151 = ssub.s32 %s12, %s19
    %p152 = scmp.eq.s32.totalorder %s151, 0
    %s154 = sadd.s32 %s153, 1
    %s155 = scalar_select %p152, %s153, %s154
    %p158 = pneg %p152
    %p159 = scmp.eq.s32.totalorder %s12, 1
    %p160 = por %p158, %p159
    %p161 = scmp.ne.s32.totalorder %s153, %s156
    %p162 = scmp.eq.s32.totalorder %s12, 0
    %p163 = por %p161, %p162
    %p164 = scmp.ne.s32.totalorder %s153, %s156
    %p165 = scmp.eq.s32.totalorder %s17, 1
    %p166 = por %p164, %p165
    %p167 = scmp.ne.s32.totalorder %s156, %s157
    %p168 = scmp.eq.s32.totalorder %s17, 0
    %p169 = por %p167, %p168
    %p170 = scmp.ne.s32.totalorder %s156, %s157
    %p171 = scmp.eq.s32.totalorder %s18, 1
    %p172 = por %p170, %p171
    %p174 = scmp.ne.s32.totalorder %s157, %s173
    %p175 = scmp.eq.s32.totalorder %s18, 0
    %p176 = por %p174, %p175
    %p177 = scmp.le.s32.totalorder 1, %s12
    %p178 = scmp.lt.s32.totalorder %s12, 3
    %p179 = pnand %p177, %p178
    %p180 = pneg %p179
    // Predicated region
    $region9: #{rdb_forward.1} parent=5 // pred_check
      _
    $region10: #{rdb_forward.1} parent=5 // pred_check_branch
      %182 = sbr.rel (%p179) target = $region12
    $region11: #{rdb_forward.1} parent=5 // pred_region
      %s183 = ssub.s32 %s12, 1
      // Predicated region
      $region13: #{rdb_forward.1} parent=11 // pred_check
        %p184 = pneg %p59
      $region14: #{rdb_forward.1} parent=11 // pred_check_branch
        %186 = sbr.rel (%p184) target = $region16
      $region15: #{rdb_forward.1} parent=11 // pred_region
        _
      $region16: #{rdb_forward.1} parent=11 // pred_fallthru
        _
      // Predicated region
      $region17: #{rdb_forward.1} parent=11 // pred_check
        %p187 = pneg %p80
      $region18: #{rdb_forward.1} parent=11 // pred_check_branch
        %189 = sbr.rel (%p187) target = $region20
      $region19: #{rdb_forward.1} parent=11 // pred_region
        _
      $region20: #{rdb_forward.1} parent=11 // pred_fallthru
        _
      // Predicated region
      $region21: #{rdb_forward.1} parent=11 // pred_check
        %p190 = pneg %p101
      $region22: #{rdb_forward.1} parent=11 // pred_check_branch
        %192 = sbr.rel (%p190) target = $region24
      $region23: #{rdb_forward.1} parent=11 // pred_region
        _
      $region24: #{rdb_forward.1} parent=11 // pred_fallthru
        _
      // Predicated region
      $region25: #{rdb_forward.1} parent=11 // pred_check
        %p193 = pneg %p122
      $region26: #{rdb_forward.1} parent=11 // pred_check_branch
        %195 = sbr.rel (%p193) target = $region28
      $region27: #{rdb_forward.1} parent=11 // pred_region
        _
      $region28: #{rdb_forward.1} parent=11 // pred_fallthru
        _
      // Predicated region
      $region29: #{rdb_forward.1} parent=11 // pred_check
        %p196 = pneg %p143
      $region30: #{rdb_forward.1} parent=11 // pred_check_branch
        %198 = sbr.rel (%p196) target = $region32
      $region31: #{rdb_forward.1} parent=11 // pred_region
        _
      $region32: #{rdb_forward.1} parent=11 // pred_fallthru
        _
    $region12: #{rdb_forward.1} parent=5 // pred_fallthru
      _
    %p199 = scmp.lt.s32.totalorder %s12, 2
    // Predicated region
    $region33: #{rdb_forward.1} parent=5 // pred_check
      %p200 = pneg %p199
    $region34: #{rdb_forward.1} parent=5 // pred_check_branch
      %202 = sbr.rel (%p200) target = $region36
    $region35: #{rdb_forward.1} parent=5 // pred_region
      // Predicated region
      $region37: #{rdb_forward.1} parent=35 // pred_check
        %p203 = pneg %p32
      $region38: #{rdb_forward.1} parent=35 // pred_check_branch
        %205 = sbr.rel (%p203) target = $region40
      $region39: #{rdb_forward.1} parent=35 // pred_region
        %s206 = smul.u32 4, %s12
        %p207 = scmp.lt.s32.totalorder %s206, 7
        %s208 = scalar_select %p207, %s206, 7
        %s209 = smul.addr %s208, 4
        %s210 = scalar_lea.vmem %s0, %s209
        %s211 = smul.u32 4, %s12
      $region40: #{rdb_forward.1} parent=35 // pred_fallthru
        _
    $region36: #{rdb_forward.1} parent=5 // pred_fallthru
      _
    %p212 = scmp.le.s32.totalorder 1, %s12
    %p213 = scmp.lt.s32.totalorder %s12, 3
    %p214 = pnand %p212, %p213
    %p215 = pneg %p214
    // Predicated region
    $region41: #{rdb_forward.1} parent=5 // pred_check
      _
    $region42: #{rdb_forward.1} parent=5 // pred_check_branch
      %217 = sbr.rel (%p214) target = $region44
    $region43: #{rdb_forward.1} parent=5 // pred_region
      %s218 = ssub.s32 %s12, 1
      %s219 = smul.u32 4, %s17
      %p220 = scmp.lt.s32.totalorder %s219, 7
      %s221 = scalar_select %p220, %s219, 7
      %s222 = smul.addr %s221, 4
      %s223 = scalar_lea.vmem %s0, %s222
      %p224 = pneg %p38
      %p225 = pneg %p35
      %p226 = pneg %p59
      %p227 = pneg %p56
      %p228 = pneg %p80
      %p229 = pneg %p77
      %p230 = pneg %p101
      %p231 = pneg %p98
      %p232 = pneg %p122
      %p233 = pneg %p119
      %p234 = pneg %p143
      %p235 = pneg %p140
      %p236 = pneg %p169
      %p237 = pneg %p166
      %s238 = smul.u32 4, %s17
      %p239 = scmp.lt.s32.totalorder %s238, 7
      %s240 = scalar_select %p239, %s238, 7
      %s241 = smul.addr %s240, 4
      %s242 = scalar_lea.vmem %s6, %s241
      %s243 = smul.u32 4, %s17
      %p244 = scmp.lt.s32.totalorder %s243, 7
      %s245 = scalar_select %p244, %s243, 7
      %s246 = smul.addr %s245, 4
      %s247 = scalar_lea.vmem %s0, %s246
      %s248 = smul.u32 4, %s17
      %s249 = smul.u32 4, %s17
      %p250 = scmp.lt.s32.totalorder %s249, 7
      %s251 = scalar_select %p250, %s249, 7
      %s252 = smul.addr %s251, 4
      %s253 = scalar_lea.vmem %s6, %s252
      %s254 = smul.u32 4, %s17
      %v255 = vld [vmem:[%s247] sm:$0xff]
      %v256 = vld [vmem:[%s247 + $0x8] sm:$0xff]
      %v259 = vcombine.high %v255, %v255
      %v260 = vcombine.high %v256, %v256
      %263 = vst [vmem:[#allocation2] sm:$0xf] %v255
      %264 = vst [vmem:[#allocation2 + $0x8] sm:$0xf] %v259
      %265 = vst [vmem:[#allocation2 + $0x10] sm:$0xf] %v256
      %266 = vst [vmem:[#allocation2 + $0x18] sm:$0xf] %v260
      %v267 = vld [vmem:[%s1] sm:$0xff]
      %v268 = vld [vmem:[%s1 + $0x8] sm:$0xff]
      %v269 = vld [vmem:[%s1 + $0x10] sm:$0xff]
      %v270 = vld [vmem:[%s1 + $0x18] sm:$0xff]
      %v271 = vld [vmem:[%s1 + $0x20] sm:$0x1]
      %v272 = vld [vmem:[%s1 + $0x28] sm:$0x1]
      %v273 = vld [vmem:[%s1 + $0x30] sm:$0x1]
      %v274 = vld [vmem:[%s1 + $0x38] sm:$0x1]
      %v275 = vld [vmem:[#allocation2] sm:$0xf]
      %v276 = vld [vmem:[#allocation2 + $0x8] sm:$0xf]
      %v277 = vld [vmem:[#allocation2 + $0x10] sm:$0xf]
      %v278 = vld [vmem:[#allocation2 + $0x18] sm:$0xf]
      %v279 = vld [vmem:[%s3] sm:$0xf]
      %v280 = vld [vmem:[%s3 + $0x4] sm:$0xf]
      %v281 = vld [vmem:[%s3 + $0x8] sm:$0xf]
      %v282 = vld [vmem:[%s3 + $0xc] sm:$0xf]
      %v283 = vld [vmem:[%s3 + $0x10] sm:$0xf]
      %v284 = vld [vmem:[%s3 + $0x14] sm:$0xf]
      %v285 = vld [vmem:[%s3 + $0x18] sm:$0xf]
      %v286 = vld [vmem:[%s3 + $0x1c] sm:$0xf]
      %v287 = vld [vmem:[%s3 + $0x20] sm:$0xf]
      %288 = vrot.lane.b32.xlu0 %v275, 17
      %v289 = vpop.permute.xlu0 %288
      %290 = vrot.lane.b32.xlu0 %v276, 17
      %v291 = vpop.permute.xlu0 %290
      %292 = vrot.lane.b32.xlu0 %v277, 17
      %v293 = vpop.permute.xlu0 %292
      %294 = vrot.lane.b32.xlu0 %v278, 17
      %v295 = vpop.permute.xlu0 %294
      %v296 = vlaneseq
      %v297 = vand.u32 %v296, 127
      %vm298 = vcmp.lt.s32.totalorder %v297, 17
      %v299 = vsel %vm298, %v293, %v295
      %v300 = vsel %vm298, %v291, %v293
      %v301 = vsel %vm298, %v289, %v291
      %v302 = vsel %vm298, %v295, %v289
      %vm303 = vcmask 31744
      %v305 = vsel %vm303, %v279, 0
      %vm307 = vcmask 1043456
      %v309 = vsel %vm307, %v302, 0
      %v312 = vsel %vm307, %v301, 0
      %v315 = vsel %vm307, %v300, 0
      %v318 = vsel %vm307, %v299, 0
      %320 = vmatprep.subr.mxu0 %v312
      %321 = vmatpush1.msra.mxu0 %v309
      %322 = vmatprep.subr.mxu0 0.0
      %323 = vmatpush1.msra.mxu0 0.0
      %324 = vmatprep.subr.mxu0 0.0
      %325 = vmatpush1.msra.mxu0 0.0
      %326 = vmatprep.subr.mxu0 0.0
      %327 = vmatpush1.msra.mxu0 0.0
      %328 = vmatprep.subr.mxu0 0.0
      %329 = vmatpush1.msra.mxu0 0.0
      %330 = vmatprep.subr.mxu0 0.0
      %331 = vmatpush1.msra.mxu0 0.0
      %332 = vmatprep.subr.mxu0 0.0
      %333 = vmatpush1.msra.mxu0 0.0
      %334 = vmatprep.subr.mxu0 0.0
      %335 = vmatpush1.msra.mxu0 0.0
      %336 = vmatprep.subr.mxu0 0.0
      %337 = vmatpush1.msra.mxu0 0.0
      %338 = vmatprep.subr.mxu0 0.0
      %339 = vmatpush1.msra.mxu0 0.0
      %340 = vmatprep.subr.mxu0 0.0
      %341 = vmatpush1.msra.mxu0 0.0
      %342 = vmatprep.subr.mxu0 0.0
      %343 = vmatpush1.msra.mxu0 0.0
      %344 = vmatprep.subr.mxu0 0.0
      %345 = vmatpush1.msra.mxu0 0.0
      %346 = vmatprep.subr.mxu0 0.0
      %347 = vmatpush1.msra.mxu0 0.0
      %348 = vmatprep.subr.mxu0 0.0
      %349 = vmatpush1.msra.mxu0 0.0
      %350 = vmatprep.subr.mxu0 0.0
      %351 = vmatpush1.msra.mxu0 0.0
      %352 = vmatprep.subr.mxu0 0.0
      %353 = vmatpush1.msra.mxu0 0.0
      %354 = vmatprep.subr.mxu0 0.0
      %355 = vmatpush1.msra.mxu0 0.0
      %356 = vmatprep.subr.mxu0 0.0
      %357 = vmatpush1.msra.mxu0 0.0
      %358 = vmatprep.subr.mxu0 0.0
      %359 = vmatpush1.msra.mxu0 0.0
      %360 = vmatprep.subr.mxu0 0.0
      %361 = vmatpush1.msra.mxu0 0.0
      %362 = vmatprep.subr.mxu0 0.0
      %363 = vmatpush1.msra.mxu0 0.0
      %364 = vmatprep.subr.mxu0 0.0
      %365 = vmatpush1.msra.mxu0 0.0
      %366 = vmatprep.subr.mxu0 0.0
      %367 = vmatpush1.msra.mxu0 0.0
      %368 = vmatprep.subr.mxu0 0.0
      %369 = vmatpush1.msra.mxu0 0.0
      %370 = vmatprep.subr.mxu0 0.0
      %371 = vmatpush1.msra.mxu0 0.0
      %372 = vmatprep.subr.mxu0 0.0
      %373 = vmatpush1.msra.mxu0 0.0
      %374 = vmatprep.subr.mxu0 0.0
      %375 = vmatpush1.msra.mxu0 0.0
      %376 = vmatprep.subr.mxu0 0.0
      %377 = vmatpush1.msra.mxu0 0.0
      %378 = vmatprep.subr.mxu0 0.0
      %379 = vmatpush1.msra.mxu0 0.0
      %380 = vmatprep.subr.mxu0 0.0
      %381 = vmatpush1.msra.mxu0 0.0
      %382 = vmatprep.subr.mxu0 0.0
      %383 = vmatpush1.msra.mxu0 0.0
      %384 = vmatprep.mubr.f32.mxu0 0.0
      %385 = vmatmul.mubr.f32.gmra.mrb[0].mxu0 %v305
      %v386 = vpop.f32.mrb[0].mxu0
      %v387 = vadd.f32 0.0, %v386
      %v388 = vpop.f32.mrb[0].mxu0
      %v389 = vadd.f32 0.0, %v388
      %390 = vdwg.mxu0
      %391 = vmatprep.subr.mxu0 %v318
      %392 = vmatpush1.msra.mxu0 %v315
      %393 = vmatprep.subr.mxu0 0.0
      %394 = vmatpush1.msra.mxu0 0.0
      %395 = vmatprep.subr.mxu0 0.0
      %396 = vmatpush1.msra.mxu0 0.0
      %397 = vmatprep.subr.mxu0 0.0
      %398 = vmatpush1.msra.mxu0 0.0
      %399 = vmatprep.subr.mxu0 0.0
      %400 = vmatpush1.msra.mxu0 0.0
      %401 = vmatprep.subr.mxu0 0.0
      %402 = vmatpush1.msra.mxu0 0.0
      %403 = vmatprep.subr.mxu0 0.0
      %404 = vmatpush1.msra.mxu0 0.0
      %405 = vmatprep.subr.mxu0 0.0
      %406 = vmatpush1.msra.mxu0 0.0
      %407 = vmatprep.subr.mxu0 0.0
      %408 = vmatpush1.msra.mxu0 0.0
      %409 = vmatprep.subr.mxu0 0.0
      %410 = vmatpush1.msra.mxu0 0.0
      %411 = vmatprep.subr.mxu0 0.0
      %412 = vmatpush1.msra.mxu0 0.0
      %413 = vmatprep.subr.mxu0 0.0
      %414 = vmatpush1.msra.mxu0 0.0
      %415 = vmatprep.subr.mxu0 0.0
      %416 = vmatpush1.msra.mxu0 0.0
      %417 = vmatprep.subr.mxu0 0.0
      %418 = vmatpush1.msra.mxu0 0.0
      %419 = vmatprep.subr.mxu0 0.0
      %420 = vmatpush1.msra.mxu0 0.0
      %421 = vmatprep.subr.mxu0 0.0
      %422 = vmatpush1.msra.mxu0 0.0
      %423 = vmatprep.subr.mxu0 0.0
      %424 = vmatpush1.msra.mxu0 0.0
      %425 = vmatprep.subr.mxu0 0.0
      %426 = vmatpush1.msra.mxu0 0.0
      %427 = vmatprep.subr.mxu0 0.0
      %428 = vmatpush1.msra.mxu0 0.0
      %429 = vmatprep.subr.mxu0 0.0
      %430 = vmatpush1.msra.mxu0 0.0
      %431 = vmatprep.subr.mxu0 0.0
      %432 = vmatpush1.msra.mxu0 0.0
      %433 = vmatprep.subr.mxu0 0.0
      %434 = vmatpush1.msra.mxu0 0.0
      %435 = vmatprep.subr.mxu0 0.0
      %436 = vmatpush1.msra.mxu0 0.0
      %437 = vmatprep.subr.mxu0 0.0
      %438 = vmatpush1.msra.mxu0 0.0
      %439 = vmatprep.subr.mxu0 0.0
      %440 = vmatpush1.msra.mxu0 0.0
      %441 = vmatprep.subr.mxu0 0.0
      %442 = vmatpush1.msra.mxu0 0.0
      %443 = vmatprep.subr.mxu0 0.0
      %444 = vmatpush1.msra.mxu0 0.0
      %445 = vmatprep.subr.mxu0 0.0
      %446 = vmatpush1.msra.mxu0 0.0
      %447 = vmatprep.subr.mxu0 0.0
      %448 = vmatpush1.msra.mxu0 0.0
      %449 = vmatprep.subr.mxu0 0.0
      %450 = vmatpush1.msra.mxu0 0.0
      %451 = vmatprep.subr.mxu0 0.0
      %452 = vmatpush1.msra.mxu0 0.0
      %453 = vmatprep.subr.mxu0 0.0
      %454 = vmatpush1.msra.mxu0 0.0
      %455 = vmatprep.mubr.f32.mxu0 0.0
      %456 = vmatmul.mubr.f32.gmra.mrb[0].mxu0 %v305
      %v457 = vpop.f32.mrb[0].mxu0
      %v458 = vadd.f32 0.0, %v457
      %v459 = vpop.f32.mrb[0].mxu0
      %v460 = vadd.f32 0.0, %v459
      %461 = vdwg.mxu0
      %v462 = vlaneseq
      %v463 = vshrl.u32 %v462, 7
      %v464 = vsub.s32 0, %v463
      %v465 = vrot.slane %v267, %v464
      %v466 = vlaneseq
      %v467 = vshrl.u32 %v466, 7
      %v468 = vsub.s32 0, %v467
      %v469 = vrot.slane %v268, %v468
      %v470 = vlaneseq
      %v471 = vshrl.u32 %v470, 7
      %v472 = vsub.s32 0, %v471
      %v473 = vrot.slane %v269, %v472
      %v474 = vlaneseq
      %v475 = vshrl.u32 %v474, 7
      %v476 = vsub.s32 0, %v475
      %v477 = vrot.slane %v270, %v476
      %v478 = vmul.f32 %v387, %v465
      %v479 = vmul.f32 %v389, %v469
      %v480 = vmul.f32 %v458, %v473
      %v481 = vmul.f32 %v460, %v477
      %v482 = vadd.f32 %v478, 0.0
      %v483 = vadd.f32 %v479, 0.0
      %v484 = vadd.f32 %v480, 0.0
      %v485 = vadd.f32 %v481, 0.0
      %486 = vrot.lane.b32.xlu0 %v275, 16
      %v487 = vpop.permute.xlu0 %486
      %488 = vrot.lane.b32.xlu0 %v276, 16
      %v489 = vpop.permute.xlu0 %488
      %490 = vrot.lane.b32.xlu0 %v277, 16
      %v491 = vpop.permute.xlu0 %490
      %492 = vrot.lane.b32.xlu0 %v278, 16
      %v493 = vpop.permute.xlu0 %492
      %vm494 = vcmp.lt.s32.totalorder %v297, 16
      %v495 = vsel %vm494, %v491, %v493
      %v496 = vsel %vm494, %v489, %v491
      %v497 = vsel %vm494, %v487, %v489
      %v498 = vsel %vm494, %v493, %v487
      %v500 = vsel %vm303, %v280, 0
      %v503 = vsel %vm307, %v498, 0
      %v506 = vsel %vm307, %v497, 0
      %v509 = vsel %vm307, %v496, 0
      %v512 = vsel %vm307, %v495, 0
      %514 = vmatprep.subr.mxu0 %v506
      %515 = vmatpush1.msra.mxu0 %v503
      %516 = vmatprep.subr.mxu0 0.0
      %517 = vmatpush1.msra.mxu0 0.0
      %518 = vmatprep.subr.mxu0 0.0
      %519 = vmatpush1.msra.mxu0 0.0
      %520 = vmatprep.subr.mxu0 0.0
      %521 = vmatpush1.msra.mxu0 0.0
      %522 = vmatprep.subr.mxu0 0.0
      %523 = vmatpush1.msra.mxu0 0.0
      %524 = vmatprep.subr.mxu0 0.0
      %525 = vmatpush1.msra.mxu0 0.0
      %526 = vmatprep.subr.mxu0 0.0
      %527 = vmatpush1.msra.mxu0 0.0
      %528 = vmatprep.subr.mxu0 0.0
      %529 = vmatpush1.msra.mxu0 0.0
      %530 = vmatprep.subr.mxu0 0.0
      %531 = vmatpush1.msra.mxu0 0.0
      %532 = vmatprep.subr.mxu0 0.0
      %533 = vmatpush1.msra.mxu0 0.0
      %534 = vmatprep.subr.mxu0 0.0
      %535 = vmatpush1.msra.mxu0 0.0
      %536 = vmatprep.subr.mxu0 0.0
      %537 = vmatpush1.msra.mxu0 0.0
      %538 = vmatprep.subr.mxu0 0.0
      %539 = vmatpush1.msra.mxu0 0.0
      %540 = vmatprep.subr.mxu0 0.0
      %541 = vmatpush1.msra.mxu0 0.0
      %542 = vmatprep.subr.mxu0 0.0
      %543 = vmatpush1.msra.mxu0 0.0
      %544 = vmatprep.subr.mxu0 0.0
      %545 = vmatpush1.msra.mxu0 0.0
      %546 = vmatprep.subr.mxu0 0.0
      %547 = vmatpush1.msra.mxu0 0.0
      %548 = vmatprep.subr.mxu0 0.0
      %549 = vmatpush1.msra.mxu0 0.0
      %550 = vmatprep.subr.mxu0 0.0
      %551 = vmatpush1.msra.mxu0 0.0
      %552 = vmatprep.subr.mxu0 0.0
      %553 = vmatpush1.msra.mxu0 0.0
      %554 = vmatprep.subr.mxu0 0.0
      %555 = vmatpush1.msra.mxu0 0.0
      %556 = vmatprep.subr.mxu0 0.0
      %557 = vmatpush1.msra.mxu0 0.0
      %558 = vmatprep.subr.mxu0 0.0
      %559 = vmatpush1.msra.mxu0 0.0
      %560 = vmatprep.subr.mxu0 0.0
      %561 = vmatpush1.msra.mxu0 0.0
      %562 = vmatprep.subr.mxu0 0.0
      %563 = vmatpush1.msra.mxu0 0.0
      %564 = vmatprep.subr.mxu0 0.0
      %565 = vmatpush1.msra.mxu0 0.0
      %566 = vmatprep.subr.mxu0 0.0
      %567 = vmatpush1.msra.mxu0 0.0
      %568 = vmatprep.subr.mxu0 0.0
      %569 = vmatpush1.msra.mxu0 0.0
      %570 = vmatprep.subr.mxu0 0.0
      %571 = vmatpush1.msra.mxu0 0.0
      %572 = vmatprep.subr.mxu0 0.0
      %573 = vmatpush1.msra.mxu0 0.0
      %574 = vmatprep.subr.mxu0 0.0
      %575 = vmatpush1.msra.mxu0 0.0
      %576 = vmatprep.subr.mxu0 0.0
      %577 = vmatpush1.msra.mxu0 0.0
      %578 = vmatprep.mubr.f32.mxu0 0.0
      %579 = vmatmul.mubr.f32.gmra.mrb[0].mxu0 %v500
      %v580 = vpop.f32.mrb[0].mxu0
      %v581 = vadd.f32 0.0, %v580
      %v582 = vpop.f32.mrb[0].mxu0
      %v583 = vadd.f32 0.0, %v582
      %584 = vdwg.mxu0
      %585 = vmatprep.subr.mxu0 %v512
      %586 = vmatpush1.msra.mxu0 %v509
      %587 = vmatprep.subr.mxu0 0.0
      %588 = vmatpush1.msra.mxu0 0.0
      %589 = vmatprep.subr.mxu0 0.0
      %590 = vmatpush1.msra.mxu0 0.0
      %591 = vmatprep.subr.mxu0 0.0
      %592 = vmatpush1.msra.mxu0 0.0
      %593 = vmatprep.subr.mxu0 0.0
      %594 = vmatpush1.msra.mxu0 0.0
      %595 = vmatprep.subr.mxu0 0.0
      %596 = vmatpush1.msra.mxu0 0.0
      %597 = vmatprep.subr.mxu0 0.0
      %598 = vmatpush1.msra.mxu0 0.0
      %599 = vmatprep.subr.mxu0 0.0
      %600 = vmatpush1.msra.mxu0 0.0
      %601 = vmatprep.subr.mxu0 0.0
      %602 = vmatpush1.msra.mxu0 0.0
      %603 = vmatprep.subr.mxu0 0.0
      %604 = vmatpush1.msra.mxu0 0.0
      %605 = vmatprep.subr.mxu0 0.0
      %606 = vmatpush1.msra.mxu0 0.0
      %607 = vmatprep.subr.mxu0 0.0
      %608 = vmatpush1.msra.mxu0 0.0
      %609 = vmatprep.subr.mxu0 0.0
      %610 = vmatpush1.msra.mxu0 0.0
      %611 = vmatprep.subr.mxu0 0.0
      %612 = vmatpush1.msra.mxu0 0.0
      %613 = vmatprep.subr.mxu0 0.0
      %614 = vmatpush1.msra.mxu0 0.0
      %615 = vmatprep.subr.mxu0 0.0
      %616 = vmatpush1.msra.mxu0 0.0
      %617 = vmatprep.subr.mxu0 0.0
      %618 = vmatpush1.msra.mxu0 0.0
      %619 = vmatprep.subr.mxu0 0.0
      %620 = vmatpush1.msra.mxu0 0.0
      %621 = vmatprep.subr.mxu0 0.0
      %622 = vmatpush1.msra.mxu0 0.0
      %623 = vmatprep.subr.mxu0 0.0
      %624 = vmatpush1.msra.mxu0 0.0
      %625 = vmatprep.subr.mxu0 0.0
      %626 = vmatpush1.msra.mxu0 0.0
      %627 = vmatprep.subr.mxu0 0.0
      %628 = vmatpush1.msra.mxu0 0.0
      %629 = vmatprep.subr.mxu0 0.0
      %630 = vmatpush1.msra.mxu0 0.0
      %631 = vmatprep.subr.mxu0 0.0
      %632 = vmatpush1.msra.mxu0 0.0
      %633 = vmatprep.subr.mxu0 0.0
      %634 = vmatpush1.msra.mxu0 0.0
      %635 = vmatprep.subr.mxu0 0.0
      %636 = vmatpush1.msra.mxu0 0.0
      %637 = vmatprep.subr.mxu0 0.0
      %638 = vmatpush1.msra.mxu0 0.0
      %639 = vmatprep.subr.mxu0 0.0
      %640 = vmatpush1.msra.mxu0 0.0
      %641 = vmatprep.subr.mxu0 0.0
      %642 = vmatpush1.msra.mxu0 0.0
      %643 = vmatprep.subr.mxu0 0.0
      %644 = vmatpush1.msra.mxu0 0.0
      %645 = vmatprep.subr.mxu0 0.0
      %646 = vmatpush1.msra.mxu0 0.0
      %647 = vmatprep.subr.mxu0 0.0
      %648 = vmatpush1.msra.mxu0 0.0
      %649 = vmatprep.mubr.f32.mxu0 0.0
      %650 = vmatmul.mubr.f32.gmra.mrb[0].mxu0 %v500
      %v651 = vpop.f32.mrb[0].mxu0
      %v652 = vadd.f32 0.0, %v651
      %v653 = vpop.f32.mrb[0].mxu0
      %v654 = vadd.f32 0.0, %v653
      %655 = vdwg.mxu0
      %v656 = vlaneseq
      %v657 = vshrl.u32 %v656, 7
      %v658 = vsub.s32 1, %v657
      %v659 = vrot.slane %v267, %v658
      %v660 = vlaneseq
      %v661 = vshrl.u32 %v660, 7
      %v662 = vsub.s32 1, %v661
      %v663 = vrot.slane %v268, %v662
      %v664 = vlaneseq
      %v665 = vshrl.u32 %v664, 7
      %v666 = vsub.s32 1, %v665
      %v667 = vrot.slane %v269, %v666
      %v668 = vlaneseq
      %v669 = vshrl.u32 %v668, 7
      %v670 = vsub.s32 1, %v669
      %v671 = vrot.slane %v270, %v670
      %v672 = vmul.f32 %v581, %v659
      %v673 = vmul.f32 %v583, %v663
      %v674 = vmul.f32 %v652, %v667
      %v675 = vmul.f32 %v654, %v671
      %v676 = vadd.f32 %v482, %v672
      %v677 = vadd.f32 %v483, %v673
      %v678 = vadd.f32 %v484, %v674
      %v679 = vadd.f32 %v485, %v675
      %680 = vrot.lane.b32.xlu0 %v275, 15
      %v681 = vpop.permute.xlu0 %680
      %682 = vrot.lane.b32.xlu0 %v276, 15
      %v683 = vpop.permute.xlu0 %682
      %684 = vrot.lane.b32.xlu0 %v277, 15
      %v685 = vpop.permute.xlu0 %684
      %686 = vrot.lane.b32.xlu0 %v278, 15
      %v687 = vpop.permute.xlu0 %686
      %vm688 = vcmp.lt.s32.totalorder %v297, 15
      %v689 = vsel %vm688, %v685, %v687
      %v690 = vsel %vm688, %v683, %v685
      %v691 = vsel %vm688, %v681, %v683
      %v692 = vsel %vm688, %v687, %v681
      %v694 = vsel %vm303, %v281, 0
      %v697 = vsel %vm307, %v692, 0
      %v700 = vsel %vm307, %v691, 0
      %v703 = vsel %vm307, %v690, 0
      %v706 = vsel %vm307, %v689, 0
      %708 = vmatprep.subr.mxu0 %v700
      %709 = vmatpush1.msra.mxu0 %v697
      %710 = vmatprep.subr.mxu0 0.0
      %711 = vmatpush1.msra.mxu0 0.0
      %712 = vmatprep.subr.mxu0 0.0
      %713 = vmatpush1.msra.mxu0 0.0
      %714 = vmatprep.subr.mxu0 0.0
      %715 = vmatpush1.msra.mxu0 0.0
      %716 = vmatprep.subr.mxu0 0.0
      %717 = vmatpush1.msra.mxu0 0.0
      %718 = vmatprep.subr.mxu0 0.0
      %719 = vmatpush1.msra.mxu0 0.0
      %720 = vmatprep.subr.mxu0 0.0
      %721 = vmatpush1.msra.mxu0 0.0
      %722 = vmatprep.subr.mxu0 0.0
      %723 = vmatpush1.msra.mxu0 0.0
      %724 = vmatprep.subr.mxu0 0.0
      %725 = vmatpush1.msra.mxu0 0.0
      %726 = vmatprep.subr.mxu0 0.0
      %727 = vmatpush1.msra.mxu0 0.0
      %728 = vmatprep.subr.mxu0 0.0
      %729 = vmatpush1.msra.mxu0 0.0
      %730 = vmatprep.subr.mxu0 0.0
      %731 = vmatpush1.msra.mxu0 0.0
      %732 = vmatprep.subr.mxu0 0.0
      %733 = vmatpush1.msra.mxu0 0.0
      %734 = vmatprep.subr.mxu0 0.0
      %735 = vmatpush1.msra.mxu0 0.0
      %736 = vmatprep.subr.mxu0 0.0
      %737 = vmatpush1.msra.mxu0 0.0
      %738 = vmatprep.subr.mxu0 0.0
      %739 = vmatpush1.msra.mxu0 0.0
      %740 = vmatprep.subr.mxu0 0.0
      %741 = vmatpush1.msra.mxu0 0.0
      %742 = vmatprep.subr.mxu0 0.0
      %743 = vmatpush1.msra.mxu0 0.0
      %744 = vmatprep.subr.mxu0 0.0
      %745 = vmatpush1.msra.mxu0 0.0
      %746 = vmatprep.subr.mxu0 0.0
      %747 = vmatpush1.msra.mxu0 0.0
      %748 = vmatprep.subr.mxu0 0.0
      %749 = vmatpush1.msra.mxu0 0.0
      %750 = vmatprep.subr.mxu0 0.0
      %751 = vmatpush1.msra.mxu0 0.0
      %752 = vmatprep.subr.mxu0 0.0
      %753 = vmatpush1.msra.mxu0 0.0
      %754 = vmatprep.subr.mxu0 0.0
      %755 = vmatpush1.msra.mxu0 0.0
      %756 = vmatprep.subr.mxu0 0.0
      %757 = vmatpush1.msra.mxu0 0.0
      %758 = vmatprep.subr.mxu0 0.0
      %759 = vmatpush1.msra.mxu0 0.0
      %760 = vmatprep.subr.mxu0 0.0
      %761 = vmatpush1.msra.mxu0 0.0
      %762 = vmatprep.subr.mxu0 0.0
      %763 = vmatpush1.msra.mxu0 0.0
      %764 = vmatprep.subr.mxu0 0.0
      %765 = vmatpush1.msra.mxu0 0.0
      %766 = vmatprep.subr.mxu0 0.0
      %767 = vmatpush1.msra.mxu0 0.0
      %768 = vmatprep.subr.mxu0 0.0
      %769 = vmatpush1.msra.mxu0 0.0
      %770 = vmatprep.subr.mxu0 0.0
      %771 = vmatpush1.msra.mxu0 0.0
      %772 = vmatprep.mubr.f32.mxu0 0.0
      %773 = vmatmul.mubr.f32.gmra.mrb[0].mxu0 %v694
      %v774 = vpop.f32.mrb[0].mxu0
      %v775 = vadd.f32 0.0, %v774
      %v776 = vpop.f32.mrb[0].mxu0
      %v777 = vadd.f32 0.0, %v776
      %778 = vdwg.mxu0
      %779 = vmatprep.subr.mxu0 %v706
      %780 = vmatpush1.msra.mxu0 %v703
      %781 = vmatprep.subr.mxu0 0.0
      %782 = vmatpush1.msra.mxu0 0.0
      %783 = vmatprep.subr.mxu0 0.0
      %784 = vmatpush1.msra.mxu0 0.0
      %785 = vmatprep.subr.mxu0 0.0
      %786 = vmatpush1.msra.mxu0 0.0
      %787 = vmatprep.subr.mxu0 0.0
      %788 = vmatpush1.msra.mxu0 0.0
      %789 = vmatprep.subr.mxu0 0.0
      %790 = vmatpush1.msra.mxu0 0.0
      %791 = vmatprep.subr.mxu0 0.0
      %792 = vmatpush1.msra.mxu0 0.0
      %793 = vmatprep.subr.mxu0 0.0
      %794 = vmatpush1.msra.mxu0 0.0
      %795 = vmatprep.subr.mxu0 0.0
      %796 = vmatpush1.msra.mxu0 0.0
      %797 = vmatprep.subr.mxu0 0.0
      %798 = vmatpush1.msra.mxu0 0.0
      %799 = vmatprep.subr.mxu0 0.0
      %800 = vmatpush1.msra.mxu0 0.0
      %801 = vmatprep.subr.mxu0 0.0
      %802 = vmatpush1.msra.mxu0 0.0
      %803 = vmatprep.subr.mxu0 0.0
      %804 = vmatpush1.msra.mxu0 0.0
      %805 = vmatprep.subr.mxu0 0.0
      %806 = vmatpush1.msra.mxu0 0.0
      %807 = vmatprep.subr.mxu0 0.0
      %808 = vmatpush1.msra.mxu0 0.0
      %809 = vmatprep.subr.mxu0 0.0
      %810 = vmatpush1.msra.mxu0 0.0
      %811 = vmatprep.subr.mxu0 0.0
      %812 = vmatpush1.msra.mxu0 0.0
      %813 = vmatprep.subr.mxu0 0.0
      %814 = vmatpush1.msra.mxu0 0.0
      %815 = vmatprep.subr.mxu0 0.0
      %816 = vmatpush1.msra.mxu0 0.0
      %817 = vmatprep.subr.mxu0 0.0
      %818 = vmatpush1.msra.mxu0 0.0
      %819 = vmatprep.subr.mxu0 0.0
      %820 = vmatpush1.msra.mxu0 0.0
      %821 = vmatprep.subr.mxu0 0.0
      %822 = vmatpush1.msra.mxu0 0.0
      %823 = vmatprep.subr.mxu0 0.0
      %824 = vmatpush1.msra.mxu0 0.0
      %825 = vmatprep.subr.mxu0 0.0
      %826 = vmatpush1.msra.mxu0 0.0
      %827 = vmatprep.subr.mxu0 0.0
      %828 = vmatpush1.msra.mxu0 0.0
      %829 = vmatprep.subr.mxu0 0.0
      %830 = vmatpush1.msra.mxu0 0.0
      %831 = vmatprep.subr.mxu0 0.0
      %832 = vmatpush1.msra.mxu0 0.0
      %833 = vmatprep.subr.mxu0 0.0
      %834 = vmatpush1.msra.mxu0 0.0
      %835 = vmatprep.subr.mxu0 0.0
      %836 = vmatpush1.msra.mxu0 0.0
      %837 = vmatprep.subr.mxu0 0.0
      %838 = vmatpush1.msra.mxu0 0.0
      %839 = vmatprep.subr.mxu0 0.0
      %840 = vmatpush1.msra.mxu0 0.0
      %841 = vmatprep.subr.mxu0 0.0
      %842 = vmatpush1.msra.mxu0 0.0
      %843 = vmatprep.mubr.f32.mxu0 0.0
      %844 = vmatmul.mubr.f32.gmra.mrb[0].mxu0 %v694
      %v845 = vpop.f32.mrb[0].mxu0
      %v846 = vadd.f32 0.0, %v845
      %v847 = vpop.f32.mrb[0].mxu0
      %v848 = vadd.f32 0.0, %v847
      %849 = vdwg.mxu0
      %v850 = vlaneseq
      %v851 = vshrl.u32 %v850, 7
      %v852 = vsub.s32 2, %v851
      %v853 = vrot.slane %v267, %v852
      %v854 = vlaneseq
      %v855 = vshrl.u32 %v854, 7
      %v856 = vsub.s32 2, %v855
      %v857 = vrot.slane %v268, %v856
      %v858 = vlaneseq
      %v859 = vshrl.u32 %v858, 7
      %v860 = vsub.s32 2, %v859
      %v861 = vrot.slane %v269, %v860
      %v862 = vlaneseq
      %v863 = vshrl.u32 %v862, 7
      %v864 = vsub.s32 2, %v863
      %v865 = vrot.slane %v270, %v864
      %v866 = vmul.f32 %v775, %v853
      %v867 = vmul.f32 %v777, %v857
      %v868 = vmul.f32 %v846, %v861
      %v869 = vmul.f32 %v848, %v865
      %v870 = vadd.f32 %v676, %v866
      %v871 = vadd.f32 %v677, %v867
      %v872 = vadd.f32 %v678, %v868
      %v873 = vadd.f32 %v679, %v869
      %874 = vrot.lane.b32.xlu0 %v275, 1
      %v875 = vpop.permute.xlu0 %874
      %876 = vrot.lane.b32.xlu0 %v276, 1
      %v877 = vpop.permute.xlu0 %876
      %878 = vrot.lane.b32.xlu0 %v277, 1
      %v879 = vpop.permute.xlu0 %878
      %880 = vrot.lane.b32.xlu0 %v278, 1
      %v881 = vpop.permute.xlu0 %880
      %vm882 = vcmp.lt.s32.totalorder %v297, 1
      %v883 = vsel %vm882, %v879, %v881
      %v884 = vsel %vm882, %v877, %v879
      %v885 = vsel %vm882, %v875, %v877
      %v886 = vsel %vm882, %v881, %v875
      %v888 = vsel %vm303, %v282, 0
      %v891 = vsel %vm307, %v886, 0
      %v894 = vsel %vm307, %v885, 0
      %v897 = vsel %vm307, %v884, 0
      %v900 = vsel %vm307, %v883, 0
      %902 = vmatprep.subr.mxu0 %v894
      %903 = vmatpush1.msra.mxu0 %v891
      %904 = vmatprep.subr.mxu0 0.0
      %905 = vmatpush1.msra.mxu0 0.0
      %906 = vmatprep.subr.mxu0 0.0
      %907 = vmatpush1.msra.mxu0 0.0
      %908 = vmatprep.subr.mxu0 0.0
      %909 = vmatpush1.msra.mxu0 0.0
      %910 = vmatprep.subr.mxu0 0.0
      %911 = vmatpush1.msra.mxu0 0.0
      %912 = vmatprep.subr.mxu0 0.0
      %913 = vmatpush1.msra.mxu0 0.0
      %914 = vmatprep.subr.mxu0 0.0
      %915 = vmatpush1.msra.mxu0 0.0
      %916 = vmatprep.subr.mxu0 0.0
      %917 = vmatpush1.msra.mxu0 0.0
      %918 = vmatprep.subr.mxu0 0.0
      %919 = vmatpush1.msra.mxu0 0.0
      %920 = vmatprep.subr.mxu0 0.0
      %921 = vmatpush1.msra.mxu0 0.0
      %922 = vmatprep.subr.mxu0 0.0
      %923 = vmatpush1.msra.mxu0 0.0
      %924 = vmatprep.subr.mxu0 0.0
      %925 = vmatpush1.msra.mxu0 0.0
      %926 = vmatprep.subr.mxu0 0.0
      %927 = vmatpush1.msra.mxu0 0.0
      %928 = vmatprep.subr.mxu0 0.0
      %929 = vmatpush1.msra.mxu0 0.0
      %930 = vmatprep.subr.mxu0 0.0
      %931 = vmatpush1.msra.mxu0 0.0
      %932 = vmatprep.subr.mxu0 0.0
      %933 = vmatpush1.msra.mxu0 0.0
      %934 = vmatprep.subr.mxu0 0.0
      %935 = vmatpush1.msra.mxu0 0.0
      %936 = vmatprep.subr.mxu0 0.0
      %937 = vmatpush1.msra.mxu0 0.0
      %938 = vmatprep.subr.mxu0 0.0
      %939 = vmatpush1.msra.mxu0 0.0
      %940 = vmatprep.subr.mxu0 0.0
      %941 = vmatpush1.msra.mxu0 0.0
      %942 = vmatprep.subr.mxu0 0.0
      %943 = vmatpush1.msra.mxu0 0.0
      %944 = vmatprep.subr.mxu0 0.0
      %945 = vmatpush1.msra.mxu0 0.0
      %946 = vmatprep.subr.mxu0 0.0
      %947 = vmatpush1.msra.mxu0 0.0
      %948 = vmatprep.subr.mxu0 0.0
      %949 = vmatpush1.msra.mxu0 0.0
      %950 = vmatprep.subr.mxu0 0.0
      %951 = vmatpush1.msra.mxu0 0.0
      %952 = vmatprep.subr.mxu0 0.0
      %953 = vmatpush1.msra.mxu0 0.0
      %954 = vmatprep.subr.mxu0 0.0
      %955 = vmatpush1.msra.mxu0 0.0
      %956 = vmatprep.subr.mxu0 0.0
      %957 = vmatpush1.msra.mxu0 0.0
      %958 = vmatprep.subr.mxu0 0.0
      %959 = vmatpush1.msra.mxu0 0.0
      %960 = vmatprep.subr.mxu0 0.0
      %961 = vmatpush1.msra.mxu0 0.0
      %962 = vmatprep.subr.mxu0 0.0
      %963 = vmatpush1.msra.mxu0 0.0
      %964 = vmatprep.subr.mxu0 0.0
      %965 = vmatpush1.msra.mxu0 0.0
      %966 = vmatprep.mubr.f32.mxu0 0.0
      %967 = vmatmul.mubr.f32.gmra.mrb[0].mxu0 %v888
      %v968 = vpop.f32.mrb[0].mxu0
      %v969 = vadd.f32 0.0, %v968
      %v970 = vpop.f32.mrb[0].mxu0
      %v971 = vadd.f32 0.0, %v970
      %972 = vdwg.mxu0
      %973 = vmatprep.subr.mxu0 %v900
      %974 = vmatpush1.msra.mxu0 %v897
      %975 = vmatprep.subr.mxu0 0.0
      %976 = vmatpush1.msra.mxu0 0.0
      %977 = vmatprep.subr.mxu0 0.0
      %978 = vmatpush1.msra.mxu0 0.0
      %979 = vmatprep.subr.mxu0 0.0
      %980 = vmatpush1.msra.mxu0 0.0
      %981 = vmatprep.subr.mxu0 0.0
      %982 = vmatpush1.msra.mxu0 0.0
      %983 = vmatprep.subr.mxu0 0.0
      %984 = vmatpush1.msra.mxu0 0.0
      %985 = vmatprep.subr.mxu0 0.0
      %986 = vmatpush1.msra.mxu0 0.0
      %987 = vmatprep.subr.mxu0 0.0
      %988 = vmatpush1.msra.mxu0 0.0
      %989 = vmatprep.subr.mxu0 0.0
      %990 = vmatpush1.msra.mxu0 0.0
      %991 = vmatprep.subr.mxu0 0.0
      %992 = vmatpush1.msra.mxu0 0.0
      %993 = vmatprep.subr.mxu0 0.0
      %994 = vmatpush1.msra.mxu0 0.0
      %995 = vmatprep.subr.mxu0 0.0
      %996 = vmatpush1.msra.mxu0 0.0
      %997 = vmatprep.subr.mxu0 0.0
      %998 = vmatpush1.msra.mxu0 0.0
      %999 = vmatprep.subr.mxu0 0.0
      %1000 = vmatpush1.msra.mxu0 0.0
      %1001 = vmatprep.subr.mxu0 0.0
      %1002 = vmatpush1.msra.mxu0 0.0
      %1003 = vmatprep.subr.mxu0 0.0
      %1004 = vmatpush1.msra.mxu0 0.0
      %1005 = vmatprep.subr.mxu0 0.0
      %1006 = vmatpush1.msra.mxu0 0.0
      %1007 = vmatprep.subr.mxu0 0.0
      %1008 = vmatpush1.msra.mxu0 0.0
      %1009 = vmatprep.subr.mxu0 0.0
      %1010 = vmatpush1.msra.mxu0 0.0
      %1011 = vmatprep.subr.mxu0 0.0
      %1012 = vmatpush1.msra.mxu0 0.0
      %1013 = vmatprep.subr.mxu0 0.0
      %1014 = vmatpush1.msra.mxu0 0.0
      %1015 = vmatprep.subr.mxu0 0.0
      %1016 = vmatpush1.msra.mxu0 0.0
      %1017 = vmatprep.subr.mxu0 0.0
      %1018 = vmatpush1.msra.mxu0 0.0
      %1019 = vmatprep.subr.mxu0 0.0
      %1020 = vmatpush1.msra.mxu0 0.0
      %1021 = vmatprep.subr.mxu0 0.0
      %1022 = vmatpush1.msra.mxu0 0.0
      %1023 = vmatprep.subr.mxu0 0.0
      %1024 = vmatpush1.msra.mxu0 0.0
      %1025 = vmatprep.subr.mxu0 0.0
      %1026 = vmatpush1.msra.mxu0 0.0
      %1027 = vmatprep.subr.mxu0 0.0
      %1028 = vmatpush1.msra.mxu0 0.0
      %1029 = vmatprep.subr.mxu0 0.0
      %1030 = vmatpush1.msra.mxu0 0.0
      %1031 = vmatprep.subr.mxu0 0.0
      %1032 = vmatpush1.msra.mxu0 0.0
      %1033 = vmatprep.subr.mxu0 0.0
      %1034 = vmatpush1.msra.mxu0 0.0
      %1035 = vmatprep.subr.mxu0 0.0
      %1036 = vmatpush1.msra.mxu0 0.0
      %1037 = vmatprep.mubr.f32.mxu0 0.0
      %1038 = vmatmul.mubr.f32.gmra.mrb[0].mxu0 %v888
      %v1039 = vpop.f32.mrb[0].mxu0
      %v1040 = vadd.f32 0.0, %v1039
      %v1041 = vpop.f32.mrb[0].mxu0
      %v1042 = vadd.f32 0.0, %v1041
      %1043 = vdwg.mxu0
      %v1044 = vlaneseq
      %v1045 = vshrl.u32 %v1044, 7
      %v1046 = vsub.s32 3, %v1045
      %v1047 = vrot.slane %v267, %v1046
      %v1048 = vlaneseq
      %v1049 = vshrl.u32 %v1048, 7
      %v1050 = vsub.s32 3, %v1049
      %v1051 = vrot.slane %v268, %v1050
      %v1052 = vlaneseq
      %v1053 = vshrl.u32 %v1052, 7
      %v1054 = vsub.s32 3, %v1053
      %v1055 = vrot.slane %v269, %v1054
      %v1056 = vlaneseq
      %v1057 = vshrl.u32 %v1056, 7
      %v1058 = vsub.s32 3, %v1057
      %v1059 = vrot.slane %v270, %v1058
      %v1060 = vmul.f32 %v969, %v1047
      %v1061 = vmul.f32 %v971, %v1051
      %v1062 = vmul.f32 %v1040, %v1055
      %v1063 = vmul.f32 %v1042, %v1059
      %v1064 = vadd.f32 %v870, %v1060
      %v1065 = vadd.f32 %v871, %v1061
      %v1066 = vadd.f32 %v872, %v1062
      %v1067 = vadd.f32 %v873, %v1063
      %v1069 = vsel %vm303, %v283, 0
      %v1072 = vsel %vm307, %v275, 0
      %v1075 = vsel %vm307, %v276, 0
      %v1078 = vsel %vm307, %v277, 0
      %v1081 = vsel %vm307, %v278, 0
      %1083 = vmatprep.subr.mxu0 %v1075
      %1084 = vmatpush1.msra.mxu0 %v1072
      %1085 = vmatprep.subr.mxu0 0.0
      %1086 = vmatpush1.msra.mxu0 0.0
      %1087 = vmatprep.subr.mxu0 0.0
      %1088 = vmatpush1.msra.mxu0 0.0
      %1089 = vmatprep.subr.mxu0 0.0
      %1090 = vmatpush1.msra.mxu0 0.0
      %1091 = vmatprep.subr.mxu0 0.0
      %1092 = vmatpush1.msra.mxu0 0.0
      %1093 = vmatprep.subr.mxu0 0.0
      %1094 = vmatpush1.msra.mxu0 0.0
      %1095 = vmatprep.subr.mxu0 0.0
      %1096 = vmatpush1.msra.mxu0 0.0
      %1097 = vmatprep.subr.mxu0 0.0
      %1098 = vmatpush1.msra.mxu0 0.0
      %1099 = vmatprep.subr.mxu0 0.0
      %1100 = vmatpush1.msra.mxu0 0.0
      %1101 = vmatprep.subr.mxu0 0.0
      %1102 = vmatpush1.msra.mxu0 0.0
      %1103 = vmatprep.subr.mxu0 0.0
      %1104 = vmatpush1.msra.mxu0 0.0
      %1105 = vmatprep.subr.mxu0 0.0
      %1106 = vmatpush1.msra.mxu0 0.0
      %1107 = vmatprep.subr.mxu0 0.0
      %1108 = vmatpush1.msra.mxu0 0.0
      %1109 = vmatprep.subr.mxu0 0.0
      %1110 = vmatpush1.msra.mxu0 0.0
      %1111 = vmatprep.subr.mxu0 0.0
      %1112 = vmatpush1.msra.mxu0 0.0
      %1113 = vmatprep.subr.mxu0 0.0
      %1114 = vmatpush1.msra.mxu0 0.0
      %1115 = vmatprep.subr.mxu0 0.0
      %1116 = vmatpush1.msra.mxu0 0.0
      %1117 = vmatprep.subr.mxu0 0.0
      %1118 = vmatpush1.msra.mxu0 0.0
      %1119 = vmatprep.subr.mxu0 0.0
      %1120 = vmatpush1.msra.mxu0 0.0
      %1121 = vmatprep.subr.mxu0 0.0
      %1122 = vmatpush1.msra.mxu0 0.0
      %1123 = vmatprep.subr.mxu0 0.0
      %1124 = vmatpush1.msra.mxu0 0.0
      %1125 = vmatprep.subr.mxu0 0.0
      %1126 = vmatpush1.msra.mxu0 0.0
      %1127 = vmatprep.subr.mxu0 0.0
      %1128 = vmatpush1.msra.mxu0 0.0
      %1129 = vmatprep.subr.mxu0 0.0
      %1130 = vmatpush1.msra.mxu0 0.0
      %1131 = vmatprep.subr.mxu0 0.0
      %1132 = vmatpush1.msra.mxu0 0.0
      %1133 = vmatprep.subr.mxu0 0.0
      %1134 = vmatpush1.msra.mxu0 0.0
      %1135 = vmatprep.subr.mxu0 0.0
      %1136 = vmatpush1.msra.mxu0 0.0
      %1137 = vmatprep.subr.mxu0 0.0
      %1138 = vmatpush1.msra.mxu0 0.0
      %1139 = vmatprep.subr.mxu0 0.0
      %1140 = vmatpush1.msra.mxu0 0.0
      %1141 = vmatprep.subr.mxu0 0.0
      %1142 = vmatpush1.msra.mxu0 0.0
      %1143 = vmatprep.subr.mxu0 0.0
      %1144 = vmatpush1.msra.mxu0 0.0
      %1145 = vmatprep.subr.mxu0 0.0
      %1146 = vmatpush1.msra.mxu0 0.0
      %1147 = vmatprep.mubr.f32.mxu0 0.0
      %1148 = vmatmul.mubr.f32.gmra.mrb[0].mxu0 %v1069
      %v1149 = vpop.f32.mrb[0].mxu0
      %v1150 = vadd.f32 0.0, %v1149
      %v1151 = vpop.f32.mrb[0].mxu0
      %v1152 = vadd.f32 0.0, %v1151
      %1153 = vdwg.mxu0
      %1154 = vmatprep.subr.mxu0 %v1081
      %1155 = vmatpush1.msra.mxu0 %v1078
      %1156 = vmatprep.subr.mxu0 0.0
      %1157 = vmatpush1.msra.mxu0 0.0
      %1158 = vmatprep.subr.mxu0 0.0
      %1159 = vmatpush1.msra.mxu0 0.0
      %1160 = vmatprep.subr.mxu0 0.0
      %1161 = vmatpush1.msra.mxu0 0.0
      %1162 = vmatprep.subr.mxu0 0.0
      %1163 = vmatpush1.msra.mxu0 0.0
      %1164 = vmatprep.subr.mxu0 0.0
      %1165 = vmatpush1.msra.mxu0 0.0
      %1166 = vmatprep.subr.mxu0 0.0
      %1167 = vmatpush1.msra.mxu0 0.0
      %1168 = vmatprep.subr.mxu0 0.0
      %1169 = vmatpush1.msra.mxu0 0.0
      %1170 = vmatprep.subr.mxu0 0.0
      %1171 = vmatpush1.msra.mxu0 0.0
      %1172 = vmatprep.subr.mxu0 0.0
      %1173 = vmatpush1.msra.mxu0 0.0
      %1174 = vmatprep.subr.mxu0 0.0
      %1175 = vmatpush1.msra.mxu0 0.0
      %1176 = vmatprep.subr.mxu0 0.0
      %1177 = vmatpush1.msra.mxu0 0.0
      %1178 = vmatprep.subr.mxu0 0.0
      %1179 = vmatpush1.msra.mxu0 0.0
      %1180 = vmatprep.subr.mxu0 0.0
      %1181 = vmatpush1.msra.mxu0 0.0
      %1182 = vmatprep.subr.mxu0 0.0
      %1183 = vmatpush1.msra.mxu0 0.0
      %1184 = vmatprep.subr.mxu0 0.0
      %1185 = vmatpush1.msra.mxu0 0.0
      %1186 = vmatprep.subr.mxu0 0.0
      %1187 = vmatpush1.msra.mxu0 0.0
      %1188 = vmatprep.subr.mxu0 0.0
      %1189 = vmatpush1.msra.mxu0 0.0
      %1190 = vmatprep.subr.mxu0 0.0
      %1191 = vmatpush1.msra.mxu0 0.0
      %1192 = vmatprep.subr.mxu0 0.0
      %1193 = vmatpush1.msra.mxu0 0.0
      %1194 = vmatprep.subr.mxu0 0.0
      %1195 = vmatpush1.msra.mxu0 0.0
      %1196 = vmatprep.subr.mxu0 0.0
      %1197 = vmatpush1.msra.mxu0 0.0
      %1198 = vmatprep.subr.mxu0 0.0
      %1199 = vmatpush1.msra.mxu0 0.0
      %1200 = vmatprep.subr.mxu0 0.0
      %1201 = vmatpush1.msra.mxu0 0.0
      %1202 = vmatprep.subr.mxu0 0.0
      %1203 = vmatpush1.msra.mxu0 0.0
      %1204 = vmatprep.subr.mxu0 0.0
      %1205 = vmatpush1.msra.mxu0 0.0
      %1206 = vmatprep.subr.mxu0 0.0
      %1207 = vmatpush1.msra.mxu0 0.0
      %1208 = vmatprep.subr.mxu0 0.0
      %1209 = vmatpush1.msra.mxu0 0.0
      %1210 = vmatprep.subr.mxu0 0.0
      %1211 = vmatpush1.msra.mxu0 0.0
      %1212 = vmatprep.subr.mxu0 0.0
      %1213 = vmatpush1.msra.mxu0 0.0
      %1214 = vmatprep.subr.mxu0 0.0
      %1215 = vmatpush1.msra.mxu0 0.0
      %1216 = vmatprep.subr.mxu0 0.0
      %1217 = vmatpush1.msra.mxu0 0.0
      %1218 = vmatprep.mubr.f32.mxu0 0.0
      %1219 = vmatmul.mubr.f32.gmra.mrb[0].mxu0 %v1069
      %v1220 = vpop.f32.mrb[0].mxu0
      %v1221 = vadd.f32 0.0, %v1220
      %v1222 = vpop.f32.mrb[0].mxu0
      %v1223 = vadd.f32 0.0, %v1222
      %1224 = vdwg.mxu0
      %v1225 = vadd.f32 %v1064, %v1150
      %v1226 = vadd.f32 %v1065, %v1152
      %v1227 = vadd.f32 %v1066, %v1221
      %v1228 = vadd.f32 %v1067, %v1223
      %1229 = vrot.lane.b32.xlu0 %v275, 127
      %v1230 = vpop.permute.xlu0 %1229
      %1231 = vrot.lane.b32.xlu0 %v276, 127
      %v1232 = vpop.permute.xlu0 %1231
      %1233 = vrot.lane.b32.xlu0 %v277, 127
      %v1234 = vpop.permute.xlu0 %1233
      %1235 = vrot.lane.b32.xlu0 %v278, 127
      %v1236 = vpop.permute.xlu0 %1235
      %vm1237 = vcmp.lt.s32.totalorder %v297, 127
      %v1238 = vsel %vm1237, %v1234, %v1236
      %v1239 = vsel %vm1237, %v1232, %v1234
      %v1240 = vsel %vm1237, %v1230, %v1232
      %v1241 = vsel %vm1237, %v1236, %v1230
      %v1243 = vsel %vm303, %v284, 0
      %v1246 = vsel %vm307, %v1240, 0
      %v1249 = vsel %vm307, %v1239, 0
      %v1252 = vsel %vm307, %v1238, 0
      %v1255 = vsel %vm307, %v1241, 0
      %1257 = vmatprep.subr.mxu0 %v1249
      %1258 = vmatpush1.msra.mxu0 %v1246
      %1259 = vmatprep.subr.mxu0 0.0
      %1260 = vmatpush1.msra.mxu0 0.0
      %1261 = vmatprep.subr.mxu0 0.0
      %1262 = vmatpush1.msra.mxu0 0.0
      %1263 = vmatprep.subr.mxu0 0.0
      %1264 = vmatpush1.msra.mxu0 0.0
      %1265 = vmatprep.subr.mxu0 0.0
      %1266 = vmatpush1.msra.mxu0 0.0
      %1267 = vmatprep.subr.mxu0 0.0
      %1268 = vmatpush1.msra.mxu0 0.0
      %1269 = vmatprep.subr.mxu0 0.0
      %1270 = vmatpush1.msra.mxu0 0.0
      %1271 = vmatprep.subr.mxu0 0.0
      %1272 = vmatpush1.msra.mxu0 0.0
      %1273 = vmatprep.subr.mxu0 0.0
      %1274 = vmatpush1.msra.mxu0 0.0
      %1275 = vmatprep.subr.mxu0 0.0
      %1276 = vmatpush1.msra.mxu0 0.0
      %1277 = vmatprep.subr.mxu0 0.0
      %1278 = vmatpush1.msra.mxu0 0.0
      %1279 = vmatprep.subr.mxu0 0.0
      %1280 = vmatpush1.msra.mxu0 0.0
      %1281 = vmatprep.subr.mxu0 0.0
      %1282 = vmatpush1.msra.mxu0 0.0
      %1283 = vmatprep.subr.mxu0 0.0
      %1284 = vmatpush1.msra.mxu0 0.0
      %1285 = vmatprep.subr.mxu0 0.0
      %1286 = vmatpush1.msra.mxu0 0.0
      %1287 = vmatprep.subr.mxu0 0.0
      %1288 = vmatpush1.msra.mxu0 0.0
      %1289 = vmatprep.subr.mxu0 0.0
      %1290 = vmatpush1.msra.mxu0 0.0
      %1291 = vmatprep.subr.mxu0 0.0
      %1292 = vmatpush1.msra.mxu0 0.0
      %1293 = vmatprep.subr.mxu0 0.0
      %1294 = vmatpush1.msra.mxu0 0.0
      %1295 = vmatprep.subr.mxu0 0.0
      %1296 = vmatpush1.msra.mxu0 0.0
      %1297 = vmatprep.subr.mxu0 0.0
      %1298 = vmatpush1.msra.mxu0 0.0
      %1299 = vmatprep.subr.mxu0 0.0
      %1300 = vmatpush1.msra.mxu0 0.0
      %1301 = vmatprep.subr.mxu0 0.0
      %1302 = vmatpush1.msra.mxu0 0.0
      %1303 = vmatprep.subr.mxu0 0.0
      %1304 = vmatpush1.msra.mxu0 0.0
      %1305 = vmatprep.subr.mxu0 0.0
      %1306 = vmatpush1.msra.mxu0 0.0
      %1307 = vmatprep.subr.mxu0 0.0
      %1308 = vmatpush1.msra.mxu0 0.0
      %1309 = vmatprep.subr.mxu0 0.0
      %1310 = vmatpush1.msra.mxu0 0.0
      %1311 = vmatprep.subr.mxu0 0.0
      %1312 = vmatpush1.msra.mxu0 0.0
      %1313 = vmatprep.subr.mxu0 0.0
      %1314 = vmatpush1.msra.mxu0 0.0
      %1315 = vmatprep.subr.mxu0 0.0
      %1316 = vmatpush1.msra.mxu0 0.0
      %1317 = vmatprep.subr.mxu0 0.0
      %1318 = vmatpush1.msra.mxu0 0.0
      %1319 = vmatprep.subr.mxu0 0.0
      %1320 = vmatpush1.msra.mxu0 0.0
      %1321 = vmatprep.mubr.f32.mxu0 0.0
      %1322 = vmatmul.mubr.f32.gmra.mrb[0].mxu0 %v1243
      %v1323 = vpop.f32.mrb[0].mxu0
      %v1324 = vadd.f32 0.0, %v1323
      %v1325 = vpop.f32.mrb[0].mxu0
      %v1326 = vadd.f32 0.0, %v1325
      %1327 = vdwg.mxu0
      %1328 = vmatprep.subr.mxu0 %v1255
      %1329 = vmatpush1.msra.mxu0 %v1252
      %1330 = vmatprep.subr.mxu0 0.0
      %1331 = vmatpush1.msra.mxu0 0.0
      %1332 = vmatprep.subr.mxu0 0.0
      %1333 = vmatpush1.msra.mxu0 0.0
      %1334 = vmatprep.subr.mxu0 0.0
      %1335 = vmatpush1.msra.mxu0 0.0
      %1336 = vmatprep.subr.mxu0 0.0
      %1337 = vmatpush1.msra.mxu0 0.0
      %1338 = vmatprep.subr.mxu0 0.0
      %1339 = vmatpush1.msra.mxu0 0.0
      %1340 = vmatprep.subr.mxu0 0.0
      %1341 = vmatpush1.msra.mxu0 0.0
      %1342 = vmatprep.subr.mxu0 0.0
      %1343 = vmatpush1.msra.mxu0 0.0
      %1344 = vmatprep.subr.mxu0 0.0
      %1345 = vmatpush1.msra.mxu0 0.0
      %1346 = vmatprep.subr.mxu0 0.0
      %1347 = vmatpush1.msra.mxu0 0.0
      %1348 = vmatprep.subr.mxu0 0.0
      %1349 = vmatpush1.msra.mxu0 0.0
      %1350 = vmatprep.subr.mxu0 0.0
      %1351 = vmatpush1.msra.mxu0 0.0
      %1352 = vmatprep.subr.mxu0 0.0
      %1353 = vmatpush1.msra.mxu0 0.0
      %1354 = vmatprep.subr.mxu0 0.0
      %1355 = vmatpush1.msra.mxu0 0.0
      %1356 = vmatprep.subr.mxu0 0.0
      %1357 = vmatpush1.msra.mxu0 0.0
      %1358 = vmatprep.subr.mxu0 0.0
      %1359 = vmatpush1.msra.mxu0 0.0
      %1360 = vmatprep.subr.mxu0 0.0
      %1361 = vmatpush1.msra.mxu0 0.0
      %1362 = vmatprep.subr.mxu0 0.0
      %1363 = vmatpush1.msra.mxu0 0.0
      %1364 = vmatprep.subr.mxu0 0.0
      %1365 = vmatpush1.msra.mxu0 0.0
      %1366 = vmatprep.subr.mxu0 0.0
      %1367 = vmatpush1.msra.mxu0 0.0
      %1368 = vmatprep.subr.mxu0 0.0
      %1369 = vmatpush1.msra.mxu0 0.0
      %1370 = vmatprep.subr.mxu0 0.0
      %1371 = vmatpush1.msra.mxu0 0.0
      %1372 = vmatprep.subr.mxu0 0.0
      %1373 = vmatpush1.msra.mxu0 0.0
      %1374 = vmatprep.subr.mxu0 0.0
      %1375 = vmatpush1.msra.mxu0 0.0
      %1376 = vmatprep.subr.mxu0 0.0
      %1377 = vmatpush1.msra.mxu0 0.0
      %1378 = vmatprep.subr.mxu0 0.0
      %1379 = vmatpush1.msra.mxu0 0.0
      %1380 = vmatprep.subr.mxu0 0.0
      %1381 = vmatpush1.msra.mxu0 0.0
      %1382 = vmatprep.subr.mxu0 0.0
      %1383 = vmatpush1.msra.mxu0 0.0
      %1384 = vmatprep.subr.mxu0 0.0
      %1385 = vmatpush1.msra.mxu0 0.0
      %1386 = vmatprep.subr.mxu0 0.0
      %1387 = vmatpush1.msra.mxu0 0.0
      %1388 = vmatprep.subr.mxu0 0.0
      %1389 = vmatpush1.msra.mxu0 0.0
      %1390 = vmatprep.subr.mxu0 0.0
      %1391 = vmatpush1.msra.mxu0 0.0
      %1392 = vmatprep.mubr.f32.mxu0 0.0
      %1393 = vmatmul.mubr.f32.gmra.mrb[0].mxu0 %v1243
      %v1394 = vpop.f32.mrb[0].mxu0
      %v1395 = vadd.f32 0.0, %v1394
      %v1396 = vpop.f32.mrb[0].mxu0
      %v1397 = vadd.f32 0.0, %v1396
      %1398 = vdwg.mxu0
      %v1399 = vlaneseq
      %v1400 = vshrl.u32 %v1399, 7
      %v1401 = vsub.s32 5, %v1400
      %v1402 = vrot.slane %v267, %v1401
      %v1403 = vlaneseq
      %v1404 = vshrl.u32 %v1403, 7
      %v1405 = vsub.s32 5, %v1404
      %v1406 = vrot.slane %v268, %v1405
      %v1407 = vlaneseq
      %v1408 = vshrl.u32 %v1407, 7
      %v1409 = vsub.s32 5, %v1408
      %v1410 = vrot.slane %v269, %v1409
      %v1411 = vlaneseq
      %v1412 = vshrl.u32 %v1411, 7
      %v1413 = vsub.s32 5, %v1412
      %v1414 = vrot.slane %v270, %v1413
      %v1415 = vmul.f32 %v1324, %v1402
      %v1416 = vmul.f32 %v1326, %v1406
      %v1417 = vmul.f32 %v1395, %v1410
      %v1418 = vmul.f32 %v1397, %v1414
      %v1419 = vadd.f32 %v1225, %v1415
      %v1420 = vadd.f32 %v1226, %v1416
      %v1421 = vadd.f32 %v1227, %v1417
      %v1422 = vadd.f32 %v1228, %v1418
      %1423 = vrot.lane.b32.xlu0 %v275, 113
      %v1424 = vpop.permute.xlu0 %1423
      %1425 = vrot.lane.b32.xlu0 %v276, 113
      %v1426 = vpop.permute.xlu0 %1425
      %1427 = vrot.lane.b32.xlu0 %v277, 113
      %v1428 = vpop.permute.xlu0 %1427
      %1429 = vrot.lane.b32.xlu0 %v278, 113
      %v1430 = vpop.permute.xlu0 %1429
      %vm1431 = vcmp.lt.s32.totalorder %v297, 113
      %v1432 = vsel %vm1431, %v1428, %v1430
      %v1433 = vsel %vm1431, %v1426, %v1428
      %v1434 = vsel %vm1431, %v1424, %v1426
      %v1435 = vsel %vm1431, %v1430, %v1424
      %v1437 = vsel %vm303, %v285, 0
      %v1440 = vsel %vm307, %v1434, 0
      %v1443 = vsel %vm307, %v1433, 0
      %v1446 = vsel %vm307, %v1432, 0
      %v1449 = vsel %vm307, %v1435, 0
      %1451 = vmatprep.subr.mxu0 %v1443
      %1452 = vmatpush1.msra.mxu0 %v1440
      %1453 = vmatprep.subr.mxu0 0.0
      %1454 = vmatpush1.msra.mxu0 0.0
      %1455 = vmatprep.subr.mxu0 0.0
      %1456 = vmatpush1.msra.mxu0 0.0
      %1457 = vmatprep.subr.mxu0 0.0
      %1458 = vmatpush1.msra.mxu0 0.0
      %1459 = vmatprep.subr.mxu0 0.0
      %1460 = vmatpush1.msra.mxu0 0.0
      %1461 = vmatprep.subr.mxu0 0.0
      %1462 = vmatpush1.msra.mxu0 0.0
      %1463 = vmatprep.subr.mxu0 0.0
      %1464 = vmatpush1.msra.mxu0 0.0
      %1465 = vmatprep.subr.mxu0 0.0
      %1466 = vmatpush1.msra.mxu0 0.0
      %1467 = vmatprep.subr.mxu0 0.0
      %1468 = vmatpush1.msra.mxu0 0.0
      %1469 = vmatprep.subr.mxu0 0.0
      %1470 = vmatpush1.msra.mxu0 0.0
      %1471 = vmatprep.subr.mxu0 0.0
      %1472 = vmatpush1.msra.mxu0 0.0
      %1473 = vmatprep.subr.mxu0 0.0
      %1474 = vmatpush1.msra.mxu0 0.0
      %1475 = vmatprep.subr.mxu0 0.0
      %1476 = vmatpush1.msra.mxu0 0.0
      %1477 = vmatprep.subr.mxu0 0.0
      %1478 = vmatpush1.msra.mxu0 0.0
      %1479 = vmatprep.subr.mxu0 0.0
      %1480 = vmatpush1.msra.mxu0 0.0
      %1481 = vmatprep.subr.mxu0 0.0
      %1482 = vmatpush1.msra.mxu0 0.0
      %1483 = vmatprep.subr.mxu0 0.0
      %1484 = vmatpush1.msra.mxu0 0.0
      %1485 = vmatprep.subr.mxu0 0.0
      %1486 = vmatpush1.msra.mxu0 0.0
      %1487 = vmatprep.subr.mxu0 0.0
      %1488 = vmatpush1.msra.mxu0 0.0
      %1489 = vmatprep.subr.mxu0 0.0
      %1490 = vmatpush1.msra.mxu0 0.0
      %1491 = vmatprep.subr.mxu0 0.0
      %1492 = vmatpush1.msra.mxu0 0.0
      %1493 = vmatprep.subr.mxu0 0.0
      %1494 = vmatpush1.msra.mxu0 0.0
      %1495 = vmatprep.subr.mxu0 0.0
      %1496 = vmatpush1.msra.mxu0 0.0
      %1497 = vmatprep.subr.mxu0 0.0
      %1498 = vmatpush1.msra.mxu0 0.0
      %1499 = vmatprep.subr.mxu0 0.0
      %1500 = vmatpush1.msra.mxu0 0.0
      %1501 = vmatprep.subr.mxu0 0.0
      %1502 = vmatpush1.msra.mxu0 0.0
      %1503 = vmatprep.subr.mxu0 0.0
      %1504 = vmatpush1.msra.mxu0 0.0
      %1505 = vmatprep.subr.mxu0 0.0
      %1506 = vmatpush1.msra.mxu0 0.0
      %1507 = vmatprep.subr.mxu0 0.0
      %1508 = vmatpush1.msra.mxu0 0.0
      %1509 = vmatprep.subr.mxu0 0.0
      %1510 = vmatpush1.msra.mxu0 0.0
      %1511 = vmatprep.subr.mxu0 0.0
      %1512 = vmatpush1.msra.mxu0 0.0
      %1513 = vmatprep.subr.mxu0 0.0
      %1514 = vmatpush1.msra.mxu0 0.0
      %1515 = vmatprep.mubr.f32.mxu0 0.0
      %1516 = vmatmul.mubr.f32.gmra.mrb[0].mxu0 %v1437
      %v1517 = vpop.f32.mrb[0].mxu0
      %v1518 = vadd.f32 0.0, %v1517
      %v1519 = vpop.f32.mrb[0].mxu0
      %v1520 = vadd.f32 0.0, %v1519
      %1521 = vdwg.mxu0
      %1522 = vmatprep.subr.mxu0 %v1449
      %1523 = vmatpush1.msra.mxu0 %v1446
      %1524 = vmatprep.subr.mxu0 0.0
      %1525 = vmatpush1.msra.mxu0 0.0
      %1526 = vmatprep.subr.mxu0 0.0
      %1527 = vmatpush1.msra.mxu0 0.0
      %1528 = vmatprep.subr.mxu0 0.0
      %1529 = vmatpush1.msra.mxu0 0.0
      %1530 = vmatprep.subr.mxu0 0.0
      %1531 = vmatpush1.msra.mxu0 0.0
      %1532 = vmatprep.subr.mxu0 0.0
      %1533 = vmatpush1.msra.mxu0 0.0
      %1534 = vmatprep.subr.mxu0 0.0
      %1535 = vmatpush1.msra.mxu0 0.0
      %1536 = vmatprep.subr.mxu0 0.0
      %1537 = vmatpush1.msra.mxu0 0.0
      %1538 = vmatprep.subr.mxu0 0.0
      %1539 = vmatpush1.msra.mxu0 0.0
      %1540 = vmatprep.subr.mxu0 0.0
      %1541 = vmatpush1.msra.mxu0 0.0
      %1542 = vmatprep.subr.mxu0 0.0
      %1543 = vmatpush1.msra.mxu0 0.0
      %1544 = vmatprep.subr.mxu0 0.0
      %1545 = vmatpush1.msra.mxu0 0.0
      %1546 = vmatprep.subr.mxu0 0.0
      %1547 = vmatpush1.msra.mxu0 0.0
      %1548 = vmatprep.subr.mxu0 0.0
      %1549 = vmatpush1.msra.mxu0 0.0
      %1550 = vmatprep.subr.mxu0 0.0
      %1551 = vmatpush1.msra.mxu0 0.0
      %1552 = vmatprep.subr.mxu0 0.0
      %1553 = vmatpush1.msra.mxu0 0.0
      %1554 = vmatprep.subr.mxu0 0.0
      %1555 = vmatpush1.msra.mxu0 0.0
      %1556 = vmatprep.subr.mxu0 0.0
      %1557 = vmatpush1.msra.mxu0 0.0
      %1558 = vmatprep.subr.mxu0 0.0
      %1559 = vmatpush1.msra.mxu0 0.0
      %1560 = vmatprep.subr.mxu0 0.0
      %1561 = vmatpush1.msra.mxu0 0.0
      %1562 = vmatprep.subr.mxu0 0.0
      %1563 = vmatpush1.msra.mxu0 0.0
      %1564 = vmatprep.subr.mxu0 0.0
      %1565 = vmatpush1.msra.mxu0 0.0
      %1566 = vmatprep.subr.mxu0 0.0
      %1567 = vmatpush1.msra.mxu0 0.0
      %1568 = vmatprep.subr.mxu0 0.0
      %1569 = vmatpush1.msra.mxu0 0.0
      %1570 = vmatprep.subr.mxu0 0.0
      %1571 = vmatpush1.msra.mxu0 0.0
      %1572 = vmatprep.subr.mxu0 0.0
      %1573 = vmatpush1.msra.mxu0 0.0
      %1574 = vmatprep.subr.mxu0 0.0
      %1575 = vmatpush1.msra.mxu0 0.0
      %1576 = vmatprep.subr.mxu0 0.0
      %1577 = vmatpush1.msra.mxu0 0.0
      %1578 = vmatprep.subr.mxu0 0.0
      %1579 = vmatpush1.msra.mxu0 0.0
      %1580 = vmatprep.subr.mxu0 0.0
      %1581 = vmatpush1.msra.mxu0 0.0
      %1582 = vmatprep.subr.mxu0 0.0
      %1583 = vmatpush1.msra.mxu0 0.0
      %1584 = vmatprep.subr.mxu0 0.0
      %1585 = vmatpush1.msra.mxu0 0.0
      %1586 = vmatprep.mubr.f32.mxu0 0.0
      %1587 = vmatmul.mubr.f32.gmra.mrb[0].mxu0 %v1437
      %v1588 = vpop.f32.mrb[0].mxu0
      %v1589 = vadd.f32 0.0, %v1588
      %v1590 = vpop.f32.mrb[0].mxu0
      %v1591 = vadd.f32 0.0, %v1590
      %1592 = vdwg.mxu0
      %v1593 = vlaneseq
      %v1594 = vshrl.u32 %v1593, 7
      %v1595 = vsub.s32 6, %v1594
      %v1596 = vrot.slane %v267, %v1595
      %v1597 = vlaneseq
      %v1598 = vshrl.u32 %v1597, 7
      %v1599 = vsub.s32 6, %v1598
      %v1600 = vrot.slane %v268, %v1599
      %v1601 = vlaneseq
      %v1602 = vshrl.u32 %v1601, 7
      %v1603 = vsub.s32 6, %v1602
      %v1604 = vrot.slane %v269, %v1603
      %v1605 = vlaneseq
      %v1606 = vshrl.u32 %v1605, 7
      %v1607 = vsub.s32 6, %v1606
      %v1608 = vrot.slane %v270, %v1607
      %v1609 = vmul.f32 %v1518, %v1596
      %v1610 = vmul.f32 %v1520, %v1600
      %v1611 = vmul.f32 %v1589, %v1604
      %v1612 = vmul.f32 %v1591, %v1608
      %v1613 = vadd.f32 %v1419, %v1609
      %v1614 = vadd.f32 %v1420, %v1610
      %v1615 = vadd.f32 %v1421, %v1611
      %v1616 = vadd.f32 %v1422, %v1612
      %1617 = vrot.lane.b32.xlu0 %v275, 112
      %v1618 = vpop.permute.xlu0 %1617
      %1619 = vrot.lane.b32.xlu0 %v276, 112
      %v1620 = vpop.permute.xlu0 %1619
      %1621 = vrot.lane.b32.xlu0 %v277, 112
      %v1622 = vpop.permute.xlu0 %1621
      %1623 = vrot.lane.b32.xlu0 %v278, 112
      %v1624 = vpop.permute.xlu0 %1623
      %vm1625 = vcmp.lt.s32.totalorder %v297, 112
      %v1626 = vsel %vm1625, %v1622, %v1624
      %v1627 = vsel %vm1625, %v1620, %v1622
      %v1628 = vsel %vm1625, %v1618, %v1620
      %v1629 = vsel %vm1625, %v1624, %v1618
      %v1631 = vsel %vm303, %v286, 0
      %v1634 = vsel %vm307, %v1628, 0
      %v1637 = vsel %vm307, %v1627, 0
      %v1640 = vsel %vm307, %v1626, 0
      %v1643 = vsel %vm307, %v1629, 0
      %1645 = vmatprep.subr.mxu0 %v1637
      %1646 = vmatpush1.msra.mxu0 %v1634
      %1647 = vmatprep.subr.mxu0 0.0
      %1648 = vmatpush1.msra.mxu0 0.0
      %1649 = vmatprep.subr.mxu0 0.0
      %1650 = vmatpush1.msra.mxu0 0.0
      %1651 = vmatprep.subr.mxu0 0.0
      %1652 = vmatpush1.msra.mxu0 0.0
      %1653 = vmatprep.subr.mxu0 0.0
      %1654 = vmatpush1.msra.mxu0 0.0
      %1655 = vmatprep.subr.mxu0 0.0
      %1656 = vmatpush1.msra.mxu0 0.0
      %1657 = vmatprep.subr.mxu0 0.0
      %1658 = vmatpush1.msra.mxu0 0.0
      %1659 = vmatprep.subr.mxu0 0.0
      %1660 = vmatpush1.msra.mxu0 0.0
      %1661 = vmatprep.subr.mxu0 0.0
      %1662 = vmatpush1.msra.mxu0 0.0
      %1663 = vmatprep.subr.mxu0 0.0
      %1664 = vmatpush1.msra.mxu0 0.0
      %1665 = vmatprep.subr.mxu0 0.0
      %1666 = vmatpush1.msra.mxu0 0.0
      %1667 = vmatprep.subr.mxu0 0.0
      %1668 = vmatpush1.msra.mxu0 0.0
      %1669 = vmatprep.subr.mxu0 0.0
      %1670 = vmatpush1.msra.mxu0 0.0
      %1671 = vmatprep.subr.mxu0 0.0
      %1672 = vmatpush1.msra.mxu0 0.0
      %1673 = vmatprep.subr.mxu0 0.0
      %1674 = vmatpush1.msra.mxu0 0.0
      %1675 = vmatprep.subr.mxu0 0.0
      %1676 = vmatpush1.msra.mxu0 0.0
      %1677 = vmatprep.subr.mxu0 0.0
      %1678 = vmatpush1.msra.mxu0 0.0
      %1679 = vmatprep.subr.mxu0 0.0
      %1680 = vmatpush1.msra.mxu0 0.0
      %1681 = vmatprep.subr.mxu0 0.0
      %1682 = vmatpush1.msra.mxu0 0.0
      %1683 = vmatprep.subr.mxu0 0.0
      %1684 = vmatpush1.msra.mxu0 0.0
      %1685 = vmatprep.subr.mxu0 0.0
      %1686 = vmatpush1.msra.mxu0 0.0
      %1687 = vmatprep.subr.mxu0 0.0
      %1688 = vmatpush1.msra.mxu0 0.0
      %1689 = vmatprep.subr.mxu0 0.0
      %1690 = vmatpush1.msra.mxu0 0.0
      %1691 = vmatprep.subr.mxu0 0.0
      %1692 = vmatpush1.msra.mxu0 0.0
      %1693 = vmatprep.subr.mxu0 0.0
      %1694 = vmatpush1.msra.mxu0 0.0
      %1695 = vmatprep.subr.mxu0 0.0
      %1696 = vmatpush1.msra.mxu0 0.0
      %1697 = vmatprep.subr.mxu0 0.0
      %1698 = vmatpush1.msra.mxu0 0.0
      %1699 = vmatprep.subr.mxu0 0.0
      %1700 = vmatpush1.msra.mxu0 0.0
      %1701 = vmatprep.subr.mxu0 0.0
      %1702 = vmatpush1.msra.mxu0 0.0
      %1703 = vmatprep.subr.mxu0 0.0
      %1704 = vmatpush1.msra.mxu0 0.0
      %1705 = vmatprep.subr.mxu0 0.0
      %1706 = vmatpush1.msra.mxu0 0.0
      %1707 = vmatprep.subr.mxu0 0.0
      %1708 = vmatpush1.msra.mxu0 0.0
      %1709 = vmatprep.mubr.f32.mxu0 0.0
      %1710 = vmatmul.mubr.f32.gmra.mrb[0].mxu0 %v1631
      %v1711 = vpop.f32.mrb[0].mxu0
      %v1712 = vadd.f32 0.0, %v1711
      %v1713 = vpop.f32.mrb[0].mxu0
      %v1714 = vadd.f32 0.0, %v1713
      %1715 = vdwg.mxu0
      %1716 = vmatprep.subr.mxu0 %v1643
      %1717 = vmatpush1.msra.mxu0 %v1640
      %1718 = vmatprep.subr.mxu0 0.0
      %1719 = vmatpush1.msra.mxu0 0.0
      %1720 = vmatprep.subr.mxu0 0.0
      %1721 = vmatpush1.msra.mxu0 0.0
      %1722 = vmatprep.subr.mxu0 0.0
      %1723 = vmatpush1.msra.mxu0 0.0
      %1724 = vmatprep.subr.mxu0 0.0
      %1725 = vmatpush1.msra.mxu0 0.0
      %1726 = vmatprep.subr.mxu0 0.0
      %1727 = vmatpush1.msra.mxu0 0.0
      %1728 = vmatprep.subr.mxu0 0.0
      %1729 = vmatpush1.msra.mxu0 0.0
      %1730 = vmatprep.subr.mxu0 0.0
      %1731 = vmatpush1.msra.mxu0 0.0
      %1732 = vmatprep.subr.mxu0 0.0
      %1733 = vmatpush1.msra.mxu0 0.0
      %1734 = vmatprep.subr.mxu0 0.0
      %1735 = vmatpush1.msra.mxu0 0.0
      %1736 = vmatprep.subr.mxu0 0.0
      %1737 = vmatpush1.msra.mxu0 0.0
      %1738 = vmatprep.subr.mxu0 0.0
      %1739 = vmatpush1.msra.mxu0 0.0
      %1740 = vmatprep.subr.mxu0 0.0
      %1741 = vmatpush1.msra.mxu0 0.0
      %1742 = vmatprep.subr.mxu0 0.0
      %1743 = vmatpush1.msra.mxu0 0.0
      %1744 = vmatprep.subr.mxu0 0.0
      %1745 = vmatpush1.msra.mxu0 0.0
      %1746 = vmatprep.subr.mxu0 0.0
      %1747 = vmatpush1.msra.mxu0 0.0
      %1748 = vmatprep.subr.mxu0 0.0
      %1749 = vmatpush1.msra.mxu0 0.0
      %1750 = vmatprep.subr.mxu0 0.0
      %1751 = vmatpush1.msra.mxu0 0.0
      %1752 = vmatprep.subr.mxu0 0.0
      %1753 = vmatpush1.msra.mxu0 0.0
      %1754 = vmatprep.subr.mxu0 0.0
      %1755 = vmatpush1.msra.mxu0 0.0
      %1756 = vmatprep.subr.mxu0 0.0
      %1757 = vmatpush1.msra.mxu0 0.0
      %1758 = vmatprep.subr.mxu0 0.0
      %1759 = vmatpush1.msra.mxu0 0.0
      %1760 = vmatprep.subr.mxu0 0.0
      %1761 = vmatpush1.msra.mxu0 0.0
      %1762 = vmatprep.subr.mxu0 0.0
      %1763 = vmatpush1.msra.mxu0 0.0
      %1764 = vmatprep.subr.mxu0 0.0
      %1765 = vmatpush1.msra.mxu0 0.0
      %1766 = vmatprep.subr.mxu0 0.0
      %1767 = vmatpush1.msra.mxu0 0.0
      %1768 = vmatprep.subr.mxu0 0.0
      %1769 = vmatpush1.msra.mxu0 0.0
      %1770 = vmatprep.subr.mxu0 0.0
      %1771 = vmatpush1.msra.mxu0 0.0
      %1772 = vmatprep.subr.mxu0 0.0
      %1773 = vmatpush1.msra.mxu0 0.0
      %1774 = vmatprep.subr.mxu0 0.0
      %1775 = vmatpush1.msra.mxu0 0.0
      %1776 = vmatprep.subr.mxu0 0.0
      %1777 = vmatpush1.msra.mxu0 0.0
      %1778 = vmatprep.subr.mxu0 0.0
      %1779 = vmatpush1.msra.mxu0 0.0
      %1780 = vmatprep.mubr.f32.mxu0 0.0
      %1781 = vmatmul.mubr.f32.gmra.mrb[0].mxu0 %v1631
      %v1782 = vpop.f32.mrb[0].mxu0
      %v1783 = vadd.f32 0.0, %v1782
      %v1784 = vpop.f32.mrb[0].mxu0
      %v1785 = vadd.f32 0.0, %v1784
      %1786 = vdwg.mxu0
      %v1787 = vlaneseq
      %v1788 = vshrl.u32 %v1787, 7
      %v1789 = vsub.s32 7, %v1788
      %v1790 = vrot.slane %v267, %v1789
      %v1791 = vlaneseq
      %v1792 = vshrl.u32 %v1791, 7
      %v1793 = vsub.s32 7, %v1792
      %v1794 = vrot.slane %v268, %v1793
      %v1795 = vlaneseq
      %v1796 = vshrl.u32 %v1795, 7
      %v1797 = vsub.s32 7, %v1796
      %v1798 = vrot.slane %v269, %v1797
      %v1799 = vlaneseq
      %v1800 = vshrl.u32 %v1799, 7
      %v1801 = vsub.s32 7, %v1800
      %v1802 = vrot.slane %v270, %v1801
      %v1803 = vmul.f32 %v1712, %v1790
      %v1804 = vmul.f32 %v1714, %v1794
      %v1805 = vmul.f32 %v1783, %v1798
      %v1806 = vmul.f32 %v1785, %v1802
      %v1807 = vadd.f32 %v1613, %v1803
      %v1808 = vadd.f32 %v1614, %v1804
      %v1809 = vadd.f32 %v1615, %v1805
      %v1810 = vadd.f32 %v1616, %v1806
      %1811 = vrot.lane.b32.xlu0 %v275, 111
      %v1812 = vpop.permute.xlu0 %1811
      %1813 = vrot.lane.b32.xlu0 %v276, 111
      %v1814 = vpop.permute.xlu0 %1813
      %1815 = vrot.lane.b32.xlu0 %v277, 111
      %v1816 = vpop.permute.xlu0 %1815
      %1817 = vrot.lane.b32.xlu0 %v278, 111
      %v1818 = vpop.permute.xlu0 %1817
      %vm1819 = vcmp.lt.s32.totalorder %v297, 111
      %v1820 = vsel %vm1819, %v1816, %v1818
      %v1821 = vsel %vm1819, %v1814, %v1816
      %v1822 = vsel %vm1819, %v1812, %v1814
      %v1823 = vsel %vm1819, %v1818, %v1812
      %v1825 = vsel %vm303, %v287, 0
      %v1828 = vsel %vm307, %v1822, 0
      %v1831 = vsel %vm307, %v1821, 0
      %v1834 = vsel %vm307, %v1820, 0
      %v1837 = vsel %vm307, %v1823, 0
      %1839 = vmatprep.subr.mxu0 %v1831
      %1840 = vmatpush1.msra.mxu0 %v1828
      %1841 = vmatprep.subr.mxu0 0.0
      %1842 = vmatpush1.msra.mxu0 0.0
      %1843 = vmatprep.subr.mxu0 0.0
      %1844 = vmatpush1.msra.mxu0 0.0
      %1845 = vmatprep.subr.mxu0 0.0
      %1846 = vmatpush1.msra.mxu0 0.0
      %1847 = vmatprep.subr.mxu0 0.0
      %1848 = vmatpush1.msra.mxu0 0.0
      %1849 = vmatprep.subr.mxu0 0.0
      %1850 = vmatpush1.msra.mxu0 0.0
      %1851 = vmatprep.subr.mxu0 0.0
      %1852 = vmatpush1.msra.mxu0 0.0
      %1853 = vmatprep.subr.mxu0 0.0
      %1854 = vmatpush1.msra.mxu0 0.0
      %1855 = vmatprep.subr.mxu0 0.0
      %1856 = vmatpush1.msra.mxu0 0.0
      %1857 = vmatprep.subr.mxu0 0.0
      %1858 = vmatpush1.msra.mxu0 0.0
      %1859 = vmatprep.subr.mxu0 0.0
      %1860 = vmatpush1.msra.mxu0 0.0
      %1861 = vmatprep.subr.mxu0 0.0
      %1862 = vmatpush1.msra.mxu0 0.0
      %1863 = vmatprep.subr.mxu0 0.0
      %1864 = vmatpush1.msra.mxu0 0.0
      %1865 = vmatprep.subr.mxu0 0.0
      %1866 = vmatpush1.msra.mxu0 0.0
      %1867 = vmatprep.subr.mxu0 0.0
      %1868 = vmatpush1.msra.mxu0 0.0
      %1869 = vmatprep.subr.mxu0 0.0
      %1870 = vmatpush1.msra.mxu0 0.0
      %1871 = vmatprep.subr.mxu0 0.0
      %1872 = vmatpush1.msra.mxu0 0.0
      %1873 = vmatprep.subr.mxu0 0.0
      %1874 = vmatpush1.msra.mxu0 0.0
      %1875 = vmatprep.subr.mxu0 0.0
      %1876 = vmatpush1.msra.mxu0 0.0
      %1877 = vmatprep.subr.mxu0 0.0
      %1878 = vmatpush1.msra.mxu0 0.0
      %1879 = vmatprep.subr.mxu0 0.0
      %1880 = vmatpush1.msra.mxu0 0.0
      %1881 = vmatprep.subr.mxu0 0.0
      %1882 = vmatpush1.msra.mxu0 0.0
      %1883 = vmatprep.subr.mxu0 0.0
      %1884 = vmatpush1.msra.mxu0 0.0
      %1885 = vmatprep.subr.mxu0 0.0
      %1886 = vmatpush1.msra.mxu0 0.0
      %1887 = vmatprep.subr.mxu0 0.0
      %1888 = vmatpush1.msra.mxu0 0.0
      %1889 = vmatprep.subr.mxu0 0.0
      %1890 = vmatpush1.msra.mxu0 0.0
      %1891 = vmatprep.subr.mxu0 0.0
      %1892 = vmatpush1.msra.mxu0 0.0
      %1893 = vmatprep.subr.mxu0 0.0
      %1894 = vmatpush1.msra.mxu0 0.0
      %1895 = vmatprep.subr.mxu0 0.0
      %1896 = vmatpush1.msra.mxu0 0.0
      %1897 = vmatprep.subr.mxu0 0.0
      %1898 = vmatpush1.msra.mxu0 0.0
      %1899 = vmatprep.subr.mxu0 0.0
      %1900 = vmatpush1.msra.mxu0 0.0
      %1901 = vmatprep.subr.mxu0 0.0
      %1902 = vmatpush1.msra.mxu0 0.0
      %1903 = vmatprep.mubr.f32.mxu0 0.0
      %1904 = vmatmul.mubr.f32.gmra.mrb[0].mxu0 %v1825
      %v1905 = vpop.f32.mrb[0].mxu0
      %v1906 = vadd.f32 0.0, %v1905
      %v1907 = vpop.f32.mrb[0].mxu0
      %v1908 = vadd.f32 0.0, %v1907
      %1909 = vdwg.mxu0
      %1910 = vmatprep.subr.mxu0 %v1837
      %1911 = vmatpush1.msra.mxu0 %v1834
      %1912 = vmatprep.subr.mxu0 0.0
      %1913 = vmatpush1.msra.mxu0 0.0
      %1914 = vmatprep.subr.mxu0 0.0
      %1915 = vmatpush1.msra.mxu0 0.0
      %1916 = vmatprep.subr.mxu0 0.0
      %1917 = vmatpush1.msra.mxu0 0.0
      %1918 = vmatprep.subr.mxu0 0.0
      %1919 = vmatpush1.msra.mxu0 0.0
      %1920 = vmatprep.subr.mxu0 0.0
      %1921 = vmatpush1.msra.mxu0 0.0
      %1922 = vmatprep.subr.mxu0 0.0
      %1923 = vmatpush1.msra.mxu0 0.0
      %1924 = vmatprep.subr.mxu0 0.0
      %1925 = vmatpush1.msra.mxu0 0.0
      %1926 = vmatprep.subr.mxu0 0.0
      %1927 = vmatpush1.msra.mxu0 0.0
      %1928 = vmatprep.subr.mxu0 0.0
      %1929 = vmatpush1.msra.mxu0 0.0
      %1930 = vmatprep.subr.mxu0 0.0
      %1931 = vmatpush1.msra.mxu0 0.0
      %1932 = vmatprep.subr.mxu0 0.0
      %1933 = vmatpush1.msra.mxu0 0.0
      %1934 = vmatprep.subr.mxu0 0.0
      %1935 = vmatpush1.msra.mxu0 0.0
      %1936 = vmatprep.subr.mxu0 0.0
      %1937 = vmatpush1.msra.mxu0 0.0
      %1938 = vmatprep.subr.mxu0 0.0
      %1939 = vmatpush1.msra.mxu0 0.0
      %1940 = vmatprep.subr.mxu0 0.0
      %1941 = vmatpush1.msra.mxu0 0.0
      %1942 = vmatprep.subr.mxu0 0.0
      %1943 = vmatpush1.msra.mxu0 0.0
      %1944 = vmatprep.subr.mxu0 0.0
      %1945 = vmatpush1.msra.mxu0 0.0
      %1946 = vmatprep.subr.mxu0 0.0
      %1947 = vmatpush1.msra.mxu0 0.0
      %1948 = vmatprep.subr.mxu0 0.0
      %1949 = vmatpush1.msra.mxu0 0.0
      %1950 = vmatprep.subr.mxu0 0.0
      %1951 = vmatpush1.msra.mxu0 0.0
      %1952 = vmatprep.subr.mxu0 0.0
      %1953 = vmatpush1.msra.mxu0 0.0
      %1954 = vmatprep.subr.mxu0 0.0
      %1955 = vmatpush1.msra.mxu0 0.0
      %1956 = vmatprep.subr.mxu0 0.0
      %1957 = vmatpush1.msra.mxu0 0.0
      %1958 = vmatprep.subr.mxu0 0.0
      %1959 = vmatpush1.msra.mxu0 0.0
      %1960 = vmatprep.subr.mxu0 0.0
      %1961 = vmatpush1.msra.mxu0 0.0
      %1962 = vmatprep.subr.mxu0 0.0
      %1963 = vmatpush1.msra.mxu0 0.0
      %1964 = vmatprep.subr.mxu0 0.0
      %1965 = vmatpush1.msra.mxu0 0.0
      %1966 = vmatprep.subr.mxu0 0.0
      %1967 = vmatpush1.msra.mxu0 0.0
      %1968 = vmatprep.subr.mxu0 0.0
      %1969 = vmatpush1.msra.mxu0 0.0
      %1970 = vmatprep.subr.mxu0 0.0
      %1971 = vmatpush1.msra.mxu0 0.0
      %1972 = vmatprep.subr.mxu0 0.0
      %1973 = vmatpush1.msra.mxu0 0.0
      %1974 = vmatprep.mubr.f32.mxu0 0.0
      %1975 = vmatmul.mubr.f32.gmra.mrb[0].mxu0 %v1825
      %v1976 = vpop.f32.mrb[0].mxu0
      %v1977 = vadd.f32 0.0, %v1976
      %v1978 = vpop.f32.mrb[0].mxu0
      %v1979 = vadd.f32 0.0, %v1978
      %1980 = vdwg.mxu0
      %v1981 = vlaneseq
      %v1982 = vshrl.u32 %v1981, 7
      %v1983 = vsub.s32 0, %v1982
      %v1984 = vrot.slane %v271, %v1983
      %v1985 = vlaneseq
      %v1986 = vshrl.u32 %v1985, 7
      %v1987 = vsub.s32 0, %v1986
      %v1988 = vrot.slane %v272, %v1987
      %v1989 = vlaneseq
      %v1990 = vshrl.u32 %v1989, 7
      %v1991 = vsub.s32 0, %v1990
      %v1992 = vrot.slane %v273, %v1991
      %v1993 = vlaneseq
      %v1994 = vshrl.u32 %v1993, 7
      %v1995 = vsub.s32 0, %v1994
      %v1996 = vrot.slane %v274, %v1995
      %v1997 = vmul.f32 %v1906, %v1984
      %v1998 = vmul.f32 %v1908, %v1988
      %v1999 = vmul.f32 %v1977, %v1992
      %v2000 = vmul.f32 %v1979, %v1996
      %v2001 = vadd.f32 %v1807, %v1997
      %v2002 = vadd.f32 %v1808, %v1998
      %v2003 = vadd.f32 %v1809, %v1999
      %v2004 = vadd.f32 %v1810, %v2000
      %v2005 = vmax.f32 %v2001, 0.0
      %v2006 = vmax.f32 %v2002, 0.0
      %v2007 = vmax.f32 %v2003, 0.0
      %v2008 = vmax.f32 %v2004, 0.0
      %v2013 = vrot.slane %v2005, 4
      %v2014 = vrot.slane %v2006, 4
      %v2015 = vrot.slane %v2007, 4
      %v2016 = vrot.slane %v2008, 4
      %2021 = vst [vmem:[#allocation2] sm:$0xf0] %v2013
      %2022 = vst [vmem:[#allocation2 + $0x8] sm:$0xf0] %v2014
      %2023 = vst [vmem:[#allocation2 + $0x10] sm:$0xf0] %v2015
      %2024 = vst [vmem:[#allocation2 + $0x18] sm:$0xf0] %v2016
      %v2025 = vld [vmem:[#allocation2] sm:$0xff]
      %v2026 = vld [vmem:[#allocation2 + $0x8] sm:$0xff]
      %v2027 = vld [vmem:[#allocation2 + $0x10] sm:$0xff]
      %v2028 = vld [vmem:[#allocation2 + $0x18] sm:$0xff]
      %v2029 = vld [vmem:[%s4] sm:$0xf]
      %v2030 = vld [vmem:[%s4 + $0x4] sm:$0xf]
      %v2031 = vld [vmem:[%s4 + $0x8] sm:$0xf]
      %v2032 = vld [vmem:[%s4 + $0xc] sm:$0xf]
      %v2033 = vld [vmem:[%s4 + $0x10] sm:$0xf]
      %v2034 = vld [vmem:[%s4 + $0x14] sm:$0xf]
      %v2035 = vld [vmem:[%s4 + $0x18] sm:$0xf]
      %v2036 = vld [vmem:[%s4 + $0x1c] sm:$0xf]
      %v2037 = vld [vmem:[%s4 + $0x20] sm:$0xf]
      %2038 = vrot.lane.b32.xlu0 %v2025, 17
      %v2039 = vpop.permute.xlu0 %2038
      %2040 = vrot.lane.b32.xlu0 %v2026, 17
      %v2041 = vpop.permute.xlu0 %2040
      %2042 = vrot.lane.b32.xlu0 %v2027, 17
      %v2043 = vpop.permute.xlu0 %2042
      %2044 = vrot.lane.b32.xlu0 %v2028, 17
      %v2045 = vpop.permute.xlu0 %2044
      %v2046 = vsel %vm298, %v2043, %v2045
      %v2047 = vsel %vm298, %v2041, %v2043
      %v2048 = vsel %vm298, %v2039, %v2041
      %v2049 = vsel %vm298, %v2045, %v2039
      %vm2050 = vcmask 64512
      %v2052 = vsel %vm2050, %v2029, 0
      %2054 = vmatprep.subr.mxu0 %v2048
      %2055 = vmatpush1.msra.mxu0 %v2049
      %2056 = vmatprep.subr.mxu0 0.0
      %2057 = vmatpush1.msra.mxu0 0.0
      %2058 = vmatprep.subr.mxu0 0.0
      %2059 = vmatpush1.msra.mxu0 0.0
      %2060 = vmatprep.subr.mxu0 0.0
      %2061 = vmatpush1.msra.mxu0 0.0
      %2062 = vmatprep.subr.mxu0 0.0
      %2063 = vmatpush1.msra.mxu0 0.0
      %2064 = vmatprep.subr.mxu0 0.0
      %2065 = vmatpush1.msra.mxu0 0.0
      %2066 = vmatprep.subr.mxu0 0.0
      %2067 = vmatpush1.msra.mxu0 0.0
      %2068 = vmatprep.subr.mxu0 0.0
      %2069 = vmatpush1.msra.mxu0 0.0
      %2070 = vmatprep.subr.mxu0 0.0
      %2071 = vmatpush1.msra.mxu0 0.0
      %2072 = vmatprep.subr.mxu0 0.0
      %2073 = vmatpush1.msra.mxu0 0.0
      %2074 = vmatprep.subr.mxu0 0.0
      %2075 = vmatpush1.msra.mxu0 0.0
      %2076 = vmatprep.subr.mxu0 0.0
      %2077 = vmatpush1.msra.mxu0 0.0
      %2078 = vmatprep.subr.mxu0 0.0
      %2079 = vmatpush1.msra.mxu0 0.0
      %2080 = vmatprep.subr.mxu0 0.0
      %2081 = vmatpush1.msra.mxu0 0.0
      %2082 = vmatprep.subr.mxu0 0.0
      %2083 = vmatpush1.msra.mxu0 0.0
      %2084 = vmatprep.subr.mxu0 0.0
      %2085 = vmatpush1.msra.mxu0 0.0
      %2086 = vmatprep.subr.mxu0 0.0
      %2087 = vmatpush1.msra.mxu0 0.0
      %2088 = vmatprep.subr.mxu0 0.0
      %2089 = vmatpush1.msra.mxu0 0.0
      %2090 = vmatprep.subr.mxu0 0.0
      %2091 = vmatpush1.msra.mxu0 0.0
      %2092 = vmatprep.subr.mxu0 0.0
      %2093 = vmatpush1.msra.mxu0 0.0
      %2094 = vmatprep.subr.mxu0 0.0
      %2095 = vmatpush1.msra.mxu0 0.0
      %2096 = vmatprep.subr.mxu0 0.0
      %2097 = vmatpush1.msra.mxu0 0.0
      %2098 = vmatprep.subr.mxu0 0.0
      %2099 = vmatpush1.msra.mxu0 0.0
      %2100 = vmatprep.subr.mxu0 0.0
      %2101 = vmatpush1.msra.mxu0 0.0
      %2102 = vmatprep.subr.mxu0 0.0
      %2103 = vmatpush1.msra.mxu0 0.0
      %2104 = vmatprep.subr.mxu0 0.0
      %2105 = vmatpush1.msra.mxu0 0.0
      %2106 = vmatprep.subr.mxu0 0.0
      %2107 = vmatpush1.msra.mxu0 0.0
      %2108 = vmatprep.subr.mxu0 0.0
      %2109 = vmatpush1.msra.mxu0 0.0
      %2110 = vmatprep.subr.mxu0 0.0
      %2111 = vmatpush1.msra.mxu0 0.0
      %2112 = vmatprep.subr.mxu0 0.0
      %2113 = vmatpush1.msra.mxu0 0.0
      %2114 = vmatprep.subr.mxu0 0.0
      %2115 = vmatpush1.msra.mxu0 0.0
      %2116 = vmatprep.subr.mxu0 0.0
      %2117 = vmatpush1.msra.mxu0 0.0
      %2118 = vmatprep.mubr.f32.mxu0 0.0
      %2119 = vmatmul.mubr.f32.gmra.mrb[0].mxu0 %v2052
      %v2120 = vpop.f32.mrb[0].mxu0
      %v2121 = vadd.f32 0.0, %v2120
      %v2122 = vpop.f32.mrb[0].mxu0
      %v2123 = vadd.f32 0.0, %v2122
      %2124 = vdwg.mxu0
      %2125 = vmatprep.subr.mxu0 %v2046
      %2126 = vmatpush1.msra.mxu0 %v2047
      %2127 = vmatprep.subr.mxu0 0.0
      %2128 = vmatpush1.msra.mxu0 0.0
      %2129 = vmatprep.subr.mxu0 0.0
      %2130 = vmatpush1.msra.mxu0 0.0
      %2131 = vmatprep.subr.mxu0 0.0
      %2132 = vmatpush1.msra.mxu0 0.0
      %2133 = vmatprep.subr.mxu0 0.0
      %2134 = vmatpush1.msra.mxu0 0.0
      %2135 = vmatprep.subr.mxu0 0.0
      %2136 = vmatpush1.msra.mxu0 0.0
      %2137 = vmatprep.subr.mxu0 0.0
      %2138 = vmatpush1.msra.mxu0 0.0
      %2139 = vmatprep.subr.mxu0 0.0
      %2140 = vmatpush1.msra.mxu0 0.0
      %2141 = vmatprep.subr.mxu0 0.0
      %2142 = vmatpush1.msra.mxu0 0.0
      %2143 = vmatprep.subr.mxu0 0.0
      %2144 = vmatpush1.msra.mxu0 0.0
      %2145 = vmatprep.subr.mxu0 0.0
      %2146 = vmatpush1.msra.mxu0 0.0
      %2147 = vmatprep.subr.mxu0 0.0
      %2148 = vmatpush1.msra.mxu0 0.0
      %2149 = vmatprep.subr.mxu0 0.0
      %2150 = vmatpush1.msra.mxu0 0.0
      %2151 = vmatprep.subr.mxu0 0.0
      %2152 = vmatpush1.msra.mxu0 0.0
      %2153 = vmatprep.subr.mxu0 0.0
      %2154 = vmatpush1.msra.mxu0 0.0
      %2155 = vmatprep.subr.mxu0 0.0
      %2156 = vmatpush1.msra.mxu0 0.0
      %2157 = vmatprep.subr.mxu0 0.0
      %2158 = vmatpush1.msra.mxu0 0.0
      %2159 = vmatprep.subr.mxu0 0.0
      %2160 = vmatpush1.msra.mxu0 0.0
      %2161 = vmatprep.subr.mxu0 0.0
      %2162 = vmatpush1.msra.mxu0 0.0
      %2163 = vmatprep.subr.mxu0 0.0
      %2164 = vmatpush1.msra.mxu0 0.0
      %2165 = vmatprep.subr.mxu0 0.0
      %2166 = vmatpush1.msra.mxu0 0.0
      %2167 = vmatprep.subr.mxu0 0.0
      %2168 = vmatpush1.msra.mxu0 0.0
      %2169 = vmatprep.subr.mxu0 0.0
      %2170 = vmatpush1.msra.mxu0 0.0
      %2171 = vmatprep.subr.mxu0 0.0
      %2172 = vmatpush1.msra.mxu0 0.0
      %2173 = vmatprep.subr.mxu0 0.0
      %2174 = vmatpush1.msra.mxu0 0.0
      %2175 = vmatprep.subr.mxu0 0.0
      %2176 = vmatpush1.msra.mxu0 0.0
      %2177 = vmatprep.subr.mxu0 0.0
      %2178 = vmatpush1.msra.mxu0 0.0
      %2179 = vmatprep.subr.mxu0 0.0
      %2180 = vmatpush1.msra.mxu0 0.0
      %2181 = vmatprep.subr.mxu0 0.0
      %2182 = vmatpush1.msra.mxu0 0.0
      %2183 = vmatprep.subr.mxu0 0.0
      %2184 = vmatpush1.msra.mxu0 0.0
      %2185 = vmatprep.subr.mxu0 0.0
      %2186 = vmatpush1.msra.mxu0 0.0
      %2187 = vmatprep.subr.mxu0 0.0
      %2188 = vmatpush1.msra.mxu0 0.0
      %2189 = vmatprep.mubr.f32.mxu0 0.0
      %2190 = vmatmul.mubr.f32.gmra.mrb[0].mxu0 %v2052
      %v2191 = vpop.f32.mrb[0].mxu0
      %v2192 = vadd.f32 0.0, %v2191
      %v2193 = vpop.f32.mrb[0].mxu0
      %v2194 = vadd.f32 0.0, %v2193
      %2195 = vdwg.mxu0
      %v2196 = vmul.f32 %v2121, %v465
      %v2197 = vmul.f32 %v2123, %v469
      %v2198 = vmul.f32 %v2192, %v473
      %v2199 = vmul.f32 %v2194, %v477
      %v2200 = vadd.f32 %v2196, 0.0
      %v2201 = vadd.f32 %v2197, 0.0
      %v2202 = vadd.f32 %v2198, 0.0
      %v2203 = vadd.f32 %v2199, 0.0
      %2204 = vrot.lane.b32.xlu0 %v2025, 16
      %v2205 = vpop.permute.xlu0 %2204
      %2206 = vrot.lane.b32.xlu0 %v2026, 16
      %v2207 = vpop.permute.xlu0 %2206
      %2208 = vrot.lane.b32.xlu0 %v2027, 16
      %v2209 = vpop.permute.xlu0 %2208
      %2210 = vrot.lane.b32.xlu0 %v2028, 16
      %v2211 = vpop.permute.xlu0 %2210
      %v2212 = vsel %vm494, %v2209, %v2211
      %v2213 = vsel %vm494, %v2207, %v2209
      %v2214 = vsel %vm494, %v2205, %v2207
      %v2215 = vsel %vm494, %v2211, %v2205
      %v2217 = vsel %vm2050, %v2030, 0
      %2219 = vmatprep.subr.mxu0 %v2214
      %2220 = vmatpush1.msra.mxu0 %v2215
      %2221 = vmatprep.subr.mxu0 0.0
      %2222 = vmatpush1.msra.mxu0 0.0
      %2223 = vmatprep.subr.mxu0 0.0
      %2224 = vmatpush1.msra.mxu0 0.0
      %2225 = vmatprep.subr.mxu0 0.0
      %2226 = vmatpush1.msra.mxu0 0.0
      %2227 = vmatprep.subr.mxu0 0.0
      %2228 = vmatpush1.msra.mxu0 0.0
      %2229 = vmatprep.subr.mxu0 0.0
      %2230 = vmatpush1.msra.mxu0 0.0
      %2231 = vmatprep.subr.mxu0 0.0
      %2232 = vmatpush1.msra.mxu0 0.0
      %2233 = vmatprep.subr.mxu0 0.0
      %2234 = vmatpush1.msra.mxu0 0.0
      %2235 = vmatprep.subr.mxu0 0.0
      %2236 = vmatpush1.msra.mxu0 0.0
      %2237 = vmatprep.subr.mxu0 0.0
      %2238 = vmatpush1.msra.mxu0 0.0
      %2239 = vmatprep.subr.mxu0 0.0
      %2240 = vmatpush1.msra.mxu0 0.0
      %2241 = vmatprep.subr.mxu0 0.0
      %2242 = vmatpush1.msra.mxu0 0.0
      %2243 = vmatprep.subr.mxu0 0.0
      %2244 = vmatpush1.msra.mxu0 0.0
      %2245 = vmatprep.subr.mxu0 0.0
      %2246 = vmatpush1.msra.mxu0 0.0
      %2247 = vmatprep.subr.mxu0 0.0
      %2248 = vmatpush1.msra.mxu0 0.0
      %2249 = vmatprep.subr.mxu0 0.0
      %2250 = vmatpush1.msra.mxu0 0.0
      %2251 = vmatprep.subr.mxu0 0.0
      %2252 = vmatpush1.msra.mxu0 0.0
      %2253 = vmatprep.subr.mxu0 0.0
      %2254 = vmatpush1.msra.mxu0 0.0
      %2255 = vmatprep.subr.mxu0 0.0
      %2256 = vmatpush1.msra.mxu0 0.0
      %2257 = vmatprep.subr.mxu0 0.0
      %2258 = vmatpush1.msra.mxu0 0.0
      %2259 = vmatprep.subr.mxu0 0.0
      %2260 = vmatpush1.msra.mxu0 0.0
      %2261 = vmatprep.subr.mxu0 0.0
      %2262 = vmatpush1.msra.mxu0 0.0
      %2263 = vmatprep.subr.mxu0 0.0
      %2264 = vmatpush1.msra.mxu0 0.0
      %2265 = vmatprep.subr.mxu0 0.0
      %2266 = vmatpush1.msra.mxu0 0.0
      %2267 = vmatprep.subr.mxu0 0.0
      %2268 = vmatpush1.msra.mxu0 0.0
      %2269 = vmatprep.subr.mxu0 0.0
      %2270 = vmatpush1.msra.mxu0 0.0
      %2271 = vmatprep.subr.mxu0 0.0
      %2272 = vmatpush1.msra.mxu0 0.0
      %2273 = vmatprep.subr.mxu0 0.0
      %2274 = vmatpush1.msra.mxu0 0.0
      %2275 = vmatprep.subr.mxu0 0.0
      %2276 = vmatpush1.msra.mxu0 0.0
      %2277 = vmatprep.subr.mxu0 0.0
      %2278 = vmatpush1.msra.mxu0 0.0
      %2279 = vmatprep.subr.mxu0 0.0
      %2280 = vmatpush1.msra.mxu0 0.0
      %2281 = vmatprep.subr.mxu0 0.0
      %2282 = vmatpush1.msra.mxu0 0.0
      %2283 = vmatprep.mubr.f32.mxu0 0.0
      %2284 = vmatmul.mubr.f32.gmra.mrb[0].mxu0 %v2217
      %v2285 = vpop.f32.mrb[0].mxu0
      %v2286 = vadd.f32 0.0, %v2285
      %v2287 = vpop.f32.mrb[0].mxu0
      %v2288 = vadd.f32 0.0, %v2287
      %2289 = vdwg.mxu0
      %2290 = vmatprep.subr.mxu0 %v2212
      %2291 = vmatpush1.msra.mxu0 %v2213
      %2292 = vmatprep.subr.mxu0 0.0
      %2293 = vmatpush1.msra.mxu0 0.0
      %2294 = vmatprep.subr.mxu0 0.0
      %2295 = vmatpush1.msra.mxu0 0.0
      %2296 = vmatprep.subr.mxu0 0.0
      %2297 = vmatpush1.msra.mxu0 0.0
      %2298 = vmatprep.subr.mxu0 0.0
      %2299 = vmatpush1.msra.mxu0 0.0
      %2300 = vmatprep.subr.mxu0 0.0
      %2301 = vmatpush1.msra.mxu0 0.0
      %2302 = vmatprep.subr.mxu0 0.0
      %2303 = vmatpush1.msra.mxu0 0.0
      %2304 = vmatprep.subr.mxu0 0.0
      %2305 = vmatpush1.msra.mxu0 0.0
      %2306 = vmatprep.subr.mxu0 0.0
      %2307 = vmatpush1.msra.mxu0 0.0
      %2308 = vmatprep.subr.mxu0 0.0
      %2309 = vmatpush1.msra.mxu0 0.0
      %2310 = vmatprep.subr.mxu0 0.0
      %2311 = vmatpush1.msra.mxu0 0.0
      %2312 = vmatprep.subr.mxu0 0.0
      %2313 = vmatpush1.msra.mxu0 0.0
      %2314 = vmatprep.subr.mxu0 0.0
      %2315 = vmatpush1.msra.mxu0 0.0
      %2316 = vmatprep.subr.mxu0 0.0
      %2317 = vmatpush1.msra.mxu0 0.0
      %2318 = vmatprep.subr.mxu0 0.0
      %2319 = vmatpush1.msra.mxu0 0.0
      %2320 = vmatprep.subr.mxu0 0.0
      %2321 = vmatpush1.msra.mxu0 0.0
      %2322 = vmatprep.subr.mxu0 0.0
      %2323 = vmatpush1.msra.mxu0 0.0
      %2324 = vmatprep.subr.mxu0 0.0
      %2325 = vmatpush1.msra.mxu0 0.0
      %2326 = vmatprep.subr.mxu0 0.0
      %2327 = vmatpush1.msra.mxu0 0.0
      %2328 = vmatprep.subr.mxu0 0.0
      %2329 = vmatpush1.msra.mxu0 0.0
      %2330 = vmatprep.subr.mxu0 0.0
      %2331 = vmatpush1.msra.mxu0 0.0
      %2332 = vmatprep.subr.mxu0 0.0
      %2333 = vmatpush1.msra.mxu0 0.0
      %2334 = vmatprep.subr.mxu0 0.0
      %2335 = vmatpush1.msra.mxu0 0.0
      %2336 = vmatprep.subr.mxu0 0.0
      %2337 = vmatpush1.msra.mxu0 0.0
      %2338 = vmatprep.subr.mxu0 0.0
      %2339 = vmatpush1.msra.mxu0 0.0
      %2340 = vmatprep.subr.mxu0 0.0
      %2341 = vmatpush1.msra.mxu0 0.0
      %2342 = vmatprep.subr.mxu0 0.0
      %2343 = vmatpush1.msra.mxu0 0.0
      %2344 = vmatprep.subr.mxu0 0.0
      %2345 = vmatpush1.msra.mxu0 0.0
      %2346 = vmatprep.subr.mxu0 0.0
      %2347 = vmatpush1.msra.mxu0 0.0
      %2348 = vmatprep.subr.mxu0 0.0
      %2349 = vmatpush1.msra.mxu0 0.0
      %2350 = vmatprep.subr.mxu0 0.0
      %2351 = vmatpush1.msra.mxu0 0.0
      %2352 = vmatprep.subr.mxu0 0.0
      %2353 = vmatpush1.msra.mxu0 0.0
      %2354 = vmatprep.mubr.f32.mxu0 0.0
      %2355 = vmatmul.mubr.f32.gmra.mrb[0].mxu0 %v2217
      %v2356 = vpop.f32.mrb[0].mxu0
      %v2357 = vadd.f32 0.0, %v2356
      %v2358 = vpop.f32.mrb[0].mxu0
      %v2359 = vadd.f32 0.0, %v2358
      %2360 = vdwg.mxu0
      %v2361 = vmul.f32 %v2286, %v659
      %v2362 = vmul.f32 %v2288, %v663
      %v2363 = vmul.f32 %v2357, %v667
      %v2364 = vmul.f32 %v2359, %v671
      %v2365 = vadd.f32 %v2200, %v2361
      %v2366 = vadd.f32 %v2201, %v2362
      %v2367 = vadd.f32 %v2202, %v2363
      %v2368 = vadd.f32 %v2203, %v2364
      %2369 = vrot.lane.b32.xlu0 %v2025, 15
      %v2370 = vpop.permute.xlu0 %2369
      %2371 = vrot.lane.b32.xlu0 %v2026, 15
      %v2372 = vpop.permute.xlu0 %2371
      %2373 = vrot.lane.b32.xlu0 %v2027, 15
      %v2374 = vpop.permute.xlu0 %2373
      %2375 = vrot.lane.b32.xlu0 %v2028, 15
      %v2376 = vpop.permute.xlu0 %2375
      %v2377 = vsel %vm688, %v2374, %v2376
      %v2378 = vsel %vm688, %v2372, %v2374
      %v2379 = vsel %vm688, %v2370, %v2372
      %v2380 = vsel %vm688, %v2376, %v2370
      %v2382 = vsel %vm2050, %v2031, 0
      %2384 = vmatprep.subr.mxu0 %v2379
      %2385 = vmatpush1.msra.mxu0 %v2380
      %2386 = vmatprep.subr.mxu0 0.0
      %2387 = vmatpush1.msra.mxu0 0.0
      %2388 = vmatprep.subr.mxu0 0.0
      %2389 = vmatpush1.msra.mxu0 0.0
      %2390 = vmatprep.subr.mxu0 0.0
      %2391 = vmatpush1.msra.mxu0 0.0
      %2392 = vmatprep.subr.mxu0 0.0
      %2393 = vmatpush1.msra.mxu0 0.0
      %2394 = vmatprep.subr.mxu0 0.0
      %2395 = vmatpush1.msra.mxu0 0.0
      %2396 = vmatprep.subr.mxu0 0.0
      %2397 = vmatpush1.msra.mxu0 0.0
      %2398 = vmatprep.subr.mxu0 0.0
      %2399 = vmatpush1.msra.mxu0 0.0
      %2400 = vmatprep.subr.mxu0 0.0
      %2401 = vmatpush1.msra.mxu0 0.0
      %2402 = vmatprep.subr.mxu0 0.0
      %2403 = vmatpush1.msra.mxu0 0.0
      %2404 = vmatprep.subr.mxu0 0.0
      %2405 = vmatpush1.msra.mxu0 0.0
      %2406 = vmatprep.subr.mxu0 0.0
      %2407 = vmatpush1.msra.mxu0 0.0
      %2408 = vmatprep.subr.mxu0 0.0
      %2409 = vmatpush1.msra.mxu0 0.0
      %2410 = vmatprep.subr.mxu0 0.0
      %2411 = vmatpush1.msra.mxu0 0.0
      %2412 = vmatprep.subr.mxu0 0.0
      %2413 = vmatpush1.msra.mxu0 0.0
      %2414 = vmatprep.subr.mxu0 0.0
      %2415 = vmatpush1.msra.mxu0 0.0
      %2416 = vmatprep.subr.mxu0 0.0
      %2417 = vmatpush1.msra.mxu0 0.0
      %2418 = vmatprep.subr.mxu0 0.0
      %2419 = vmatpush1.msra.mxu0 0.0
      %2420 = vmatprep.subr.mxu0 0.0
      %2421 = vmatpush1.msra.mxu0 0.0
      %2422 = vmatprep.subr.mxu0 0.0
      %2423 = vmatpush1.msra.mxu0 0.0
      %2424 = vmatprep.subr.mxu0 0.0
      %2425 = vmatpush1.msra.mxu0 0.0
      %2426 = vmatprep.subr.mxu0 0.0
      %2427 = vmatpush1.msra.mxu0 0.0
      %2428 = vmatprep.subr.mxu0 0.0
      %2429 = vmatpush1.msra.mxu0 0.0
      %2430 = vmatprep.subr.mxu0 0.0
      %2431 = vmatpush1.msra.mxu0 0.0
      %2432 = vmatprep.subr.mxu0 0.0
      %2433 = vmatpush1.msra.mxu0 0.0
      %2434 = vmatprep.subr.mxu0 0.0
      %2435 = vmatpush1.msra.mxu0 0.0
      %2436 = vmatprep.subr.mxu0 0.0
      %2437 = vmatpush1.msra.mxu0 0.0
      %2438 = vmatprep.subr.mxu0 0.0
      %2439 = vmatpush1.msra.mxu0 0.0
      %2440 = vmatprep.subr.mxu0 0.0
      %2441 = vmatpush1.msra.mxu0 0.0
      %2442 = vmatprep.subr.mxu0 0.0
      %2443 = vmatpush1.msra.mxu0 0.0
      %2444 = vmatprep.subr.mxu0 0.0
      %2445 = vmatpush1.msra.mxu0 0.0
      %2446 = vmatprep.subr.mxu0 0.0
      %2447 = vmatpush1.msra.mxu0 0.0
      %2448 = vmatprep.mubr.f32.mxu0 0.0
      %2449 = vmatmul.mubr.f32.gmra.mrb[0].mxu0 %v2382
      %v2450 = vpop.f32.mrb[0].mxu0
      %v2451 = vadd.f32 0.0, %v2450
      %v2452 = vpop.f32.mrb[0].mxu0
      %v2453 = vadd.f32 0.0, %v2452
      %2454 = vdwg.mxu0
      %2455 = vmatprep.subr.mxu0 %v2377
      %2456 = vmatpush1.msra.mxu0 %v2378
      %2457 = vmatprep.subr.mxu0 0.0
      %2458 = vmatpush1.msra.mxu0 0.0
      %2459 = vmatprep.subr.mxu0 0.0
      %2460 = vmatpush1.msra.mxu0 0.0
      %2461 = vmatprep.subr.mxu0 0.0
      %2462 = vmatpush1.msra.mxu0 0.0
      %2463 = vmatprep.subr.mxu0 0.0
      %2464 = vmatpush1.msra.mxu0 0.0
      %2465 = vmatprep.subr.mxu0 0.0
      %2466 = vmatpush1.msra.mxu0 0.0
      %2467 = vmatprep.subr.mxu0 0.0
      %2468 = vmatpush1.msra.mxu0 0.0
      %2469 = vmatprep.subr.mxu0 0.0
      %2470 = vmatpush1.msra.mxu0 0.0
      %2471 = vmatprep.subr.mxu0 0.0
      %2472 = vmatpush1.msra.mxu0 0.0
      %2473 = vmatprep.subr.mxu0 0.0
      %2474 = vmatpush1.msra.mxu0 0.0
      %2475 = vmatprep.subr.mxu0 0.0
      %2476 = vmatpush1.msra.mxu0 0.0
      %2477 = vmatprep.subr.mxu0 0.0
      %2478 = vmatpush1.msra.mxu0 0.0
      %2479 = vmatprep.subr.mxu0 0.0
      %2480 = vmatpush1.msra.mxu0 0.0
      %2481 = vmatprep.subr.mxu0 0.0
      %2482 = vmatpush1.msra.mxu0 0.0
      %2483 = vmatprep.subr.mxu0 0.0
      %2484 = vmatpush1.msra.mxu0 0.0
      %2485 = vmatprep.subr.mxu0 0.0
      %2486 = vmatpush1.msra.mxu0 0.0
      %2487 = vmatprep.subr.mxu0 0.0
      %2488 = vmatpush1.msra.mxu0 0.0
      %2489 = vmatprep.subr.mxu0 0.0
      %2490 = vmatpush1.msra.mxu0 0.0
      %2491 = vmatprep.subr.mxu0 0.0
      %2492 = vmatpush1.msra.mxu0 0.0
      %2493 = vmatprep.subr.mxu0 0.0
      %2494 = vmatpush1.msra.mxu0 0.0
      %2495 = vmatprep.subr.mxu0 0.0
      %2496 = vmatpush1.msra.mxu0 0.0
      %2497 = vmatprep.subr.mxu0 0.0
      %2498 = vmatpush1.msra.mxu0 0.0
      %2499 = vmatprep.subr.mxu0 0.0
      %2500 = vmatpush1.msra.mxu0 0.0
      %2501 = vmatprep.subr.mxu0 0.0
      %2502 = vmatpush1.msra.mxu0 0.0
      %2503 = vmatprep.subr.mxu0 0.0
      %2504 = vmatpush1.msra.mxu0 0.0
      %2505 = vmatprep.subr.mxu0 0.0
      %2506 = vmatpush1.msra.mxu0 0.0
      %2507 = vmatprep.subr.mxu0 0.0
      %2508 = vmatpush1.msra.mxu0 0.0
      %2509 = vmatprep.subr.mxu0 0.0
      %2510 = vmatpush1.msra.mxu0 0.0
      %2511 = vmatprep.subr.mxu0 0.0
      %2512 = vmatpush1.msra.mxu0 0.0
      %2513 = vmatprep.subr.mxu0 0.0
      %2514 = vmatpush1.msra.mxu0 0.0
      %2515 = vmatprep.subr.mxu0 0.0
      %2516 = vmatpush1.msra.mxu0 0.0
      %2517 = vmatprep.subr.mxu0 0.0
      %2518 = vmatpush1.msra.mxu0 0.0
      %2519 = vmatprep.mubr.f32.mxu0 0.0
      %2520 = vmatmul.mubr.f32.gmra.mrb[0].mxu0 %v2382
      %v2521 = vpop.f32.mrb[0].mxu0
      %v2522 = vadd.f32 0.0, %v2521
      %v2523 = vpop.f32.mrb[0].mxu0
      %v2524 = vadd.f32 0.0, %v2523
      %2525 = vdwg.mxu0
      %v2526 = vmul.f32 %v2451, %v853
      %v2527 = vmul.f32 %v2453, %v857
      %v2528 = vmul.f32 %v2522, %v861
      %v2529 = vmul.f32 %v2524, %v865
      %v2530 = vadd.f32 %v2365, %v2526
      %v2531 = vadd.f32 %v2366, %v2527
      %v2532 = vadd.f32 %v2367, %v2528
      %v2533 = vadd.f32 %v2368, %v2529
      %2534 = vrot.lane.b32.xlu0 %v2025, 1
      %v2535 = vpop.permute.xlu0 %2534
      %2536 = vrot.lane.b32.xlu0 %v2026, 1
      %v2537 = vpop.permute.xlu0 %2536
      %2538 = vrot.lane.b32.xlu0 %v2027, 1
      %v2539 = vpop.permute.xlu0 %2538
      %2540 = vrot.lane.b32.xlu0 %v2028, 1
      %v2541 = vpop.permute.xlu0 %2540
      %v2542 = vsel %vm882, %v2539, %v2541
      %v2543 = vsel %vm882, %v2537, %v2539
      %v2544 = vsel %vm882, %v2535, %v2537
      %v2545 = vsel %vm882, %v2541, %v2535
      %v2547 = vsel %vm2050, %v2032, 0
      %2549 = vmatprep.subr.mxu0 %v2544
      %2550 = vmatpush1.msra.mxu0 %v2545
      %2551 = vmatprep.subr.mxu0 0.0
      %2552 = vmatpush1.msra.mxu0 0.0
      %2553 = vmatprep.subr.mxu0 0.0
      %2554 = vmatpush1.msra.mxu0 0.0
      %2555 = vmatprep.subr.mxu0 0.0
      %2556 = vmatpush1.msra.mxu0 0.0
      %2557 = vmatprep.subr.mxu0 0.0
      %2558 = vmatpush1.msra.mxu0 0.0
      %2559 = vmatprep.subr.mxu0 0.0
      %2560 = vmatpush1.msra.mxu0 0.0
      %2561 = vmatprep.subr.mxu0 0.0
      %2562 = vmatpush1.msra.mxu0 0.0
      %2563 = vmatprep.subr.mxu0 0.0
      %2564 = vmatpush1.msra.mxu0 0.0
      %2565 = vmatprep.subr.mxu0 0.0
      %2566 = vmatpush1.msra.mxu0 0.0
      %2567 = vmatprep.subr.mxu0 0.0
      %2568 = vmatpush1.msra.mxu0 0.0
      %2569 = vmatprep.subr.mxu0 0.0
      %2570 = vmatpush1.msra.mxu0 0.0
      %2571 = vmatprep.subr.mxu0 0.0
      %2572 = vmatpush1.msra.mxu0 0.0
      %2573 = vmatprep.subr.mxu0 0.0
      %2574 = vmatpush1.msra.mxu0 0.0
      %2575 = vmatprep.subr.mxu0 0.0
      %2576 = vmatpush1.msra.mxu0 0.0
      %2577 = vmatprep.subr.mxu0 0.0
      %2578 = vmatpush1.msra.mxu0 0.0
      %2579 = vmatprep.subr.mxu0 0.0
      %2580 = vmatpush1.msra.mxu0 0.0
      %2581 = vmatprep.subr.mxu0 0.0
      %2582 = vmatpush1.msra.mxu0 0.0
      %2583 = vmatprep.subr.mxu0 0.0
      %2584 = vmatpush1.msra.mxu0 0.0
      %2585 = vmatprep.subr.mxu0 0.0
      %2586 = vmatpush1.msra.mxu0 0.0
      %2587 = vmatprep.subr.mxu0 0.0
      %2588 = vmatpush1.msra.mxu0 0.0
      %2589 = vmatprep.subr.mxu0 0.0
      %2590 = vmatpush1.msra.mxu0 0.0
      %2591 = vmatprep.subr.mxu0 0.0
      %2592 = vmatpush1.msra.mxu0 0.0
      %2593 = vmatprep.subr.mxu0 0.0
      %2594 = vmatpush1.msra.mxu0 0.0
      %2595 = vmatprep.subr.mxu0 0.0
      %2596 = vmatpush1.msra.mxu0 0.0
      %2597 = vmatprep.subr.mxu0 0.0
      %2598 = vmatpush1.msra.mxu0 0.0
      %2599 = vmatprep.subr.mxu0 0.0
      %2600 = vmatpush1.msra.mxu0 0.0
      %2601 = vmatprep.subr.mxu0 0.0
      %2602 = vmatpush1.msra.mxu0 0.0
      %2603 = vmatprep.subr.mxu0 0.0
      %2604 = vmatpush1.msra.mxu0 0.0
      %2605 = vmatprep.subr.mxu0 0.0
      %2606 = vmatpush1.msra.mxu0 0.0
      %2607 = vmatprep.subr.mxu0 0.0
      %2608 = vmatpush1.msra.mxu0 0.0
      %2609 = vmatprep.subr.mxu0 0.0
      %2610 = vmatpush1.msra.mxu0 0.0
      %2611 = vmatprep.subr.mxu0 0.0
      %2612 = vmatpush1.msra.mxu0 0.0
      %2613 = vmatprep.mubr.f32.mxu0 0.0
      %2614 = vmatmul.mubr.f32.gmra.mrb[0].mxu0 %v2547
      %v2615 = vpop.f32.mrb[0].mxu0
      %v2616 = vadd.f32 0.0, %v2615
      %v2617 = vpop.f32.mrb[0].mxu0
      %v2618 = vadd.f32 0.0, %v2617
      %2619 = vdwg.mxu0
      %2620 = vmatprep.subr.mxu0 %v2542
      %2621 = vmatpush1.msra.mxu0 %v2543
      %2622 = vmatprep.subr.mxu0 0.0
      %2623 = vmatpush1.msra.mxu0 0.0
      %2624 = vmatprep.subr.mxu0 0.0
      %2625 = vmatpush1.msra.mxu0 0.0
      %2626 = vmatprep.subr.mxu0 0.0
      %2627 = vmatpush1.msra.mxu0 0.0
      %2628 = vmatprep.subr.mxu0 0.0
      %2629 = vmatpush1.msra.mxu0 0.0
      %2630 = vmatprep.subr.mxu0 0.0
      %2631 = vmatpush1.msra.mxu0 0.0
      %2632 = vmatprep.subr.mxu0 0.0
      %2633 = vmatpush1.msra.mxu0 0.0
      %2634 = vmatprep.subr.mxu0 0.0
      %2635 = vmatpush1.msra.mxu0 0.0
      %2636 = vmatprep.subr.mxu0 0.0
      %2637 = vmatpush1.msra.mxu0 0.0
      %2638 = vmatprep.subr.mxu0 0.0
      %2639 = vmatpush1.msra.mxu0 0.0
      %2640 = vmatprep.subr.mxu0 0.0
      %2641 = vmatpush1.msra.mxu0 0.0
      %2642 = vmatprep.subr.mxu0 0.0
      %2643 = vmatpush1.msra.mxu0 0.0
      %2644 = vmatprep.subr.mxu0 0.0
      %2645 = vmatpush1.msra.mxu0 0.0
      %2646 = vmatprep.subr.mxu0 0.0
      %2647 = vmatpush1.msra.mxu0 0.0
      %2648 = vmatprep.subr.mxu0 0.0
      %2649 = vmatpush1.msra.mxu0 0.0
      %2650 = vmatprep.subr.mxu0 0.0
      %2651 = vmatpush1.msra.mxu0 0.0
      %2652 = vmatprep.subr.mxu0 0.0
      %2653 = vmatpush1.msra.mxu0 0.0
      %2654 = vmatprep.subr.mxu0 0.0
      %2655 = vmatpush1.msra.mxu0 0.0
      %2656 = vmatprep.subr.mxu0 0.0
      %2657 = vmatpush1.msra.mxu0 0.0
      %2658 = vmatprep.subr.mxu0 0.0
      %2659 = vmatpush1.msra.mxu0 0.0
      %2660 = vmatprep.subr.mxu0 0.0
      %2661 = vmatpush1.msra.mxu0 0.0
      %2662 = vmatprep.subr.mxu0 0.0
      %2663 = vmatpush1.msra.mxu0 0.0
      %2664 = vmatprep.subr.mxu0 0.0
      %2665 = vmatpush1.msra.mxu0 0.0
      %2666 = vmatprep.subr.mxu0 0.0
      %2667 = vmatpush1.msra.mxu0 0.0
      %2668 = vmatprep.subr.mxu0 0.0
      %2669 = vmatpush1.msra.mxu0 0.0
      %2670 = vmatprep.subr.mxu0 0.0
      %2671 = vmatpush1.msra.mxu0 0.0
      %2672 = vmatprep.subr.mxu0 0.0
      %2673 = vmatpush1.msra.mxu0 0.0
      %2674 = vmatprep.subr.mxu0 0.0
      %2675 = vmatpush1.msra.mxu0 0.0
      %2676 = vmatprep.subr.mxu0 0.0
      %2677 = vmatpush1.msra.mxu0 0.0
      %2678 = vmatprep.subr.mxu0 0.0
      %2679 = vmatpush1.msra.mxu0 0.0
      %2680 = vmatprep.subr.mxu0 0.0
      %2681 = vmatpush1.msra.mxu0 0.0
      %2682 = vmatprep.subr.mxu0 0.0
      %2683 = vmatpush1.msra.mxu0 0.0
      %2684 = vmatprep.mubr.f32.mxu0 0.0
      %2685 = vmatmul.mubr.f32.gmra.mrb[0].mxu0 %v2547
      %v2686 = vpop.f32.mrb[0].mxu0
      %v2687 = vadd.f32 0.0, %v2686
      %v2688 = vpop.f32.mrb[0].mxu0
      %v2689 = vadd.f32 0.0, %v2688
      %2690 = vdwg.mxu0
      %v2691 = vmul.f32 %v2616, %v1047
      %v2692 = vmul.f32 %v2618, %v1051
      %v2693 = vmul.f32 %v2687, %v1055
      %v2694 = vmul.f32 %v2689, %v1059
      %v2695 = vadd.f32 %v2530, %v2691
      %v2696 = vadd.f32 %v2531, %v2692
      %v2697 = vadd.f32 %v2532, %v2693
      %v2698 = vadd.f32 %v2533, %v2694
      %v2700 = vsel %vm2050, %v2033, 0
      %2702 = vmatprep.subr.mxu0 %v2026
      %2703 = vmatpush1.msra.mxu0 %v2025
      %2704 = vmatprep.subr.mxu0 0.0
      %2705 = vmatpush1.msra.mxu0 0.0
      %2706 = vmatprep.subr.mxu0 0.0
      %2707 = vmatpush1.msra.mxu0 0.0
      %2708 = vmatprep.subr.mxu0 0.0
      %2709 = vmatpush1.msra.mxu0 0.0
      %2710 = vmatprep.subr.mxu0 0.0
      %2711 = vmatpush1.msra.mxu0 0.0
      %2712 = vmatprep.subr.mxu0 0.0
      %2713 = vmatpush1.msra.mxu0 0.0
      %2714 = vmatprep.subr.mxu0 0.0
      %2715 = vmatpush1.msra.mxu0 0.0
      %2716 = vmatprep.subr.mxu0 0.0
      %2717 = vmatpush1.msra.mxu0 0.0
      %2718 = vmatprep.subr.mxu0 0.0
      %2719 = vmatpush1.msra.mxu0 0.0
      %2720 = vmatprep.subr.mxu0 0.0
      %2721 = vmatpush1.msra.mxu0 0.0
      %2722 = vmatprep.subr.mxu0 0.0
      %2723 = vmatpush1.msra.mxu0 0.0
      %2724 = vmatprep.subr.mxu0 0.0
      %2725 = vmatpush1.msra.mxu0 0.0
      %2726 = vmatprep.subr.mxu0 0.0
      %2727 = vmatpush1.msra.mxu0 0.0
      %2728 = vmatprep.subr.mxu0 0.0
      %2729 = vmatpush1.msra.mxu0 0.0
      %2730 = vmatprep.subr.mxu0 0.0
      %2731 = vmatpush1.msra.mxu0 0.0
      %2732 = vmatprep.subr.mxu0 0.0
      %2733 = vmatpush1.msra.mxu0 0.0
      %2734 = vmatprep.subr.mxu0 0.0
      %2735 = vmatpush1.msra.mxu0 0.0
      %2736 = vmatprep.subr.mxu0 0.0
      %2737 = vmatpush1.msra.mxu0 0.0
      %2738 = vmatprep.subr.mxu0 0.0
      %2739 = vmatpush1.msra.mxu0 0.0
      %2740 = vmatprep.subr.mxu0 0.0
      %2741 = vmatpush1.msra.mxu0 0.0
      %2742 = vmatprep.subr.mxu0 0.0
      %2743 = vmatpush1.msra.mxu0 0.0
      %2744 = vmatprep.subr.mxu0 0.0
      %2745 = vmatpush1.msra.mxu0 0.0
      %2746 = vmatprep.subr.mxu0 0.0
      %2747 = vmatpush1.msra.mxu0 0.0
      %2748 = vmatprep.subr.mxu0 0.0
      %2749 = vmatpush1.msra.mxu0 0.0
      %2750 = vmatprep.subr.mxu0 0.0
      %2751 = vmatpush1.msra.mxu0 0.0
      %2752 = vmatprep.subr.mxu0 0.0
      %2753 = vmatpush1.msra.mxu0 0.0
      %2754 = vmatprep.subr.mxu0 0.0
      %2755 = vmatpush1.msra.mxu0 0.0
      %2756 = vmatprep.subr.mxu0 0.0
      %2757 = vmatpush1.msra.mxu0 0.0
      %2758 = vmatprep.subr.mxu0 0.0
      %2759 = vmatpush1.msra.mxu0 0.0
      %2760 = vmatprep.subr.mxu0 0.0
      %2761 = vmatpush1.msra.mxu0 0.0
      %2762 = vmatprep.subr.mxu0 0.0
      %2763 = vmatpush1.msra.mxu0 0.0
      %2764 = vmatprep.subr.mxu0 0.0
      %2765 = vmatpush1.msra.mxu0 0.0
      %2766 = vmatprep.mubr.f32.mxu0 0.0
      %2767 = vmatmul.mubr.f32.gmra.mrb[0].mxu0 %v2700
      %v2768 = vpop.f32.mrb[0].mxu0
      %v2769 = vadd.f32 0.0, %v2768
      %v2770 = vpop.f32.mrb[0].mxu0
      %v2771 = vadd.f32 0.0, %v2770
      %2772 = vdwg.mxu0
      %2773 = vmatprep.subr.mxu0 %v2028
      %2774 = vmatpush1.msra.mxu0 %v2027
      %2775 = vmatprep.subr.mxu0 0.0
      %2776 = vmatpush1.msra.mxu0 0.0
      %2777 = vmatprep.subr.mxu0 0.0
      %2778 = vmatpush1.msra.mxu0 0.0
      %2779 = vmatprep.subr.mxu0 0.0
      %2780 = vmatpush1.msra.mxu0 0.0
      %2781 = vmatprep.subr.mxu0 0.0
      %2782 = vmatpush1.msra.mxu0 0.0
      %2783 = vmatprep.subr.mxu0 0.0
      %2784 = vmatpush1.msra.mxu0 0.0
      %2785 = vmatprep.subr.mxu0 0.0
      %2786 = vmatpush1.msra.mxu0 0.0
      %2787 = vmatprep.subr.mxu0 0.0
      %2788 = vmatpush1.msra.mxu0 0.0
      %2789 = vmatprep.subr.mxu0 0.0
      %2790 = vmatpush1.msra.mxu0 0.0
      %2791 = vmatprep.subr.mxu0 0.0
      %2792 = vmatpush1.msra.mxu0 0.0
      %2793 = vmatprep.subr.mxu0 0.0
      %2794 = vmatpush1.msra.mxu0 0.0
      %2795 = vmatprep.subr.mxu0 0.0
      %2796 = vmatpush1.msra.mxu0 0.0
      %2797 = vmatprep.subr.mxu0 0.0
      %2798 = vmatpush1.msra.mxu0 0.0
      %2799 = vmatprep.subr.mxu0 0.0
      %2800 = vmatpush1.msra.mxu0 0.0
      %2801 = vmatprep.subr.mxu0 0.0
      %2802 = vmatpush1.msra.mxu0 0.0
      %2803 = vmatprep.subr.mxu0 0.0
      %2804 = vmatpush1.msra.mxu0 0.0
      %2805 = vmatprep.subr.mxu0 0.0
      %2806 = vmatpush1.msra.mxu0 0.0
      %2807 = vmatprep.subr.mxu0 0.0
      %2808 = vmatpush1.msra.mxu0 0.0
      %2809 = vmatprep.subr.mxu0 0.0
      %2810 = vmatpush1.msra.mxu0 0.0
      %2811 = vmatprep.subr.mxu0 0.0
      %2812 = vmatpush1.msra.mxu0 0.0
      %2813 = vmatprep.subr.mxu0 0.0
      %2814 = vmatpush1.msra.mxu0 0.0
      %2815 = vmatprep.subr.mxu0 0.0
      %2816 = vmatpush1.msra.mxu0 0.0
      %2817 = vmatprep.subr.mxu0 0.0
      %2818 = vmatpush1.msra.mxu0 0.0
      %2819 = vmatprep.subr.mxu0 0.0
      %2820 = vmatpush1.msra.mxu0 0.0
      %2821 = vmatprep.subr.mxu0 0.0
      %2822 = vmatpush1.msra.mxu0 0.0
      %2823 = vmatprep.subr.mxu0 0.0
      %2824 = vmatpush1.msra.mxu0 0.0
      %2825 = vmatprep.subr.mxu0 0.0
      %2826 = vmatpush1.msra.mxu0 0.0
      %2827 = vmatprep.subr.mxu0 0.0
      %2828 = vmatpush1.msra.mxu0 0.0
      %2829 = vmatprep.subr.mxu0 0.0
      %2830 = vmatpush1.msra.mxu0 0.0
      %2831 = vmatprep.subr.mxu0 0.0
      %2832 = vmatpush1.msra.mxu0 0.0
      %2833 = vmatprep.subr.mxu0 0.0
      %2834 = vmatpush1.msra.mxu0 0.0
      %2835 = vmatprep.subr.mxu0 0.0
      %2836 = vmatpush1.msra.mxu0 0.0
      %2837 = vmatprep.mubr.f32.mxu0 0.0
      %2838 = vmatmul.mubr.f32.gmra.mrb[0].mxu0 %v2700
      %v2839 = vpop.f32.mrb[0].mxu0
      %v2840 = vadd.f32 0.0, %v2839
      %v2841 = vpop.f32.mrb[0].mxu0
      %v2842 = vadd.f32 0.0, %v2841
      %2843 = vdwg.mxu0
      %v2844 = vadd.f32 %v2695, %v2769
      %v2845 = vadd.f32 %v2696, %v2771
      %v2846 = vadd.f32 %v2697, %v2840
      %v2847 = vadd.f32 %v2698, %v2842
      %2848 = vrot.lane.b32.xlu0 %v2025, 127
      %v2849 = vpop.permute.xlu0 %2848
      %2850 = vrot.lane.b32.xlu0 %v2026, 127
      %v2851 = vpop.permute.xlu0 %2850
      %2852 = vrot.lane.b32.xlu0 %v2027, 127
      %v2853 = vpop.permute.xlu0 %2852
      %2854 = vrot.lane.b32.xlu0 %v2028, 127
      %v2855 = vpop.permute.xlu0 %2854
      %v2856 = vsel %vm1237, %v2853, %v2855
      %v2857 = vsel %vm1237, %v2851, %v2853
      %v2858 = vsel %vm1237, %v2849, %v2851
      %v2859 = vsel %vm1237, %v2855, %v2849
      %v2861 = vsel %vm2050, %v2034, 0
      %2863 = vmatprep.subr.mxu0 %v2857
      %2864 = vmatpush1.msra.mxu0 %v2858
      %2865 = vmatprep.subr.mxu0 0.0
      %2866 = vmatpush1.msra.mxu0 0.0
      %2867 = vmatprep.subr.mxu0 0.0
      %2868 = vmatpush1.msra.mxu0 0.0
      %2869 = vmatprep.subr.mxu0 0.0
      %2870 = vmatpush1.msra.mxu0 0.0
      %2871 = vmatprep.subr.mxu0 0.0
      %2872 = vmatpush1.msra.mxu0 0.0
      %2873 = vmatprep.subr.mxu0 0.0
      %2874 = vmatpush1.msra.mxu0 0.0
      %2875 = vmatprep.subr.mxu0 0.0
      %2876 = vmatpush1.msra.mxu0 0.0
      %2877 = vmatprep.subr.mxu0 0.0
      %2878 = vmatpush1.msra.mxu0 0.0
      %2879 = vmatprep.subr.mxu0 0.0
      %2880 = vmatpush1.msra.mxu0 0.0
      %2881 = vmatprep.subr.mxu0 0.0
      %2882 = vmatpush1.msra.mxu0 0.0
      %2883 = vmatprep.subr.mxu0 0.0
      %2884 = vmatpush1.msra.mxu0 0.0
      %2885 = vmatprep.subr.mxu0 0.0
      %2886 = vmatpush1.msra.mxu0 0.0
      %2887 = vmatprep.subr.mxu0 0.0
      %2888 = vmatpush1.msra.mxu0 0.0
      %2889 = vmatprep.subr.mxu0 0.0
      %2890 = vmatpush1.msra.mxu0 0.0
      %2891 = vmatprep.subr.mxu0 0.0
      %2892 = vmatpush1.msra.mxu0 0.0
      %2893 = vmatprep.subr.mxu0 0.0
      %2894 = vmatpush1.msra.mxu0 0.0
      %2895 = vmatprep.subr.mxu0 0.0
      %2896 = vmatpush1.msra.mxu0 0.0
      %2897 = vmatprep.subr.mxu0 0.0
      %2898 = vmatpush1.msra.mxu0 0.0
      %2899 = vmatprep.subr.mxu0 0.0
      %2900 = vmatpush1.msra.mxu0 0.0
      %2901 = vmatprep.subr.mxu0 0.0
      %2902 = vmatpush1.msra.mxu0 0.0
      %2903 = vmatprep.subr.mxu0 0.0
      %2904 = vmatpush1.msra.mxu0 0.0
      %2905 = vmatprep.subr.mxu0 0.0
      %2906 = vmatpush1.msra.mxu0 0.0
      %2907 = vmatprep.subr.mxu0 0.0
      %2908 = vmatpush1.msra.mxu0 0.0
      %2909 = vmatprep.subr.mxu0 0.0
      %2910 = vmatpush1.msra.mxu0 0.0
      %2911 = vmatprep.subr.mxu0 0.0
      %2912 = vmatpush1.msra.mxu0 0.0
      %2913 = vmatprep.subr.mxu0 0.0
      %2914 = vmatpush1.msra.mxu0 0.0
      %2915 = vmatprep.subr.mxu0 0.0
      %2916 = vmatpush1.msra.mxu0 0.0
      %2917 = vmatprep.subr.mxu0 0.0
      %2918 = vmatpush1.msra.mxu0 0.0
      %2919 = vmatprep.subr.mxu0 0.0
      %2920 = vmatpush1.msra.mxu0 0.0
      %2921 = vmatprep.subr.mxu0 0.0
      %2922 = vmatpush1.msra.mxu0 0.0
      %2923 = vmatprep.subr.mxu0 0.0
      %2924 = vmatpush1.msra.mxu0 0.0
      %2925 = vmatprep.subr.mxu0 0.0
      %2926 = vmatpush1.msra.mxu0 0.0
      %2927 = vmatprep.mubr.f32.mxu0 0.0
      %2928 = vmatmul.mubr.f32.gmra.mrb[0].mxu0 %v2861
      %v2929 = vpop.f32.mrb[0].mxu0
      %v2930 = vadd.f32 0.0, %v2929
      %v2931 = vpop.f32.mrb[0].mxu0
      %v2932 = vadd.f32 0.0, %v2931
      %2933 = vdwg.mxu0
      %2934 = vmatprep.subr.mxu0 %v2859
      %2935 = vmatpush1.msra.mxu0 %v2856
      %2936 = vmatprep.subr.mxu0 0.0
      %2937 = vmatpush1.msra.mxu0 0.0
      %2938 = vmatprep.subr.mxu0 0.0
      %2939 = vmatpush1.msra.mxu0 0.0
      %2940 = vmatprep.subr.mxu0 0.0
      %2941 = vmatpush1.msra.mxu0 0.0
      %2942 = vmatprep.subr.mxu0 0.0
      %2943 = vmatpush1.msra.mxu0 0.0
      %2944 = vmatprep.subr.mxu0 0.0
      %2945 = vmatpush1.msra.mxu0 0.0
      %2946 = vmatprep.subr.mxu0 0.0
      %2947 = vmatpush1.msra.mxu0 0.0
      %2948 = vmatprep.subr.mxu0 0.0
      %2949 = vmatpush1.msra.mxu0 0.0
      %2950 = vmatprep.subr.mxu0 0.0
      %2951 = vmatpush1.msra.mxu0 0.0
      %2952 = vmatprep.subr.mxu0 0.0
      %2953 = vmatpush1.msra.mxu0 0.0
      %2954 = vmatprep.subr.mxu0 0.0
      %2955 = vmatpush1.msra.mxu0 0.0
      %2956 = vmatprep.subr.mxu0 0.0
      %2957 = vmatpush1.msra.mxu0 0.0
      %2958 = vmatprep.subr.mxu0 0.0
      %2959 = vmatpush1.msra.mxu0 0.0
      %2960 = vmatprep.subr.mxu0 0.0
      %2961 = vmatpush1.msra.mxu0 0.0
      %2962 = vmatprep.subr.mxu0 0.0
      %2963 = vmatpush1.msra.mxu0 0.0
      %2964 = vmatprep.subr.mxu0 0.0
      %2965 = vmatpush1.msra.mxu0 0.0
      %2966 = vmatprep.subr.mxu0 0.0
      %2967 = vmatpush1.msra.mxu0 0.0
      %2968 = vmatprep.subr.mxu0 0.0
      %2969 = vmatpush1.msra.mxu0 0.0
      %2970 = vmatprep.subr.mxu0 0.0
      %2971 = vmatpush1.msra.mxu0 0.0
      %2972 = vmatprep.subr.mxu0 0.0
      %2973 = vmatpush1.msra.mxu0 0.0
      %2974 = vmatprep.subr.mxu0 0.0
      %2975 = vmatpush1.msra.mxu0 0.0
      %2976 = vmatprep.subr.mxu0 0.0
      %2977 = vmatpush1.msra.mxu0 0.0
      %2978 = vmatprep.subr.mxu0 0.0
      %2979 = vmatpush1.msra.mxu0 0.0
      %2980 = vmatprep.subr.mxu0 0.0
      %2981 = vmatpush1.msra.mxu0 0.0
      %2982 = vmatprep.subr.mxu0 0.0
      %2983 = vmatpush1.msra.mxu0 0.0
      %2984 = vmatprep.subr.mxu0 0.0
      %2985 = vmatpush1.msra.mxu0 0.0
      %2986 = vmatprep.subr.mxu0 0.0
      %2987 = vmatpush1.msra.mxu0 0.0
      %2988 = vmatprep.subr.mxu0 0.0
      %2989 = vmatpush1.msra.mxu0 0.0
      %2990 = vmatprep.subr.mxu0 0.0
      %2991 = vmatpush1.msra.mxu0 0.0
      %2992 = vmatprep.subr.mxu0 0.0
      %2993 = vmatpush1.msra.mxu0 0.0
      %2994 = vmatprep.subr.mxu0 0.0
      %2995 = vmatpush1.msra.mxu0 0.0
      %2996 = vmatprep.subr.mxu0 0.0
      %2997 = vmatpush1.msra.mxu0 0.0
      %2998 = vmatprep.mubr.f32.mxu0 0.0
      %2999 = vmatmul.mubr.f32.gmra.mrb[0].mxu0 %v2861
      %v3000 = vpop.f32.mrb[0].mxu0
      %v3001 = vadd.f32 0.0, %v3000
      %v3002 = vpop.f32.mrb[0].mxu0
      %v3003 = vadd.f32 0.0, %v3002
      %3004 = vdwg.mxu0
      %v3005 = vmul.f32 %v2930, %v1402
      %v3006 = vmul.f32 %v2932, %v1406
      %v3007 = vmul.f32 %v3001, %v1410
      %v3008 = vmul.f32 %v3003, %v1414
      %v3009 = vadd.f32 %v2844, %v3005
      %v3010 = vadd.f32 %v2845, %v3006
      %v3011 = vadd.f32 %v2846, %v3007
      %v3012 = vadd.f32 %v2847, %v3008
      %3013 = vrot.lane.b32.xlu0 %v2025, 113
      %v3014 = vpop.permute.xlu0 %3013
      %3015 = vrot.lane.b32.xlu0 %v2026, 113
      %v3016 = vpop.permute.xlu0 %3015
      %3017 = vrot.lane.b32.xlu0 %v2027, 113
      %v3018 = vpop.permute.xlu0 %3017
      %3019 = vrot.lane.b32.xlu0 %v2028, 113
      %v3020 = vpop.permute.xlu0 %3019
      %v3021 = vsel %vm1431, %v3018, %v3020
      %v3022 = vsel %vm1431, %v3016, %v3018
      %v3023 = vsel %vm1431, %v3014, %v3016
      %v3024 = vsel %vm1431, %v3020, %v3014
      %v3026 = vsel %vm2050, %v2035, 0
      %3028 = vmatprep.subr.mxu0 %v3022
      %3029 = vmatpush1.msra.mxu0 %v3023
      %3030 = vmatprep.subr.mxu0 0.0
      %3031 = vmatpush1.msra.mxu0 0.0
      %3032 = vmatprep.subr.mxu0 0.0
      %3033 = vmatpush1.msra.mxu0 0.0
      %3034 = vmatprep.subr.mxu0 0.0
      %3035 = vmatpush1.msra.mxu0 0.0
      %3036 = vmatprep.subr.mxu0 0.0
      %3037 = vmatpush1.msra.mxu0 0.0
      %3038 = vmatprep.subr.mxu0 0.0
      %3039 = vmatpush1.msra.mxu0 0.0
      %3040 = vmatprep.subr.mxu0 0.0
      %3041 = vmatpush1.msra.mxu0 0.0
      %3042 = vmatprep.subr.mxu0 0.0
      %3043 = vmatpush1.msra.mxu0 0.0
      %3044 = vmatprep.subr.mxu0 0.0
      %3045 = vmatpush1.msra.mxu0 0.0
      %3046 = vmatprep.subr.mxu0 0.0
      %3047 = vmatpush1.msra.mxu0 0.0
      %3048 = vmatprep.subr.mxu0 0.0
      %3049 = vmatpush1.msra.mxu0 0.0
      %3050 = vmatprep.subr.mxu0 0.0
      %3051 = vmatpush1.msra.mxu0 0.0
      %3052 = vmatprep.subr.mxu0 0.0
      %3053 = vmatpush1.msra.mxu0 0.0
      %3054 = vmatprep.subr.mxu0 0.0
      %3055 = vmatpush1.msra.mxu0 0.0
      %3056 = vmatprep.subr.mxu0 0.0
      %3057 = vmatpush1.msra.mxu0 0.0
      %3058 = vmatprep.subr.mxu0 0.0
      %3059 = vmatpush1.msra.mxu0 0.0
      %3060 = vmatprep.subr.mxu0 0.0
      %3061 = vmatpush1.msra.mxu0 0.0
      %3062 = vmatprep.subr.mxu0 0.0
      %3063 = vmatpush1.msra.mxu0 0.0
      %3064 = vmatprep.subr.mxu0 0.0
      %3065 = vmatpush1.msra.mxu0 0.0
      %3066 = vmatprep.subr.mxu0 0.0
      %3067 = vmatpush1.msra.mxu0 0.0
      %3068 = vmatprep.subr.mxu0 0.0
      %3069 = vmatpush1.msra.mxu0 0.0
      %3070 = vmatprep.subr.mxu0 0.0
      %3071 = vmatpush1.msra.mxu0 0.0
      %3072 = vmatprep.subr.mxu0 0.0
      %3073 = vmatpush1.msra.mxu0 0.0
      %3074 = vmatprep.subr.mxu0 0.0
      %3075 = vmatpush1.msra.mxu0 0.0
      %3076 = vmatprep.subr.mxu0 0.0
      %3077 = vmatpush1.msra.mxu0 0.0
      %3078 = vmatprep.subr.mxu0 0.0
      %3079 = vmatpush1.msra.mxu0 0.0
      %3080 = vmatprep.subr.mxu0 0.0
      %3081 = vmatpush1.msra.mxu0 0.0
      %3082 = vmatprep.subr.mxu0 0.0
      %3083 = vmatpush1.msra.mxu0 0.0
      %3084 = vmatprep.subr.mxu0 0.0
      %3085 = vmatpush1.msra.mxu0 0.0
      %3086 = vmatprep.subr.mxu0 0.0
      %3087 = vmatpush1.msra.mxu0 0.0
      %3088 = vmatprep.subr.mxu0 0.0
      %3089 = vmatpush1.msra.mxu0 0.0
      %3090 = vmatprep.subr.mxu0 0.0
      %3091 = vmatpush1.msra.mxu0 0.0
      %3092 = vmatprep.mubr.f32.mxu0 0.0
      %3093 = vmatmul.mubr.f32.gmra.mrb[0].mxu0 %v3026
      %v3094 = vpop.f32.mrb[0].mxu0
      %v3095 = vadd.f32 0.0, %v3094
      %v3096 = vpop.f32.mrb[0].mxu0
      %v3097 = vadd.f32 0.0, %v3096
      %3098 = vdwg.mxu0
      %3099 = vmatprep.subr.mxu0 %v3024
      %3100 = vmatpush1.msra.mxu0 %v3021
      %3101 = vmatprep.subr.mxu0 0.0
      %3102 = vmatpush1.msra.mxu0 0.0
      %3103 = vmatprep.subr.mxu0 0.0
      %3104 = vmatpush1.msra.mxu0 0.0
      %3105 = vmatprep.subr.mxu0 0.0
      %3106 = vmatpush1.msra.mxu0 0.0
      %3107 = vmatprep.subr.mxu0 0.0
      %3108 = vmatpush1.msra.mxu0 0.0
      %3109 = vmatprep.subr.mxu0 0.0
      %3110 = vmatpush1.msra.mxu0 0.0
      %3111 = vmatprep.subr.mxu0 0.0
      %3112 = vmatpush1.msra.mxu0 0.0
      %3113 = vmatprep.subr.mxu0 0.0
      %3114 = vmatpush1.msra.mxu0 0.0
      %3115 = vmatprep.subr.mxu0 0.0
      %3116 = vmatpush1.msra.mxu0 0.0
      %3117 = vmatprep.subr.mxu0 0.0
      %3118 = vmatpush1.msra.mxu0 0.0
      %3119 = vmatprep.subr.mxu0 0.0
      %3120 = vmatpush1.msra.mxu0 0.0
      %3121 = vmatprep.subr.mxu0 0.0
      %3122 = vmatpush1.msra.mxu0 0.0
      %3123 = vmatprep.subr.mxu0 0.0
      %3124 = vmatpush1.msra.mxu0 0.0
      %3125 = vmatprep.subr.mxu0 0.0
      %3126 = vmatpush1.msra.mxu0 0.0
      %3127 = vmatprep.subr.mxu0 0.0
      %3128 = vmatpush1.msra.mxu0 0.0
      %3129 = vmatprep.subr.mxu0 0.0
      %3130 = vmatpush1.msra.mxu0 0.0
      %3131 = vmatprep.subr.mxu0 0.0
      %3132 = vmatpush1.msra.mxu0 0.0
      %3133 = vmatprep.subr.mxu0 0.0
      %3134 = vmatpush1.msra.mxu0 0.0
      %3135 = vmatprep.subr.mxu0 0.0
      %3136 = vmatpush1.msra.mxu0 0.0
      %3137 = vmatprep.subr.mxu0 0.0
      %3138 = vmatpush1.msra.mxu0 0.0
      %3139 = vmatprep.subr.mxu0 0.0
      %3140 = vmatpush1.msra.mxu0 0.0
      %3141 = vmatprep.subr.mxu0 0.0
      %3142 = vmatpush1.msra.mxu0 0.0
      %3143 = vmatprep.subr.mxu0 0.0
      %3144 = vmatpush1.msra.mxu0 0.0
      %3145 = vmatprep.subr.mxu0 0.0
      %3146 = vmatpush1.msra.mxu0 0.0
      %3147 = vmatprep.subr.mxu0 0.0
      %3148 = vmatpush1.msra.mxu0 0.0
      %3149 = vmatprep.subr.mxu0 0.0
      %3150 = vmatpush1.msra.mxu0 0.0
      %3151 = vmatprep.subr.mxu0 0.0
      %3152 = vmatpush1.msra.mxu0 0.0
      %3153 = vmatprep.subr.mxu0 0.0
      %3154 = vmatpush1.msra.mxu0 0.0
      %3155 = vmatprep.subr.mxu0 0.0
      %3156 = vmatpush1.msra.mxu0 0.0
      %3157 = vmatprep.subr.mxu0 0.0
      %3158 = vmatpush1.msra.mxu0 0.0
      %3159 = vmatprep.subr.mxu0 0.0
      %3160 = vmatpush1.msra.mxu0 0.0
      %3161 = vmatprep.subr.mxu0 0.0
      %3162 = vmatpush1.msra.mxu0 0.0
      %3163 = vmatprep.mubr.f32.mxu0 0.0
      %3164 = vmatmul.mubr.f32.gmra.mrb[0].mxu0 %v3026
      %v3165 = vpop.f32.mrb[0].mxu0
      %v3166 = vadd.f32 0.0, %v3165
      %v3167 = vpop.f32.mrb[0].mxu0
      %v3168 = vadd.f32 0.0, %v3167
      %3169 = vdwg.mxu0
      %v3170 = vmul.f32 %v3095, %v1596
      %v3171 = vmul.f32 %v3097, %v1600
      %v3172 = vmul.f32 %v3166, %v1604
      %v3173 = vmul.f32 %v3168, %v1608
      %v3174 = vadd.f32 %v3009, %v3170
      %v3175 = vadd.f32 %v3010, %v3171
      %v3176 = vadd.f32 %v3011, %v3172
      %v3177 = vadd.f32 %v3012, %v3173
      %3178 = vrot.lane.b32.xlu0 %v2025, 112
      %v3179 = vpop.permute.xlu0 %3178
      %3180 = vrot.lane.b32.xlu0 %v2026, 112
      %v3181 = vpop.permute.xlu0 %3180
      %3182 = vrot.lane.b32.xlu0 %v2027, 112
      %v3183 = vpop.permute.xlu0 %3182
      %3184 = vrot.lane.b32.xlu0 %v2028, 112
      %v3185 = vpop.permute.xlu0 %3184
      %v3186 = vsel %vm1625, %v3183, %v3185
      %v3187 = vsel %vm1625, %v3181, %v3183
      %v3188 = vsel %vm1625, %v3179, %v3181
      %v3189 = vsel %vm1625, %v3185, %v3179
      %v3191 = vsel %vm2050, %v2036, 0
      %3193 = vmatprep.subr.mxu0 %v3187
      %3194 = vmatpush1.msra.mxu0 %v3188
      %3195 = vmatprep.subr.mxu0 0.0
      %3196 = vmatpush1.msra.mxu0 0.0
      %3197 = vmatprep.subr.mxu0 0.0
      %3198 = vmatpush1.msra.mxu0 0.0
      %3199 = vmatprep.subr.mxu0 0.0
      %3200 = vmatpush1.msra.mxu0 0.0
      %3201 = vmatprep.subr.mxu0 0.0
      %3202 = vmatpush1.msra.mxu0 0.0
      %3203 = vmatprep.subr.mxu0 0.0
      %3204 = vmatpush1.msra.mxu0 0.0
      %3205 = vmatprep.subr.mxu0 0.0
      %3206 = vmatpush1.msra.mxu0 0.0
      %3207 = vmatprep.subr.mxu0 0.0
      %3208 = vmatpush1.msra.mxu0 0.0
      %3209 = vmatprep.subr.mxu0 0.0
      %3210 = vmatpush1.msra.mxu0 0.0
      %3211 = vmatprep.subr.mxu0 0.0
      %3212 = vmatpush1.msra.mxu0 0.0
      %3213 = vmatprep.subr.mxu0 0.0
      %3214 = vmatpush1.msra.mxu0 0.0
      %3215 = vmatprep.subr.mxu0 0.0
      %3216 = vmatpush1.msra.mxu0 0.0
      %3217 = vmatprep.subr.mxu0 0.0
      %3218 = vmatpush1.msra.mxu0 0.0
      %3219 = vmatprep.subr.mxu0 0.0
      %3220 = vmatpush1.msra.mxu0 0.0
      %3221 = vmatprep.subr.mxu0 0.0
      %3222 = vmatpush1.msra.mxu0 0.0
      %3223 = vmatprep.subr.mxu0 0.0
      %3224 = vmatpush1.msra.mxu0 0.0
      %3225 = vmatprep.subr.mxu0 0.0
      %3226 = vmatpush1.msra.mxu0 0.0
      %3227 = vmatprep.subr.mxu0 0.0
      %3228 = vmatpush1.msra.mxu0 0.0
      %3229 = vmatprep.subr.mxu0 0.0
      %3230 = vmatpush1.msra.mxu0 0.0
      %3231 = vmatprep.subr.mxu0 0.0
      %3232 = vmatpush1.msra.mxu0 0.0
      %3233 = vmatprep.subr.mxu0 0.0
      %3234 = vmatpush1.msra.mxu0 0.0
      %3235 = vmatprep.subr.mxu0 0.0
      %3236 = vmatpush1.msra.mxu0 0.0
      %3237 = vmatprep.subr.mxu0 0.0
      %3238 = vmatpush1.msra.mxu0 0.0
      %3239 = vmatprep.subr.mxu0 0.0
      %3240 = vmatpush1.msra.mxu0 0.0
      %3241 = vmatprep.subr.mxu0 0.0
      %3242 = vmatpush1.msra.mxu0 0.0
      %3243 = vmatprep.subr.mxu0 0.0
      %3244 = vmatpush1.msra.mxu0 0.0
      %3245 = vmatprep.subr.mxu0 0.0
      %3246 = vmatpush1.msra.mxu0 0.0
      %3247 = vmatprep.subr.mxu0 0.0
      %3248 = vmatpush1.msra.mxu0 0.0
      %3249 = vmatprep.subr.mxu0 0.0
      %3250 = vmatpush1.msra.mxu0 0.0
      %3251 = vmatprep.subr.mxu0 0.0
      %3252 = vmatpush1.msra.mxu0 0.0
      %3253 = vmatprep.subr.mxu0 0.0
      %3254 = vmatpush1.msra.mxu0 0.0
      %3255 = vmatprep.subr.mxu0 0.0
      %3256 = vmatpush1.msra.mxu0 0.0
      %3257 = vmatprep.mubr.f32.mxu0 0.0
      %3258 = vmatmul.mubr.f32.gmra.mrb[0].mxu0 %v3191
      %v3259 = vpop.f32.mrb[0].mxu0
      %v3260 = vadd.f32 0.0, %v3259
      %v3261 = vpop.f32.mrb[0].mxu0
      %v3262 = vadd.f32 0.0, %v3261
      %3263 = vdwg.mxu0
      %3264 = vmatprep.subr.mxu0 %v3189
      %3265 = vmatpush1.msra.mxu0 %v3186
      %3266 = vmatprep.subr.mxu0 0.0
      %3267 = vmatpush1.msra.mxu0 0.0
      %3268 = vmatprep.subr.mxu0 0.0
      %3269 = vmatpush1.msra.mxu0 0.0
      %3270 = vmatprep.subr.mxu0 0.0
      %3271 = vmatpush1.msra.mxu0 0.0
      %3272 = vmatprep.subr.mxu0 0.0
      %3273 = vmatpush1.msra.mxu0 0.0
      %3274 = vmatprep.subr.mxu0 0.0
      %3275 = vmatpush1.msra.mxu0 0.0
      %3276 = vmatprep.subr.mxu0 0.0
      %3277 = vmatpush1.msra.mxu0 0.0
      %3278 = vmatprep.subr.mxu0 0.0
      %3279 = vmatpush1.msra.mxu0 0.0
      %3280 = vmatprep.subr.mxu0 0.0
      %3281 = vmatpush1.msra.mxu0 0.0
      %3282 = vmatprep.subr.mxu0 0.0
      %3283 = vmatpush1.msra.mxu0 0.0
      %3284 = vmatprep.subr.mxu0 0.0
      %3285 = vmatpush1.msra.mxu0 0.0
      %3286 = vmatprep.subr.mxu0 0.0
      %3287 = vmatpush1.msra.mxu0 0.0
      %3288 = vmatprep.subr.mxu0 0.0
      %3289 = vmatpush1.msra.mxu0 0.0
      %3290 = vmatprep.subr.mxu0 0.0
      %3291 = vmatpush1.msra.mxu0 0.0
      %3292 = vmatprep.subr.mxu0 0.0
      %3293 = vmatpush1.msra.mxu0 0.0
      %3294 = vmatprep.subr.mxu0 0.0
      %3295 = vmatpush1.msra.mxu0 0.0
      %3296 = vmatprep.subr.mxu0 0.0
      %3297 = vmatpush1.msra.mxu0 0.0
      %3298 = vmatprep.subr.mxu0 0.0
      %3299 = vmatpush1.msra.mxu0 0.0
      %3300 = vmatprep.subr.mxu0 0.0
      %3301 = vmatpush1.msra.mxu0 0.0
      %3302 = vmatprep.subr.mxu0 0.0
      %3303 = vmatpush1.msra.mxu0 0.0
      %3304 = vmatprep.subr.mxu0 0.0
      %3305 = vmatpush1.msra.mxu0 0.0
      %3306 = vmatprep.subr.mxu0 0.0
      %3307 = vmatpush1.msra.mxu0 0.0
      %3308 = vmatprep.subr.mxu0 0.0
      %3309 = vmatpush1.msra.mxu0 0.0
      %3310 = vmatprep.subr.mxu0 0.0
      %3311 = vmatpush1.msra.mxu0 0.0
      %3312 = vmatprep.subr.mxu0 0.0
      %3313 = vmatpush1.msra.mxu0 0.0
      %3314 = vmatprep.subr.mxu0 0.0
      %3315 = vmatpush1.msra.mxu0 0.0
      %3316 = vmatprep.subr.mxu0 0.0
      %3317 = vmatpush1.msra.mxu0 0.0
      %3318 = vmatprep.subr.mxu0 0.0
      %3319 = vmatpush1.msra.mxu0 0.0
      %3320 = vmatprep.subr.mxu0 0.0
      %3321 = vmatpush1.msra.mxu0 0.0
      %3322 = vmatprep.subr.mxu0 0.0
      %3323 = vmatpush1.msra.mxu0 0.0
      %3324 = vmatprep.subr.mxu0 0.0
      %3325 = vmatpush1.msra.mxu0 0.0
      %3326 = vmatprep.subr.mxu0 0.0
      %3327 = vmatpush1.msra.mxu0 0.0
      %3328 = vmatprep.mubr.f32.mxu0 0.0
      %3329 = vmatmul.mubr.f32.gmra.mrb[0].mxu0 %v3191
      %v3330 = vpop.f32.mrb[0].mxu0
      %v3331 = vadd.f32 0.0, %v3330
      %v3332 = vpop.f32.mrb[0].mxu0
      %v3333 = vadd.f32 0.0, %v3332
      %3334 = vdwg.mxu0
      %v3335 = vmul.f32 %v3260, %v1790
      %v3336 = vmul.f32 %v3262, %v1794
      %v3337 = vmul.f32 %v3331, %v1798
      %v3338 = vmul.f32 %v3333, %v1802
      %v3339 = vadd.f32 %v3174, %v3335
      %v3340 = vadd.f32 %v3175, %v3336
      %v3341 = vadd.f32 %v3176, %v3337
      %v3342 = vadd.f32 %v3177, %v3338
      %3343 = vrot.lane.b32.xlu0 %v2025, 111
      %v3344 = vpop.permute.xlu0 %3343
      %3345 = vrot.lane.b32.xlu0 %v2026, 111
      %v3346 = vpop.permute.xlu0 %3345
      %3347 = vrot.lane.b32.xlu0 %v2027, 111
      %v3348 = vpop.permute.xlu0 %3347
      %3349 = vrot.lane.b32.xlu0 %v2028, 111
      %v3350 = vpop.permute.xlu0 %3349
      %v3351 = vsel %vm1819, %v3348, %v3350
      %v3352 = vsel %vm1819, %v3346, %v3348
      %v3353 = vsel %vm1819, %v3344, %v3346
      %v3354 = vsel %vm1819, %v3350, %v3344
      %v3356 = vsel %vm2050, %v2037, 0
      %3358 = vmatprep.subr.mxu0 %v3352
      %3359 = vmatpush1.msra.mxu0 %v3353
      %3360 = vmatprep.subr.mxu0 0.0
      %3361 = vmatpush1.msra.mxu0 0.0
      %3362 = vmatprep.subr.mxu0 0.0
      %3363 = vmatpush1.msra.mxu0 0.0
      %3364 = vmatprep.subr.mxu0 0.0
      %3365 = vmatpush1.msra.mxu0 0.0
      %3366 = vmatprep.subr.mxu0 0.0
      %3367 = vmatpush1.msra.mxu0 0.0
      %3368 = vmatprep.subr.mxu0 0.0
      %3369 = vmatpush1.msra.mxu0 0.0
      %3370 = vmatprep.subr.mxu0 0.0
      %3371 = vmatpush1.msra.mxu0 0.0
      %3372 = vmatprep.subr.mxu0 0.0
      %3373 = vmatpush1.msra.mxu0 0.0
      %3374 = vmatprep.subr.mxu0 0.0
      %3375 = vmatpush1.msra.mxu0 0.0
      %3376 = vmatprep.subr.mxu0 0.0
      %3377 = vmatpush1.msra.mxu0 0.0
      %3378 = vmatprep.subr.mxu0 0.0
      %3379 = vmatpush1.msra.mxu0 0.0
      %3380 = vmatprep.subr.mxu0 0.0
      %3381 = vmatpush1.msra.mxu0 0.0
      %3382 = vmatprep.subr.mxu0 0.0
      %3383 = vmatpush1.msra.mxu0 0.0
      %3384 = vmatprep.subr.mxu0 0.0
      %3385 = vmatpush1.msra.mxu0 0.0
      %3386 = vmatprep.subr.mxu0 0.0
      %3387 = vmatpush1.msra.mxu0 0.0
      %3388 = vmatprep.subr.mxu0 0.0
      %3389 = vmatpush1.msra.mxu0 0.0
      %3390 = vmatprep.subr.mxu0 0.0
      %3391 = vmatpush1.msra.mxu0 0.0
      %3392 = vmatprep.subr.mxu0 0.0
      %3393 = vmatpush1.msra.mxu0 0.0
      %3394 = vmatprep.subr.mxu0 0.0
      %3395 = vmatpush1.msra.mxu0 0.0
      %3396 = vmatprep.subr.mxu0 0.0
      %3397 = vmatpush1.msra.mxu0 0.0
      %3398 = vmatprep.subr.mxu0 0.0
      %3399 = vmatpush1.msra.mxu0 0.0
      %3400 = vmatprep.subr.mxu0 0.0
      %3401 = vmatpush1.msra.mxu0 0.0
      %3402 = vmatprep.subr.mxu0 0.0
      %3403 = vmatpush1.msra.mxu0 0.0
      %3404 = vmatprep.subr.mxu0 0.0
      %3405 = vmatpush1.msra.mxu0 0.0
      %3406 = vmatprep.subr.mxu0 0.0
      %3407 = vmatpush1.msra.mxu0 0.0
      %3408 = vmatprep.subr.mxu0 0.0
      %3409 = vmatpush1.msra.mxu0 0.0
      %3410 = vmatprep.subr.mxu0 0.0
      %3411 = vmatpush1.msra.mxu0 0.0
      %3412 = vmatprep.subr.mxu0 0.0
      %3413 = vmatpush1.msra.mxu0 0.0
      %3414 = vmatprep.subr.mxu0 0.0
      %3415 = vmatpush1.msra.mxu0 0.0
      %3416 = vmatprep.subr.mxu0 0.0
      %3417 = vmatpush1.msra.mxu0 0.0
      %3418 = vmatprep.subr.mxu0 0.0
      %3419 = vmatpush1.msra.mxu0 0.0
      %3420 = vmatprep.subr.mxu0 0.0
      %3421 = vmatpush1.msra.mxu0 0.0
      %3422 = vmatprep.mubr.f32.mxu0 0.0
      %3423 = vmatmul.mubr.f32.gmra.mrb[0].mxu0 %v3356
      %v3424 = vpop.f32.mrb[0].mxu0
      %v3425 = vadd.f32 0.0, %v3424
      %v3426 = vpop.f32.mrb[0].mxu0
      %v3427 = vadd.f32 0.0, %v3426
      %3428 = vdwg.mxu0
      %3429 = vmatprep.subr.mxu0 %v3354
      %3430 = vmatpush1.msra.mxu0 %v3351
      %3431 = vmatprep.subr.mxu0 0.0
      %3432 = vmatpush1.msra.mxu0 0.0
      %3433 = vmatprep.subr.mxu0 0.0
      %3434 = vmatpush1.msra.mxu0 0.0
      %3435 = vmatprep.subr.mxu0 0.0
      %3436 = vmatpush1.msra.mxu0 0.0
      %3437 = vmatprep.subr.mxu0 0.0
      %3438 = vmatpush1.msra.mxu0 0.0
      %3439 = vmatprep.subr.mxu0 0.0
      %3440 = vmatpush1.msra.mxu0 0.0
      %3441 = vmatprep.subr.mxu0 0.0
      %3442 = vmatpush1.msra.mxu0 0.0
      %3443 = vmatprep.subr.mxu0 0.0
      %3444 = vmatpush1.msra.mxu0 0.0
      %3445 = vmatprep.subr.mxu0 0.0
      %3446 = vmatpush1.msra.mxu0 0.0
      %3447 = vmatprep.subr.mxu0 0.0
      %3448 = vmatpush1.msra.mxu0 0.0
      %3449 = vmatprep.subr.mxu0 0.0
      %3450 = vmatpush1.msra.mxu0 0.0
      %3451 = vmatprep.subr.mxu0 0.0
      %3452 = vmatpush1.msra.mxu0 0.0
      %3453 = vmatprep.subr.mxu0 0.0
      %3454 = vmatpush1.msra.mxu0 0.0
      %3455 = vmatprep.subr.mxu0 0.0
      %3456 = vmatpush1.msra.mxu0 0.0
      %3457 = vmatprep.subr.mxu0 0.0
      %3458 = vmatpush1.msra.mxu0 0.0
      %3459 = vmatprep.subr.mxu0 0.0
      %3460 = vmatpush1.msra.mxu0 0.0
      %3461 = vmatprep.subr.mxu0 0.0
      %3462 = vmatpush1.msra.mxu0 0.0
      %3463 = vmatprep.subr.mxu0 0.0
      %3464 = vmatpush1.msra.mxu0 0.0
      %3465 = vmatprep.subr.mxu0 0.0
      %3466 = vmatpush1.msra.mxu0 0.0
      %3467 = vmatprep.subr.mxu0 0.0
      %3468 = vmatpush1.msra.mxu0 0.0
      %3469 = vmatprep.subr.mxu0 0.0
      %3470 = vmatpush1.msra.mxu0 0.0
      %3471 = vmatprep.subr.mxu0 0.0
      %3472 = vmatpush1.msra.mxu0 0.0
      %3473 = vmatprep.subr.mxu0 0.0
      %3474 = vmatpush1.msra.mxu0 0.0
      %3475 = vmatprep.subr.mxu0 0.0
      %3476 = vmatpush1.msra.mxu0 0.0
      %3477 = vmatprep.subr.mxu0 0.0
      %3478 = vmatpush1.msra.mxu0 0.0
      %3479 = vmatprep.subr.mxu0 0.0
      %3480 = vmatpush1.msra.mxu0 0.0
      %3481 = vmatprep.subr.mxu0 0.0
      %3482 = vmatpush1.msra.mxu0 0.0
      %3483 = vmatprep.subr.mxu0 0.0
      %3484 = vmatpush1.msra.mxu0 0.0
      %3485 = vmatprep.subr.mxu0 0.0
      %3486 = vmatpush1.msra.mxu0 0.0
      %3487 = vmatprep.subr.mxu0 0.0
      %3488 = vmatpush1.msra.mxu0 0.0
      %3489 = vmatprep.subr.mxu0 0.0
      %3490 = vmatpush1.msra.mxu0 0.0
      %3491 = vmatprep.subr.mxu0 0.0
      %3492 = vmatpush1.msra.mxu0 0.0
      %3493 = vmatprep.mubr.f32.mxu0 0.0
      %3494 = vmatmul.mubr.f32.gmra.mrb[0].mxu0 %v3356
      %v3495 = vpop.f32.mrb[0].mxu0
      %v3496 = vadd.f32 0.0, %v3495
      %v3497 = vpop.f32.mrb[0].mxu0
      %v3498 = vadd.f32 0.0, %v3497
      %3499 = vdwg.mxu0
      %v3500 = vmul.f32 %v3425, %v1984
      %v3501 = vmul.f32 %v3427, %v1988
      %v3502 = vmul.f32 %v3496, %v1992
      %v3503 = vmul.f32 %v3498, %v1996
      %v3504 = vadd.f32 %v3339, %v3500
      %v3505 = vadd.f32 %v3340, %v3501
      %v3506 = vadd.f32 %v3341, %v3502
      %v3507 = vadd.f32 %v3342, %v3503
      %v3508 = vmax.f32 %v3504, 0.0
      %v3509 = vmax.f32 %v3505, 0.0
      %v3510 = vmax.f32 %v3506, 0.0
      %v3511 = vmax.f32 %v3507, 0.0
      %3512 = vst [vmem:[#allocation2 + $0x20] sm:$0xf] %v3508
      %3513 = vst [vmem:[#allocation2 + $0x28] sm:$0xf] %v3509
      %3514 = vst [vmem:[#allocation2 + $0x30] sm:$0xf] %v3510
      %3515 = vst [vmem:[#allocation2 + $0x38] sm:$0xf] %v3511
      %v3516 = vld [vmem:[#allocation2] sm:$0xff]
      %v3517 = vld [vmem:[#allocation2 + $0x8] sm:$0xff]
      %v3518 = vld [vmem:[#allocation2 + $0x10] sm:$0xff]
      %v3519 = vld [vmem:[#allocation2 + $0x18] sm:$0xff]
      %v3520 = vld [vmem:[#allocation2 + $0x20] sm:$0xf]
      %v3521 = vld [vmem:[#allocation2 + $0x28] sm:$0xf]
      %v3522 = vld [vmem:[#allocation2 + $0x30] sm:$0xf]
      %v3523 = vld [vmem:[#allocation2 + $0x38] sm:$0xf]
      %v3524 = vld [vmem:[%s5] sm:$0xf]
      %v3525 = vld [vmem:[%s5 + $0x4] sm:$0xf]
      %v3526 = vld [vmem:[%s5 + $0x8] sm:$0xf]
      %v3527 = vld [vmem:[%s5 + $0xc] sm:$0xf]
      %v3528 = vld [vmem:[%s5 + $0x10] sm:$0xf]
      %v3529 = vld [vmem:[%s5 + $0x14] sm:$0xf]
      %v3530 = vld [vmem:[%s5 + $0x18] sm:$0xf]
      %v3531 = vld [vmem:[%s5 + $0x1c] sm:$0xf]
      %v3532 = vld [vmem:[%s5 + $0x20] sm:$0xf]
      %3533 = vrot.lane.b32.xlu0 %v3516, 17
      %v3534 = vpop.permute.xlu0 %3533
      %3535 = vrot.lane.b32.xlu0 %v3520, 17
      %v3536 = vpop.permute.xlu0 %3535
      %3537 = vrot.lane.b32.xlu0 %v3517, 17
      %v3538 = vpop.permute.xlu0 %3537
      %3539 = vrot.lane.b32.xlu0 %v3521, 17
      %v3540 = vpop.permute.xlu0 %3539
      %3541 = vrot.lane.b32.xlu0 %v3518, 17
      %v3542 = vpop.permute.xlu0 %3541
      %3543 = vrot.lane.b32.xlu0 %v3522, 17
      %v3544 = vpop.permute.xlu0 %3543
      %3545 = vrot.lane.b32.xlu0 %v3519, 17
      %v3546 = vpop.permute.xlu0 %3545
      %3547 = vrot.lane.b32.xlu0 %v3523, 17
      %v3548 = vpop.permute.xlu0 %3547
      %v3549 = vsel %vm298, %v3542, %v3546
      %v3550 = vsel %vm298, %v3544, %v3548
      %v3551 = vsel %vm298, %v3538, %v3542
      %v3552 = vsel %vm298, %v3540, %v3544
      %v3553 = vsel %vm298, %v3534, %v3538
      %v3554 = vsel %vm298, %v3536, %v3540
      %v3555 = vsel %vm298, %v3546, %v3534
      %v3556 = vsel %vm298, %v3548, %v3536
      %vm3557 = vcmask 97280
      %v3559 = vsel %vm3557, %v3524, 0
      %v3562 = vsel %vm307, %v3556, 0
      %v3565 = vsel %vm307, %v3554, 0
      %v3568 = vsel %vm307, %v3552, 0
      %v3571 = vsel %vm307, %v3550, 0
      %3573 = vmatprep.subr.mxu0 %v3553
      %3574 = vmatpush1.msra.mxu0 %v3555
      %3575 = vmatprep.subr.mxu0 %v3565
      %3576 = vmatpush1.msra.mxu0 %v3562
      %3577 = vmatprep.subr.mxu0 0.0
      %3578 = vmatpush1.msra.mxu0 0.0
      %3579 = vmatprep.subr.mxu0 0.0
      %3580 = vmatpush1.msra.mxu0 0.0
      %3581 = vmatprep.subr.mxu0 0.0
      %3582 = vmatpush1.msra.mxu0 0.0
      %3583 = vmatprep.subr.mxu0 0.0
      %3584 = vmatpush1.msra.mxu0 0.0
      %3585 = vmatprep.subr.mxu0 0.0
      %3586 = vmatpush1.msra.mxu0 0.0
      %3587 = vmatprep.subr.mxu0 0.0
      %3588 = vmatpush1.msra.mxu0 0.0
      %3589 = vmatprep.subr.mxu0 0.0
      %3590 = vmatpush1.msra.mxu0 0.0
      %3591 = vmatprep.subr.mxu0 0.0
      %3592 = vmatpush1.msra.mxu0 0.0
      %3593 = vmatprep.subr.mxu0 0.0
      %3594 = vmatpush1.msra.mxu0 0.0
      %3595 = vmatprep.subr.mxu0 0.0
      %3596 = vmatpush1.msra.mxu0 0.0
      %3597 = vmatprep.subr.mxu0 0.0
      %3598 = vmatpush1.msra.mxu0 0.0
      %3599 = vmatprep.subr.mxu0 0.0
      %3600 = vmatpush1.msra.mxu0 0.0
      %3601 = vmatprep.subr.mxu0 0.0
      %3602 = vmatpush1.msra.mxu0 0.0
      %3603 = vmatprep.subr.mxu0 0.0
      %3604 = vmatpush1.msra.mxu0 0.0
      %3605 = vmatprep.subr.mxu0 0.0
      %3606 = vmatpush1.msra.mxu0 0.0
      %3607 = vmatprep.subr.mxu0 0.0
      %3608 = vmatpush1.msra.mxu0 0.0
      %3609 = vmatprep.subr.mxu0 0.0
      %3610 = vmatpush1.msra.mxu0 0.0
      %3611 = vmatprep.subr.mxu0 0.0
      %3612 = vmatpush1.msra.mxu0 0.0
      %3613 = vmatprep.subr.mxu0 0.0
      %3614 = vmatpush1.msra.mxu0 0.0
      %3615 = vmatprep.subr.mxu0 0.0
      %3616 = vmatpush1.msra.mxu0 0.0
      %3617 = vmatprep.subr.mxu0 0.0
      %3618 = vmatpush1.msra.mxu0 0.0
      %3619 = vmatprep.subr.mxu0 0.0
      %3620 = vmatpush1.msra.mxu0 0.0
      %3621 = vmatprep.subr.mxu0 0.0
      %3622 = vmatpush1.msra.mxu0 0.0
      %3623 = vmatprep.subr.mxu0 0.0
      %3624 = vmatpush1.msra.mxu0 0.0
      %3625 = vmatprep.subr.mxu0 0.0
      %3626 = vmatpush1.msra.mxu0 0.0
      %3627 = vmatprep.subr.mxu0 0.0
      %3628 = vmatpush1.msra.mxu0 0.0
      %3629 = vmatprep.subr.mxu0 0.0
      %3630 = vmatpush1.msra.mxu0 0.0
      %3631 = vmatprep.subr.mxu0 0.0
      %3632 = vmatpush1.msra.mxu0 0.0
      %3633 = vmatprep.subr.mxu0 0.0
      %3634 = vmatpush1.msra.mxu0 0.0
      %3635 = vmatprep.subr.mxu0 0.0
      %3636 = vmatpush1.msra.mxu0 0.0
      %3637 = vmatprep.mubr.f32.mxu0 0.0
      %3638 = vmatmul.mubr.f32.gmra.mrb[0].mxu0 %v3559
      %v3639 = vpop.f32.mrb[0].mxu0
      %v3640 = vadd.f32 0.0, %v3639
      %v3641 = vpop.f32.mrb[0].mxu0
      %v3642 = vadd.f32 0.0, %v3641
      %3643 = vdwg.mxu0
      %3644 = vmatprep.subr.mxu0 %v3549
      %3645 = vmatpush1.msra.mxu0 %v3551
      %3646 = vmatprep.subr.mxu0 %v3571
      %3647 = vmatpush1.msra.mxu0 %v3568
      %3648 = vmatprep.subr.mxu0 0.0
      %3649 = vmatpush1.msra.mxu0 0.0
      %3650 = vmatprep.subr.mxu0 0.0
      %3651 = vmatpush1.msra.mxu0 0.0
      %3652 = vmatprep.subr.mxu0 0.0
      %3653 = vmatpush1.msra.mxu0 0.0
      %3654 = vmatprep.subr.mxu0 0.0
      %3655 = vmatpush1.msra.mxu0 0.0
      %3656 = vmatprep.subr.mxu0 0.0
      %3657 = vmatpush1.msra.mxu0 0.0
      %3658 = vmatprep.subr.mxu0 0.0
      %3659 = vmatpush1.msra.mxu0 0.0
      %3660 = vmatprep.subr.mxu0 0.0
      %3661 = vmatpush1.msra.mxu0 0.0
      %3662 = vmatprep.subr.mxu0 0.0
      %3663 = vmatpush1.msra.mxu0 0.0
      %3664 = vmatprep.subr.mxu0 0.0
      %3665 = vmatpush1.msra.mxu0 0.0
      %3666 = vmatprep.subr.mxu0 0.0
      %3667 = vmatpush1.msra.mxu0 0.0
      %3668 = vmatprep.subr.mxu0 0.0
      %3669 = vmatpush1.msra.mxu0 0.0
      %3670 = vmatprep.subr.mxu0 0.0
      %3671 = vmatpush1.msra.mxu0 0.0
      %3672 = vmatprep.subr.mxu0 0.0
      %3673 = vmatpush1.msra.mxu0 0.0
      %3674 = vmatprep.subr.mxu0 0.0
      %3675 = vmatpush1.msra.mxu0 0.0
      %3676 = vmatprep.subr.mxu0 0.0
      %3677 = vmatpush1.msra.mxu0 0.0
      %3678 = vmatprep.subr.mxu0 0.0
      %3679 = vmatpush1.msra.mxu0 0.0
      %3680 = vmatprep.subr.mxu0 0.0
      %3681 = vmatpush1.msra.mxu0 0.0
      %3682 = vmatprep.subr.mxu0 0.0
      %3683 = vmatpush1.msra.mxu0 0.0
      %3684 = vmatprep.subr.mxu0 0.0
      %3685 = vmatpush1.msra.mxu0 0.0
      %3686 = vmatprep.subr.mxu0 0.0
      %3687 = vmatpush1.msra.mxu0 0.0
      %3688 = vmatprep.subr.mxu0 0.0
      %3689 = vmatpush1.msra.mxu0 0.0
      %3690 = vmatprep.subr.mxu0 0.0
      %3691 = vmatpush1.msra.mxu0 0.0
      %3692 = vmatprep.subr.mxu0 0.0
      %3693 = vmatpush1.msra.mxu0 0.0
      %3694 = vmatprep.subr.mxu0 0.0
      %3695 = vmatpush1.msra.mxu0 0.0
      %3696 = vmatprep.subr.mxu0 0.0
      %3697 = vmatpush1.msra.mxu0 0.0
      %3698 = vmatprep.subr.mxu0 0.0
      %3699 = vmatpush1.msra.mxu0 0.0
      %3700 = vmatprep.subr.mxu0 0.0
      %3701 = vmatpush1.msra.mxu0 0.0
      %3702 = vmatprep.subr.mxu0 0.0
      %3703 = vmatpush1.msra.mxu0 0.0
      %3704 = vmatprep.subr.mxu0 0.0
      %3705 = vmatpush1.msra.mxu0 0.0
      %3706 = vmatprep.subr.mxu0 0.0
      %3707 = vmatpush1.msra.mxu0 0.0
      %3708 = vmatprep.mubr.f32.mxu0 0.0
      %3709 = vmatmul.mubr.f32.gmra.mrb[0].mxu0 %v3559
      %v3710 = vpop.f32.mrb[0].mxu0
      %v3711 = vadd.f32 0.0, %v3710
      %v3712 = vpop.f32.mrb[0].mxu0
      %v3713 = vadd.f32 0.0, %v3712
      %3714 = vdwg.mxu0
      %v3715 = vmul.f32 %v3640, %v465
      %v3716 = vmul.f32 %v3642, %v469
      %v3717 = vmul.f32 %v3711, %v473
      %v3718 = vmul.f32 %v3713, %v477
      %v3719 = vadd.f32 %v3715, 0.0
      %v3720 = vadd.f32 %v3716, 0.0
      %v3721 = vadd.f32 %v3717, 0.0
      %v3722 = vadd.f32 %v3718, 0.0
      %3723 = vrot.lane.b32.xlu0 %v3516, 16
      %v3724 = vpop.permute.xlu0 %3723
      %3725 = vrot.lane.b32.xlu0 %v3520, 16
      %v3726 = vpop.permute.xlu0 %3725
      %3727 = vrot.lane.b32.xlu0 %v3517, 16
      %v3728 = vpop.permute.xlu0 %3727
      %3729 = vrot.lane.b32.xlu0 %v3521, 16
      %v3730 = vpop.permute.xlu0 %3729
      %3731 = vrot.lane.b32.xlu0 %v3518, 16
      %v3732 = vpop.permute.xlu0 %3731
      %3733 = vrot.lane.b32.xlu0 %v3522, 16
      %v3734 = vpop.permute.xlu0 %3733
      %3735 = vrot.lane.b32.xlu0 %v3519, 16
      %v3736 = vpop.permute.xlu0 %3735
      %3737 = vrot.lane.b32.xlu0 %v3523, 16
      %v3738 = vpop.permute.xlu0 %3737
      %v3739 = vsel %vm494, %v3732, %v3736
      %v3740 = vsel %vm494, %v3734, %v3738
      %v3741 = vsel %vm494, %v3728, %v3732
      %v3742 = vsel %vm494, %v3730, %v3734
      %v3743 = vsel %vm494, %v3724, %v3728
      %v3744 = vsel %vm494, %v3726, %v3730
      %v3745 = vsel %vm494, %v3736, %v3724
      %v3746 = vsel %vm494, %v3738, %v3726
      %v3748 = vsel %vm3557, %v3525, 0
      %v3751 = vsel %vm307, %v3746, 0
      %v3754 = vsel %vm307, %v3744, 0
      %v3757 = vsel %vm307, %v3742, 0
      %v3760 = vsel %vm307, %v3740, 0
      %3762 = vmatprep.subr.mxu0 %v3743
      %3763 = vmatpush1.msra.mxu0 %v3745
      %3764 = vmatprep.subr.mxu0 %v3754
      %3765 = vmatpush1.msra.mxu0 %v3751
      %3766 = vmatprep.subr.mxu0 0.0
      %3767 = vmatpush1.msra.mxu0 0.0
      %3768 = vmatprep.subr.mxu0 0.0
      %3769 = vmatpush1.msra.mxu0 0.0
      %3770 = vmatprep.subr.mxu0 0.0
      %3771 = vmatpush1.msra.mxu0 0.0
      %3772 = vmatprep.subr.mxu0 0.0
      %3773 = vmatpush1.msra.mxu0 0.0
      %3774 = vmatprep.subr.mxu0 0.0
      %3775 = vmatpush1.msra.mxu0 0.0
      %3776 = vmatprep.subr.mxu0 0.0
      %3777 = vmatpush1.msra.mxu0 0.0
      %3778 = vmatprep.subr.mxu0 0.0
      %3779 = vmatpush1.msra.mxu0 0.0
      %3780 = vmatprep.subr.mxu0 0.0
      %3781 = vmatpush1.msra.mxu0 0.0
      %3782 = vmatprep.subr.mxu0 0.0
      %3783 = vmatpush1.msra.mxu0 0.0
      %3784 = vmatprep.subr.mxu0 0.0
      %3785 = vmatpush1.msra.mxu0 0.0
      %3786 = vmatprep.subr.mxu0 0.0
      %3787 = vmatpush1.msra.mxu0 0.0
      %3788 = vmatprep.subr.mxu0 0.0
      %3789 = vmatpush1.msra.mxu0 0.0
      %3790 = vmatprep.subr.mxu0 0.0
      %3791 = vmatpush1.msra.mxu0 0.0
      %3792 = vmatprep.subr.mxu0 0.0
      %3793 = vmatpush1.msra.mxu0 0.0
      %3794 = vmatprep.subr.mxu0 0.0
      %3795 = vmatpush1.msra.mxu0 0.0
      %3796 = vmatprep.subr.mxu0 0.0
      %3797 = vmatpush1.msra.mxu0 0.0
      %3798 = vmatprep.subr.mxu0 0.0
      %3799 = vmatpush1.msra.mxu0 0.0
      %3800 = vmatprep.subr.mxu0 0.0
      %3801 = vmatpush1.msra.mxu0 0.0
      %3802 = vmatprep.subr.mxu0 0.0
      %3803 = vmatpush1.msra.mxu0 0.0
      %3804 = vmatprep.subr.mxu0 0.0
      %3805 = vmatpush1.msra.mxu0 0.0
      %3806 = vmatprep.subr.mxu0 0.0
      %3807 = vmatpush1.msra.mxu0 0.0
      %3808 = vmatprep.subr.mxu0 0.0
      %3809 = vmatpush1.msra.mxu0 0.0
      %3810 = vmatprep.subr.mxu0 0.0
      %3811 = vmatpush1.msra.mxu0 0.0
      %3812 = vmatprep.subr.mxu0 0.0
      %3813 = vmatpush1.msra.mxu0 0.0
      %3814 = vmatprep.subr.mxu0 0.0
      %3815 = vmatpush1.msra.mxu0 0.0
      %3816 = vmatprep.subr.mxu0 0.0
      %3817 = vmatpush1.msra.mxu0 0.0
      %3818 = vmatprep.subr.mxu0 0.0
      %3819 = vmatpush1.msra.mxu0 0.0
      %3820 = vmatprep.subr.mxu0 0.0
      %3821 = vmatpush1.msra.mxu0 0.0
      %3822 = vmatprep.subr.mxu0 0.0
      %3823 = vmatpush1.msra.mxu0 0.0
      %3824 = vmatprep.subr.mxu0 0.0
      %3825 = vmatpush1.msra.mxu0 0.0
      %3826 = vmatprep.mubr.f32.mxu0 0.0
      %3827 = vmatmul.mubr.f32.gmra.mrb[0].mxu0 %v3748
      %v3828 = vpop.f32.mrb[0].mxu0
      %v3829 = vadd.f32 0.0, %v3828
      %v3830 = vpop.f32.mrb[0].mxu0
      %v3831 = vadd.f32 0.0, %v3830
      %3832 = vdwg.mxu0
      %3833 = vmatprep.subr.mxu0 %v3739
      %3834 = vmatpush1.msra.mxu0 %v3741
      %3835 = vmatprep.subr.mxu0 %v3760
      %3836 = vmatpush1.msra.mxu0 %v3757
      %3837 = vmatprep.subr.mxu0 0.0
      %3838 = vmatpush1.msra.mxu0 0.0
      %3839 = vmatprep.subr.mxu0 0.0
      %3840 = vmatpush1.msra.mxu0 0.0
      %3841 = vmatprep.subr.mxu0 0.0
      %3842 = vmatpush1.msra.mxu0 0.0
      %3843 = vmatprep.subr.mxu0 0.0
      %3844 = vmatpush1.msra.mxu0 0.0
      %3845 = vmatprep.subr.mxu0 0.0
      %3846 = vmatpush1.msra.mxu0 0.0
      %3847 = vmatprep.subr.mxu0 0.0
      %3848 = vmatpush1.msra.mxu0 0.0
      %3849 = vmatprep.subr.mxu0 0.0
      %3850 = vmatpush1.msra.mxu0 0.0
      %3851 = vmatprep.subr.mxu0 0.0
      %3852 = vmatpush1.msra.mxu0 0.0
      %3853 = vmatprep.subr.mxu0 0.0
      %3854 = vmatpush1.msra.mxu0 0.0
      %3855 = vmatprep.subr.mxu0 0.0
      %3856 = vmatpush1.msra.mxu0 0.0
      %3857 = vmatprep.subr.mxu0 0.0
      %3858 = vmatpush1.msra.mxu0 0.0
      %3859 = vmatprep.subr.mxu0 0.0
      %3860 = vmatpush1.msra.mxu0 0.0
      %3861 = vmatprep.subr.mxu0 0.0
      %3862 = vmatpush1.msra.mxu0 0.0
      %3863 = vmatprep.subr.mxu0 0.0
      %3864 = vmatpush1.msra.mxu0 0.0
      %3865 = vmatprep.subr.mxu0 0.0
      %3866 = vmatpush1.msra.mxu0 0.0
      %3867 = vmatprep.subr.mxu0 0.0
      %3868 = vmatpush1.msra.mxu0 0.0
      %3869 = vmatprep.subr.mxu0 0.0
      %3870 = vmatpush1.msra.mxu0 0.0
      %3871 = vmatprep.subr.mxu0 0.0
      %3872 = vmatpush1.msra.mxu0 0.0
      %3873 = vmatprep.subr.mxu0 0.0
      %3874 = vmatpush1.msra.mxu0 0.0
      %3875 = vmatprep.subr.mxu0 0.0
      %3876 = vmatpush1.msra.mxu0 0.0
      %3877 = vmatprep.subr.mxu0 0.0
      %3878 = vmatpush1.msra.mxu0 0.0
      %3879 = vmatprep.subr.mxu0 0.0
      %3880 = vmatpush1.msra.mxu0 0.0
      %3881 = vmatprep.subr.mxu0 0.0
      %3882 = vmatpush1.msra.mxu0 0.0
      %3883 = vmatprep.subr.mxu0 0.0
      %3884 = vmatpush1.msra.mxu0 0.0
      %3885 = vmatprep.subr.mxu0 0.0
      %3886 = vmatpush1.msra.mxu0 0.0
      %3887 = vmatprep.subr.mxu0 0.0
      %3888 = vmatpush1.msra.mxu0 0.0
      %3889 = vmatprep.subr.mxu0 0.0
      %3890 = vmatpush1.msra.mxu0 0.0
      %3891 = vmatprep.subr.mxu0 0.0
      %3892 = vmatpush1.msra.mxu0 0.0
      %3893 = vmatprep.subr.mxu0 0.0
      %3894 = vmatpush1.msra.mxu0 0.0
      %3895 = vmatprep.subr.mxu0 0.0
      %3896 = vmatpush1.msra.mxu0 0.0
      %3897 = vmatprep.mubr.f32.mxu0 0.0
      %3898 = vmatmul.mubr.f32.gmra.mrb[0].mxu0 %v3748
      %v3899 = vpop.f32.mrb[0].mxu0
      %v3900 = vadd.f32 0.0, %v3899
      %v3901 = vpop.f32.mrb[0].mxu0
      %v3902 = vadd.f32 0.0, %v3901
      %3903 = vdwg.mxu0
      %v3904 = vmul.f32 %v3829, %v659
      %v3905 = vmul.f32 %v3831, %v663
      %v3906 = vmul.f32 %v3900, %v667
      %v3907 = vmul.f32 %v3902, %v671
      %v3908 = vadd.f32 %v3719, %v3904
      %v3909 = vadd.f32 %v3720, %v3905
      %v3910 = vadd.f32 %v3721, %v3906
      %v3911 = vadd.f32 %v3722, %v3907
      %3912 = vrot.lane.b32.xlu0 %v3516, 15
      %v3913 = vpop.permute.xlu0 %3912
      %3914 = vrot.lane.b32.xlu0 %v3520, 15
      %v3915 = vpop.permute.xlu0 %3914
      %3916 = vrot.lane.b32.xlu0 %v3517, 15
      %v3917 = vpop.permute.xlu0 %3916
      %3918 = vrot.lane.b32.xlu0 %v3521, 15
      %v3919 = vpop.permute.xlu0 %3918
      %3920 = vrot.lane.b32.xlu0 %v3518, 15
      %v3921 = vpop.permute.xlu0 %3920
      %3922 = vrot.lane.b32.xlu0 %v3522, 15
      %v3923 = vpop.permute.xlu0 %3922
      %3924 = vrot.lane.b32.xlu0 %v3519, 15
      %v3925 = vpop.permute.xlu0 %3924
      %3926 = vrot.lane.b32.xlu0 %v3523, 15
      %v3927 = vpop.permute.xlu0 %3926
      %v3928 = vsel %vm688, %v3921, %v3925
      %v3929 = vsel %vm688, %v3923, %v3927
      %v3930 = vsel %vm688, %v3917, %v3921
      %v3931 = vsel %vm688, %v3919, %v3923
      %v3932 = vsel %vm688, %v3913, %v3917
      %v3933 = vsel %vm688, %v3915, %v3919
      %v3934 = vsel %vm688, %v3925, %v3913
      %v3935 = vsel %vm688, %v3927, %v3915
      %v3937 = vsel %vm3557, %v3526, 0
      %v3940 = vsel %vm307, %v3935, 0
      %v3943 = vsel %vm307, %v3933, 0
      %v3946 = vsel %vm307, %v3931, 0
      %v3949 = vsel %vm307, %v3929, 0
      %3951 = vmatprep.subr.mxu0 %v3932
      %3952 = vmatpush1.msra.mxu0 %v3934
      %3953 = vmatprep.subr.mxu0 %v3943
      %3954 = vmatpush1.msra.mxu0 %v3940
      %3955 = vmatprep.subr.mxu0 0.0
      %3956 = vmatpush1.msra.mxu0 0.0
      %3957 = vmatprep.subr.mxu0 0.0
      %3958 = vmatpush1.msra.mxu0 0.0
      %3959 = vmatprep.subr.mxu0 0.0
      %3960 = vmatpush1.msra.mxu0 0.0
      %3961 = vmatprep.subr.mxu0 0.0
      %3962 = vmatpush1.msra.mxu0 0.0
      %3963 = vmatprep.subr.mxu0 0.0
      %3964 = vmatpush1.msra.mxu0 0.0
      %3965 = vmatprep.subr.mxu0 0.0
      %3966 = vmatpush1.msra.mxu0 0.0
      %3967 = vmatprep.subr.mxu0 0.0
      %3968 = vmatpush1.msra.mxu0 0.0
      %3969 = vmatprep.subr.mxu0 0.0
      %3970 = vmatpush1.msra.mxu0 0.0
      %3971 = vmatprep.subr.mxu0 0.0
      %3972 = vmatpush1.msra.mxu0 0.0
      %3973 = vmatprep.subr.mxu0 0.0
      %3974 = vmatpush1.msra.mxu0 0.0
      %3975 = vmatprep.subr.mxu0 0.0
      %3976 = vmatpush1.msra.mxu0 0.0
      %3977 = vmatprep.subr.mxu0 0.0
      %3978 = vmatpush1.msra.mxu0 0.0
      %3979 = vmatprep.subr.mxu0 0.0
      %3980 = vmatpush1.msra.mxu0 0.0
      %3981 = vmatprep.subr.mxu0 0.0
      %3982 = vmatpush1.msra.mxu0 0.0
      %3983 = vmatprep.subr.mxu0 0.0
      %3984 = vmatpush1.msra.mxu0 0.0
      %3985 = vmatprep.subr.mxu0 0.0
      %3986 = vmatpush1.msra.mxu0 0.0
      %3987 = vmatprep.subr.mxu0 0.0
      %3988 = vmatpush1.msra.mxu0 0.0
      %3989 = vmatprep.subr.mxu0 0.0
      %3990 = vmatpush1.msra.mxu0 0.0
      %3991 = vmatprep.subr.mxu0 0.0
      %3992 = vmatpush1.msra.mxu0 0.0
      %3993 = vmatprep.subr.mxu0 0.0
      %3994 = vmatpush1.msra.mxu0 0.0
      %3995 = vmatprep.subr.mxu0 0.0
      %3996 = vmatpush1.msra.mxu0 0.0
      %3997 = vmatprep.subr.mxu0 0.0
      %3998 = vmatpush1.msra.mxu0 0.0
      %3999 = vmatprep.subr.mxu0 0.0
      %4000 = vmatpush1.msra.mxu0 0.0
      %4001 = vmatprep.subr.mxu0 0.0
      %4002 = vmatpush1.msra.mxu0 0.0
      %4003 = vmatprep.subr.mxu0 0.0
      %4004 = vmatpush1.msra.mxu0 0.0
      %4005 = vmatprep.subr.mxu0 0.0
      %4006 = vmatpush1.msra.mxu0 0.0
      %4007 = vmatprep.subr.mxu0 0.0
      %4008 = vmatpush1.msra.mxu0 0.0
      %4009 = vmatprep.subr.mxu0 0.0
      %4010 = vmatpush1.msra.mxu0 0.0
      %4011 = vmatprep.subr.mxu0 0.0
      %4012 = vmatpush1.msra.mxu0 0.0
      %4013 = vmatprep.subr.mxu0 0.0
      %4014 = vmatpush1.msra.mxu0 0.0
      %4015 = vmatprep.mubr.f32.mxu0 0.0
      %4016 = vmatmul.mubr.f32.gmra.mrb[0].mxu0 %v3937
      %v4017 = vpop.f32.mrb[0].mxu0
      %v4018 = vadd.f32 0.0, %v4017
      %v4019 = vpop.f32.mrb[0].mxu0
      %v4020 = vadd.f32 0.0, %v4019
      %4021 = vdwg.mxu0
      %4022 = vmatprep.subr.mxu0 %v3928
      %4023 = vmatpush1.msra.mxu0 %v3930
      %4024 = vmatprep.subr.mxu0 %v3949
      %4025 = vmatpush1.msra.mxu0 %v3946
      %4026 = vmatprep.subr.mxu0 0.0
      %4027 = vmatpush1.msra.mxu0 0.0
      %4028 = vmatprep.subr.mxu0 0.0
      %4029 = vmatpush1.msra.mxu0 0.0
      %4030 = vmatprep.subr.mxu0 0.0
      %4031 = vmatpush1.msra.mxu0 0.0
      %4032 = vmatprep.subr.mxu0 0.0
      %4033 = vmatpush1.msra.mxu0 0.0
      %4034 = vmatprep.subr.mxu0 0.0
      %4035 = vmatpush1.msra.mxu0 0.0
      %4036 = vmatprep.subr.mxu0 0.0
      %4037 = vmatpush1.msra.mxu0 0.0
      %4038 = vmatprep.subr.mxu0 0.0
      %4039 = vmatpush1.msra.mxu0 0.0
      %4040 = vmatprep.subr.mxu0 0.0
      %4041 = vmatpush1.msra.mxu0 0.0
      %4042 = vmatprep.subr.mxu0 0.0
      %4043 = vmatpush1.msra.mxu0 0.0
      %4044 = vmatprep.subr.mxu0 0.0
      %4045 = vmatpush1.msra.mxu0 0.0
      %4046 = vmatprep.subr.mxu0 0.0
      %4047 = vmatpush1.msra.mxu0 0.0
      %4048 = vmatprep.subr.mxu0 0.0
      %4049 = vmatpush1.msra.mxu0 0.0
      %4050 = vmatprep.subr.mxu0 0.0
      %4051 = vmatpush1.msra.mxu0 0.0
      %4052 = vmatprep.subr.mxu0 0.0
      %4053 = vmatpush1.msra.mxu0 0.0
      %4054 = vmatprep.subr.mxu0 0.0
      %4055 = vmatpush1.msra.mxu0 0.0
      %4056 = vmatprep.subr.mxu0 0.0
      %4057 = vmatpush1.msra.mxu0 0.0
      %4058 = vmatprep.subr.mxu0 0.0
      %4059 = vmatpush1.msra.mxu0 0.0
      %4060 = vmatprep.subr.mxu0 0.0
      %4061 = vmatpush1.msra.mxu0 0.0
      %4062 = vmatprep.subr.mxu0 0.0
      %4063 = vmatpush1.msra.mxu0 0.0
      %4064 = vmatprep.subr.mxu0 0.0
      %4065 = vmatpush1.msra.mxu0 0.0
      %4066 = vmatprep.subr.mxu0 0.0
      %4067 = vmatpush1.msra.mxu0 0.0
      %4068 = vmatprep.subr.mxu0 0.0
      %4069 = vmatpush1.msra.mxu0 0.0
      %4070 = vmatprep.subr.mxu0 0.0
      %4071 = vmatpush1.msra.mxu0 0.0
      %4072 = vmatprep.subr.mxu0 0.0
      %4073 = vmatpush1.msra.mxu0 0.0
      %4074 = vmatprep.subr.mxu0 0.0
      %4075 = vmatpush1.msra.mxu0 0.0
      %4076 = vmatprep.subr.mxu0 0.0
      %4077 = vmatpush1.msra.mxu0 0.0
      %4078 = vmatprep.subr.mxu0 0.0
      %4079 = vmatpush1.msra.mxu0 0.0
      %4080 = vmatprep.subr.mxu0 0.0
      %4081 = vmatpush1.msra.mxu0 0.0
      %4082 = vmatprep.subr.mxu0 0.0
      %4083 = vmatpush1.msra.mxu0 0.0
      %4084 = vmatprep.subr.mxu0 0.0
      %4085 = vmatpush1.msra.mxu0 0.0
      %4086 = vmatprep.mubr.f32.mxu0 0.0
      %4087 = vmatmul.mubr.f32.gmra.mrb[0].mxu0 %v3937
      %v4088 = vpop.f32.mrb[0].mxu0
      %v4089 = vadd.f32 0.0, %v4088
      %v4090 = vpop.f32.mrb[0].mxu0
      %v4091 = vadd.f32 0.0, %v4090
      %4092 = vdwg.mxu0
      %v4093 = vmul.f32 %v4018, %v853
      %v4094 = vmul.f32 %v4020, %v857
      %v4095 = vmul.f32 %v4089, %v861
      %v4096 = vmul.f32 %v4091, %v865
      %v4097 = vadd.f32 %v3908, %v4093
      %v4098 = vadd.f32 %v3909, %v4094
      %v4099 = vadd.f32 %v3910, %v4095
      %v4100 = vadd.f32 %v3911, %v4096
      %4101 = vrot.lane.b32.xlu0 %v3516, 1
      %v4102 = vpop.permute.xlu0 %4101
      %4103 = vrot.lane.b32.xlu0 %v3520, 1
      %v4104 = vpop.permute.xlu0 %4103
      %4105 = vrot.lane.b32.xlu0 %v3517, 1
      %v4106 = vpop.permute.xlu0 %4105
      %4107 = vrot.lane.b32.xlu0 %v3521, 1
      %v4108 = vpop.permute.xlu0 %4107
      %4109 = vrot.lane.b32.xlu0 %v3518, 1
      %v4110 = vpop.permute.xlu0 %4109
      %4111 = vrot.lane.b32.xlu0 %v3522, 1
      %v4112 = vpop.permute.xlu0 %4111
      %4113 = vrot.lane.b32.xlu0 %v3519, 1
      %v4114 = vpop.permute.xlu0 %4113
      %4115 = vrot.lane.b32.xlu0 %v3523, 1
      %v4116 = vpop.permute.xlu0 %4115
      %v4117 = vsel %vm882, %v4110, %v4114
      %v4118 = vsel %vm882, %v4112, %v4116
      %v4119 = vsel %vm882, %v4106, %v4110
      %v4120 = vsel %vm882, %v4108, %v4112
      %v4121 = vsel %vm882, %v4102, %v4106
      %v4122 = vsel %vm882, %v4104, %v4108
      %v4123 = vsel %vm882, %v4114, %v4102
      %v4124 = vsel %vm882, %v4116, %v4104
      %v4126 = vsel %vm3557, %v3527, 0
      %v4129 = vsel %vm307, %v4124, 0
      %v4132 = vsel %vm307, %v4122, 0
      %v4135 = vsel %vm307, %v4120, 0
      %v4138 = vsel %vm307, %v4118, 0
      %4140 = vmatprep.subr.mxu0 %v4121
      %4141 = vmatpush1.msra.mxu0 %v4123
      %4142 = vmatprep.subr.mxu0 %v4132
      %4143 = vmatpush1.msra.mxu0 %v4129
      %4144 = vmatprep.subr.mxu0 0.0
      %4145 = vmatpush1.msra.mxu0 0.0
      %4146 = vmatprep.subr.mxu0 0.0
      %4147 = vmatpush1.msra.mxu0 0.0
      %4148 = vmatprep.subr.mxu0 0.0
      %4149 = vmatpush1.msra.mxu0 0.0
      %4150 = vmatprep.subr.mxu0 0.0
      %4151 = vmatpush1.msra.mxu0 0.0
      %4152 = vmatprep.subr.mxu0 0.0
      %4153 = vmatpush1.msra.mxu0 0.0
      %4154 = vmatprep.subr.mxu0 0.0
      %4155 = vmatpush1.msra.mxu0 0.0
      %4156 = vmatprep.subr.mxu0 0.0
      %4157 = vmatpush1.msra.mxu0 0.0
      %4158 = vmatprep.subr.mxu0 0.0
      %4159 = vmatpush1.msra.mxu0 0.0
      %4160 = vmatprep.subr.mxu0 0.0
      %4161 = vmatpush1.msra.mxu0 0.0
      %4162 = vmatprep.subr.mxu0 0.0
      %4163 = vmatpush1.msra.mxu0 0.0
      %4164 = vmatprep.subr.mxu0 0.0
      %4165 = vmatpush1.msra.mxu0 0.0
      %4166 = vmatprep.subr.mxu0 0.0
      %4167 = vmatpush1.msra.mxu0 0.0
      %4168 = vmatprep.subr.mxu0 0.0
      %4169 = vmatpush1.msra.mxu0 0.0
      %4170 = vmatprep.subr.mxu0 0.0
      %4171 = vmatpush1.msra.mxu0 0.0
      %4172 = vmatprep.subr.mxu0 0.0
      %4173 = vmatpush1.msra.mxu0 0.0
      %4174 = vmatprep.subr.mxu0 0.0
      %4175 = vmatpush1.msra.mxu0 0.0
      %4176 = vmatprep.subr.mxu0 0.0
      %4177 = vmatpush1.msra.mxu0 0.0
      %4178 = vmatprep.subr.mxu0 0.0
      %4179 = vmatpush1.msra.mxu0 0.0
      %4180 = vmatprep.subr.mxu0 0.0
      %4181 = vmatpush1.msra.mxu0 0.0
      %4182 = vmatprep.subr.mxu0 0.0
      %4183 = vmatpush1.msra.mxu0 0.0
      %4184 = vmatprep.subr.mxu0 0.0
      %4185 = vmatpush1.msra.mxu0 0.0
      %4186 = vmatprep.subr.mxu0 0.0
      %4187 = vmatpush1.msra.mxu0 0.0
      %4188 = vmatprep.subr.mxu0 0.0
      %4189 = vmatpush1.msra.mxu0 0.0
      %4190 = vmatprep.subr.mxu0 0.0
      %4191 = vmatpush1.msra.mxu0 0.0
      %4192 = vmatprep.subr.mxu0 0.0
      %4193 = vmatpush1.msra.mxu0 0.0
      %4194 = vmatprep.subr.mxu0 0.0
      %4195 = vmatpush1.msra.mxu0 0.0
      %4196 = vmatprep.subr.mxu0 0.0
      %4197 = vmatpush1.msra.mxu0 0.0
      %4198 = vmatprep.subr.mxu0 0.0
      %4199 = vmatpush1.msra.mxu0 0.0
      %4200 = vmatprep.subr.mxu0 0.0
      %4201 = vmatpush1.msra.mxu0 0.0
      %4202 = vmatprep.subr.mxu0 0.0
      %4203 = vmatpush1.msra.mxu0 0.0
      %4204 = vmatprep.mubr.f32.mxu0 0.0
      %4205 = vmatmul.mubr.f32.gmra.mrb[0].mxu0 %v4126
      %v4206 = vpop.f32.mrb[0].mxu0
      %v4207 = vadd.f32 0.0, %v4206
      %v4208 = vpop.f32.mrb[0].mxu0
      %v4209 = vadd.f32 0.0, %v4208
      %4210 = vdwg.mxu0
      %4211 = vmatprep.subr.mxu0 %v4117
      %4212 = vmatpush1.msra.mxu0 %v4119
      %4213 = vmatprep.subr.mxu0 %v4138
      %4214 = vmatpush1.msra.mxu0 %v4135
      %4215 = vmatprep.subr.mxu0 0.0
      %4216 = vmatpush1.msra.mxu0 0.0
      %4217 = vmatprep.subr.mxu0 0.0
      %4218 = vmatpush1.msra.mxu0 0.0
      %4219 = vmatprep.subr.mxu0 0.0
      %4220 = vmatpush1.msra.mxu0 0.0
      %4221 = vmatprep.subr.mxu0 0.0
      %4222 = vmatpush1.msra.mxu0 0.0
      %4223 = vmatprep.subr.mxu0 0.0
      %4224 = vmatpush1.msra.mxu0 0.0
      %4225 = vmatprep.subr.mxu0 0.0
      %4226 = vmatpush1.msra.mxu0 0.0
      %4227 = vmatprep.subr.mxu0 0.0
      %4228 = vmatpush1.msra.mxu0 0.0
      %4229 = vmatprep.subr.mxu0 0.0
      %4230 = vmatpush1.msra.mxu0 0.0
      %4231 = vmatprep.subr.mxu0 0.0
      %4232 = vmatpush1.msra.mxu0 0.0
      %4233 = vmatprep.subr.mxu0 0.0
      %4234 = vmatpush1.msra.mxu0 0.0
      %4235 = vmatprep.subr.mxu0 0.0
      %4236 = vmatpush1.msra.mxu0 0.0
      %4237 = vmatprep.subr.mxu0 0.0
      %4238 = vmatpush1.msra.mxu0 0.0
      %4239 = vmatprep.subr.mxu0 0.0
      %4240 = vmatpush1.msra.mxu0 0.0
      %4241 = vmatprep.subr.mxu0 0.0
      %4242 = vmatpush1.msra.mxu0 0.0
      %4243 = vmatprep.subr.mxu0 0.0
      %4244 = vmatpush1.msra.mxu0 0.0
      %4245 = vmatprep.subr.mxu0 0.0
      %4246 = vmatpush1.msra.mxu0 0.0
      %4247 = vmatprep.subr.mxu0 0.0
      %4248 = vmatpush1.msra.mxu0 0.0
      %4249 = vmatprep.subr.mxu0 0.0
      %4250 = vmatpush1.msra.mxu0 0.0
      %4251 = vmatprep.subr.mxu0 0.0
      %4252 = vmatpush1.msra.mxu0 0.0
      %4253 = vmatprep.subr.mxu0 0.0
      %4254 = vmatpush1.msra.mxu0 0.0
      %4255 = vmatprep.subr.mxu0 0.0
      %4256 = vmatpush1.msra.mxu0 0.0
      %4257 = vmatprep.subr.mxu0 0.0
      %4258 = vmatpush1.msra.mxu0 0.0
      %4259 = vmatprep.subr.mxu0 0.0
      %4260 = vmatpush1.msra.mxu0 0.0
      %4261 = vmatprep.subr.mxu0 0.0
      %4262 = vmatpush1.msra.mxu0 0.0
      %4263 = vmatprep.subr.mxu0 0.0
      %4264 = vmatpush1.msra.mxu0 0.0
      %4265 = vmatprep.subr.mxu0 0.0
      %4266 = vmatpush1.msra.mxu0 0.0
      %4267 = vmatprep.subr.mxu0 0.0
      %4268 = vmatpush1.msra.mxu0 0.0
      %4269 = vmatprep.subr.mxu0 0.0
      %4270 = vmatpush1.msra.mxu0 0.0
      %4271 = vmatprep.subr.mxu0 0.0
      %4272 = vmatpush1.msra.mxu0 0.0
      %4273 = vmatprep.subr.mxu0 0.0
      %4274 = vmatpush1.msra.mxu0 0.0
      %4275 = vmatprep.mubr.f32.mxu0 0.0
      %4276 = vmatmul.mubr.f32.gmra.mrb[0].mxu0 %v4126
      %v4277 = vpop.f32.mrb[0].mxu0
      %v4278 = vadd.f32 0.0, %v4277
      %v4279 = vpop.f32.mrb[0].mxu0
      %v4280 = vadd.f32 0.0, %v4279
      %4281 = vdwg.mxu0
      %v4282 = vmul.f32 %v4207, %v1047
      %v4283 = vmul.f32 %v4209, %v1051
      %v4284 = vmul.f32 %v4278, %v1055
      %v4285 = vmul.f32 %v4280, %v1059
      %v4286 = vadd.f32 %v4097, %v4282
      %v4287 = vadd.f32 %v4098, %v4283
      %v4288 = vadd.f32 %v4099, %v4284
      %v4289 = vadd.f32 %v4100, %v4285
      %v4291 = vsel %vm3557, %v3528, 0
      %v4294 = vsel %vm307, %v3520, 0
      %v4297 = vsel %vm307, %v3521, 0
      %v4300 = vsel %vm307, %v3522, 0
      %v4303 = vsel %vm307, %v3523, 0
      %4305 = vmatprep.subr.mxu0 %v3517
      %4306 = vmatpush1.msra.mxu0 %v3516
      %4307 = vmatprep.subr.mxu0 %v4297
      %4308 = vmatpush1.msra.mxu0 %v4294
      %4309 = vmatprep.subr.mxu0 0.0
      %4310 = vmatpush1.msra.mxu0 0.0
      %4311 = vmatprep.subr.mxu0 0.0
      %4312 = vmatpush1.msra.mxu0 0.0
      %4313 = vmatprep.subr.mxu0 0.0
      %4314 = vmatpush1.msra.mxu0 0.0
      %4315 = vmatprep.subr.mxu0 0.0
      %4316 = vmatpush1.msra.mxu0 0.0
      %4317 = vmatprep.subr.mxu0 0.0
      %4318 = vmatpush1.msra.mxu0 0.0
      %4319 = vmatprep.subr.mxu0 0.0
      %4320 = vmatpush1.msra.mxu0 0.0
      %4321 = vmatprep.subr.mxu0 0.0
      %4322 = vmatpush1.msra.mxu0 0.0
      %4323 = vmatprep.subr.mxu0 0.0
      %4324 = vmatpush1.msra.mxu0 0.0
      %4325 = vmatprep.subr.mxu0 0.0
      %4326 = vmatpush1.msra.mxu0 0.0
      %4327 = vmatprep.subr.mxu0 0.0
      %4328 = vmatpush1.msra.mxu0 0.0
      %4329 = vmatprep.subr.mxu0 0.0
      %4330 = vmatpush1.msra.mxu0 0.0
      %4331 = vmatprep.subr.mxu0 0.0
      %4332 = vmatpush1.msra.mxu0 0.0
      %4333 = vmatprep.subr.mxu0 0.0
      %4334 = vmatpush1.msra.mxu0 0.0
      %4335 = vmatprep.subr.mxu0 0.0
      %4336 = vmatpush1.msra.mxu0 0.0
      %4337 = vmatprep.subr.mxu0 0.0
      %4338 = vmatpush1.msra.mxu0 0.0
      %4339 = vmatprep.subr.mxu0 0.0
      %4340 = vmatpush1.msra.mxu0 0.0
      %4341 = vmatprep.subr.mxu0 0.0
      %4342 = vmatpush1.msra.mxu0 0.0
      %4343 = vmatprep.subr.mxu0 0.0
      %4344 = vmatpush1.msra.mxu0 0.0
      %4345 = vmatprep.subr.mxu0 0.0
      %4346 = vmatpush1.msra.mxu0 0.0
      %4347 = vmatprep.subr.mxu0 0.0
      %4348 = vmatpush1.msra.mxu0 0.0
      %4349 = vmatprep.subr.mxu0 0.0
      %4350 = vmatpush1.msra.mxu0 0.0
      %4351 = vmatprep.subr.mxu0 0.0
      %4352 = vmatpush1.msra.mxu0 0.0
      %4353 = vmatprep.subr.mxu0 0.0
      %4354 = vmatpush1.msra.mxu0 0.0
      %4355 = vmatprep.subr.mxu0 0.0
      %4356 = vmatpush1.msra.mxu0 0.0
      %4357 = vmatprep.subr.mxu0 0.0
      %4358 = vmatpush1.msra.mxu0 0.0
      %4359 = vmatprep.subr.mxu0 0.0
      %4360 = vmatpush1.msra.mxu0 0.0
      %4361 = vmatprep.subr.mxu0 0.0
      %4362 = vmatpush1.msra.mxu0 0.0
      %4363 = vmatprep.subr.mxu0 0.0
      %4364 = vmatpush1.msra.mxu0 0.0
      %4365 = vmatprep.subr.mxu0 0.0
      %4366 = vmatpush1.msra.mxu0 0.0
      %4367 = vmatprep.subr.mxu0 0.0
      %4368 = vmatpush1.msra.mxu0 0.0
      %4369 = vmatprep.mubr.f32.mxu0 0.0
      %4370 = vmatmul.mubr.f32.gmra.mrb[0].mxu0 %v4291
      %v4371 = vpop.f32.mrb[0].mxu0
      %v4372 = vadd.f32 0.0, %v4371
      %v4373 = vpop.f32.mrb[0].mxu0
      %v4374 = vadd.f32 0.0, %v4373
      %4375 = vdwg.mxu0
      %4376 = vmatprep.subr.mxu0 %v3519
      %4377 = vmatpush1.msra.mxu0 %v3518
      %4378 = vmatprep.subr.mxu0 %v4303
      %4379 = vmatpush1.msra.mxu0 %v4300
      %4380 = vmatprep.subr.mxu0 0.0
      %4381 = vmatpush1.msra.mxu0 0.0
      %4382 = vmatprep.subr.mxu0 0.0
      %4383 = vmatpush1.msra.mxu0 0.0
      %4384 = vmatprep.subr.mxu0 0.0
      %4385 = vmatpush1.msra.mxu0 0.0
      %4386 = vmatprep.subr.mxu0 0.0
      %4387 = vmatpush1.msra.mxu0 0.0
      %4388 = vmatprep.subr.mxu0 0.0
      %4389 = vmatpush1.msra.mxu0 0.0
      %4390 = vmatprep.subr.mxu0 0.0
      %4391 = vmatpush1.msra.mxu0 0.0
      %4392 = vmatprep.subr.mxu0 0.0
      %4393 = vmatpush1.msra.mxu0 0.0
      %4394 = vmatprep.subr.mxu0 0.0
      %4395 = vmatpush1.msra.mxu0 0.0
      %4396 = vmatprep.subr.mxu0 0.0
      %4397 = vmatpush1.msra.mxu0 0.0
      %4398 = vmatprep.subr.mxu0 0.0
      %4399 = vmatpush1.msra.mxu0 0.0
      %4400 = vmatprep.subr.mxu0 0.0
      %4401 = vmatpush1.msra.mxu0 0.0
      %4402 = vmatprep.subr.mxu0 0.0
      %4403 = vmatpush1.msra.mxu0 0.0
      %4404 = vmatprep.subr.mxu0 0.0
      %4405 = vmatpush1.msra.mxu0 0.0
      %4406 = vmatprep.subr.mxu0 0.0
      %4407 = vmatpush1.msra.mxu0 0.0
      %4408 = vmatprep.subr.mxu0 0.0
      %4409 = vmatpush1.msra.mxu0 0.0
      %4410 = vmatprep.subr.mxu0 0.0
      %4411 = vmatpush1.msra.mxu0 0.0
      %4412 = vmatprep.subr.mxu0 0.0
      %4413 = vmatpush1.msra.mxu0 0.0
      %4414 = vmatprep.subr.mxu0 0.0
      %4415 = vmatpush1.msra.mxu0 0.0
      %4416 = vmatprep.subr.mxu0 0.0
      %4417 = vmatpush1.msra.mxu0 0.0
      %4418 = vmatprep.subr.mxu0 0.0
      %4419 = vmatpush1.msra.mxu0 0.0
      %4420 = vmatprep.subr.mxu0 0.0
      %4421 = vmatpush1.msra.mxu0 0.0
      %4422 = vmatprep.subr.mxu0 0.0
      %4423 = vmatpush1.msra.mxu0 0.0
      %4424 = vmatprep.subr.mxu0 0.0
      %4425 = vmatpush1.msra.mxu0 0.0
      %4426 = vmatprep.subr.mxu0 0.0
      %4427 = vmatpush1.msra.mxu0 0.0
      %4428 = vmatprep.subr.mxu0 0.0
      %4429 = vmatpush1.msra.mxu0 0.0
      %4430 = vmatprep.subr.mxu0 0.0
      %4431 = vmatpush1.msra.mxu0 0.0
      %4432 = vmatprep.subr.mxu0 0.0
      %4433 = vmatpush1.msra.mxu0 0.0
      %4434 = vmatprep.subr.mxu0 0.0
      %4435 = vmatpush1.msra.mxu0 0.0
      %4436 = vmatprep.subr.mxu0 0.0
      %4437 = vmatpush1.msra.mxu0 0.0
      %4438 = vmatprep.subr.mxu0 0.0
      %4439 = vmatpush1.msra.mxu0 0.0
      %4440 = vmatprep.mubr.f32.mxu0 0.0
      %4441 = vmatmul.mubr.f32.gmra.mrb[0].mxu0 %v4291
      %v4442 = vpop.f32.mrb[0].mxu0
      %v4443 = vadd.f32 0.0, %v4442
      %v4444 = vpop.f32.mrb[0].mxu0
      %v4445 = vadd.f32 0.0, %v4444
      %4446 = vdwg.mxu0
      %v4447 = vadd.f32 %v4286, %v4372
      %v4448 = vadd.f32 %v4287, %v4374
      %v4449 = vadd.f32 %v4288, %v4443
      %v4450 = vadd.f32 %v4289, %v4445
      %4451 = vrot.lane.b32.xlu0 %v3516, 127
      %v4452 = vpop.permute.xlu0 %4451
      %4453 = vrot.lane.b32.xlu0 %v3520, 127
      %v4454 = vpop.permute.xlu0 %4453
      %4455 = vrot.lane.b32.xlu0 %v3517, 127
      %v4456 = vpop.permute.xlu0 %4455
      %4457 = vrot.lane.b32.xlu0 %v3521, 127
      %v4458 = vpop.permute.xlu0 %4457
      %4459 = vrot.lane.b32.xlu0 %v3518, 127
      %v4460 = vpop.permute.xlu0 %4459
      %4461 = vrot.lane.b32.xlu0 %v3522, 127
      %v4462 = vpop.permute.xlu0 %4461
      %4463 = vrot.lane.b32.xlu0 %v3519, 127
      %v4464 = vpop.permute.xlu0 %4463
      %4465 = vrot.lane.b32.xlu0 %v3523, 127
      %v4466 = vpop.permute.xlu0 %4465
      %v4467 = vsel %vm1237, %v4460, %v4464
      %v4468 = vsel %vm1237, %v4462, %v4466
      %v4469 = vsel %vm1237, %v4456, %v4460
      %v4470 = vsel %vm1237, %v4458, %v4462
      %v4471 = vsel %vm1237, %v4452, %v4456
      %v4472 = vsel %vm1237, %v4454, %v4458
      %v4473 = vsel %vm1237, %v4464, %v4452
      %v4474 = vsel %vm1237, %v4466, %v4454
      %v4476 = vsel %vm3557, %v3529, 0
      %v4479 = vsel %vm307, %v4472, 0
      %v4482 = vsel %vm307, %v4470, 0
      %v4485 = vsel %vm307, %v4468, 0
      %v4488 = vsel %vm307, %v4474, 0
      %4490 = vmatprep.subr.mxu0 %v4469
      %4491 = vmatpush1.msra.mxu0 %v4471
      %4492 = vmatprep.subr.mxu0 %v4482
      %4493 = vmatpush1.msra.mxu0 %v4479
      %4494 = vmatprep.subr.mxu0 0.0
      %4495 = vmatpush1.msra.mxu0 0.0
      %4496 = vmatprep.subr.mxu0 0.0
      %4497 = vmatpush1.msra.mxu0 0.0
      %4498 = vmatprep.subr.mxu0 0.0
      %4499 = vmatpush1.msra.mxu0 0.0
      %4500 = vmatprep.subr.mxu0 0.0
      %4501 = vmatpush1.msra.mxu0 0.0
      %4502 = vmatprep.subr.mxu0 0.0
      %4503 = vmatpush1.msra.mxu0 0.0
      %4504 = vmatprep.subr.mxu0 0.0
      %4505 = vmatpush1.msra.mxu0 0.0
      %4506 = vmatprep.subr.mxu0 0.0
      %4507 = vmatpush1.msra.mxu0 0.0
      %4508 = vmatprep.subr.mxu0 0.0
      %4509 = vmatpush1.msra.mxu0 0.0
      %4510 = vmatprep.subr.mxu0 0.0
      %4511 = vmatpush1.msra.mxu0 0.0
      %4512 = vmatprep.subr.mxu0 0.0
      %4513 = vmatpush1.msra.mxu0 0.0
      %4514 = vmatprep.subr.mxu0 0.0
      %4515 = vmatpush1.msra.mxu0 0.0
      %4516 = vmatprep.subr.mxu0 0.0
      %4517 = vmatpush1.msra.mxu0 0.0
      %4518 = vmatprep.subr.mxu0 0.0
      %4519 = vmatpush1.msra.mxu0 0.0
      %4520 = vmatprep.subr.mxu0 0.0
      %4521 = vmatpush1.msra.mxu0 0.0
      %4522 = vmatprep.subr.mxu0 0.0
      %4523 = vmatpush1.msra.mxu0 0.0
      %4524 = vmatprep.subr.mxu0 0.0
      %4525 = vmatpush1.msra.mxu0 0.0
      %4526 = vmatprep.subr.mxu0 0.0
      %4527 = vmatpush1.msra.mxu0 0.0
      %4528 = vmatprep.subr.mxu0 0.0
      %4529 = vmatpush1.msra.mxu0 0.0
      %4530 = vmatprep.subr.mxu0 0.0
      %4531 = vmatpush1.msra.mxu0 0.0
      %4532 = vmatprep.subr.mxu0 0.0
      %4533 = vmatpush1.msra.mxu0 0.0
      %4534 = vmatprep.subr.mxu0 0.0
      %4535 = vmatpush1.msra.mxu0 0.0
      %4536 = vmatprep.subr.mxu0 0.0
      %4537 = vmatpush1.msra.mxu0 0.0
      %4538 = vmatprep.subr.mxu0 0.0
      %4539 = vmatpush1.msra.mxu0 0.0
      %4540 = vmatprep.subr.mxu0 0.0
      %4541 = vmatpush1.msra.mxu0 0.0
      %4542 = vmatprep.subr.mxu0 0.0
      %4543 = vmatpush1.msra.mxu0 0.0
      %4544 = vmatprep.subr.mxu0 0.0
      %4545 = vmatpush1.msra.mxu0 0.0
      %4546 = vmatprep.subr.mxu0 0.0
      %4547 = vmatpush1.msra.mxu0 0.0
      %4548 = vmatprep.subr.mxu0 0.0
      %4549 = vmatpush1.msra.mxu0 0.0
      %4550 = vmatprep.subr.mxu0 0.0
      %4551 = vmatpush1.msra.mxu0 0.0
      %4552 = vmatprep.subr.mxu0 0.0
      %4553 = vmatpush1.msra.mxu0 0.0
      %4554 = vmatprep.mubr.f32.mxu0 0.0
      %4555 = vmatmul.mubr.f32.gmra.mrb[0].mxu0 %v4476
      %v4556 = vpop.f32.mrb[0].mxu0
      %v4557 = vadd.f32 0.0, %v4556
      %v4558 = vpop.f32.mrb[0].mxu0
      %v4559 = vadd.f32 0.0, %v4558
      %4560 = vdwg.mxu0
      %4561 = vmatprep.subr.mxu0 %v4473
      %4562 = vmatpush1.msra.mxu0 %v4467
      %4563 = vmatprep.subr.mxu0 %v4488
      %4564 = vmatpush1.msra.mxu0 %v4485
      %4565 = vmatprep.subr.mxu0 0.0
      %4566 = vmatpush1.msra.mxu0 0.0
      %4567 = vmatprep.subr.mxu0 0.0
      %4568 = vmatpush1.msra.mxu0 0.0
      %4569 = vmatprep.subr.mxu0 0.0
      %4570 = vmatpush1.msra.mxu0 0.0
      %4571 = vmatprep.subr.mxu0 0.0
      %4572 = vmatpush1.msra.mxu0 0.0
      %4573 = vmatprep.subr.mxu0 0.0
      %4574 = vmatpush1.msra.mxu0 0.0
      %4575 = vmatprep.subr.mxu0 0.0
      %4576 = vmatpush1.msra.mxu0 0.0
      %4577 = vmatprep.subr.mxu0 0.0
      %4578 = vmatpush1.msra.mxu0 0.0
      %4579 = vmatprep.subr.mxu0 0.0
      %4580 = vmatpush1.msra.mxu0 0.0
      %4581 = vmatprep.subr.mxu0 0.0
      %4582 = vmatpush1.msra.mxu0 0.0
      %4583 = vmatprep.subr.mxu0 0.0
      %4584 = vmatpush1.msra.mxu0 0.0
      %4585 = vmatprep.subr.mxu0 0.0
      %4586 = vmatpush1.msra.mxu0 0.0
      %4587 = vmatprep.subr.mxu0 0.0
      %4588 = vmatpush1.msra.mxu0 0.0
      %4589 = vmatprep.subr.mxu0 0.0
      %4590 = vmatpush1.msra.mxu0 0.0
      %4591 = vmatprep.subr.mxu0 0.0
      %4592 = vmatpush1.msra.mxu0 0.0
      %4593 = vmatprep.subr.mxu0 0.0
      %4594 = vmatpush1.msra.mxu0 0.0
      %4595 = vmatprep.subr.mxu0 0.0
      %4596 = vmatpush1.msra.mxu0 0.0
      %4597 = vmatprep.subr.mxu0 0.0
      %4598 = vmatpush1.msra.mxu0 0.0
      %4599 = vmatprep.subr.mxu0 0.0
      %4600 = vmatpush1.msra.mxu0 0.0
      %4601 = vmatprep.subr.mxu0 0.0
      %4602 = vmatpush1.msra.mxu0 0.0
      %4603 = vmatprep.subr.mxu0 0.0
      %4604 = vmatpush1.msra.mxu0 0.0
      %4605 = vmatprep.subr.mxu0 0.0
      %4606 = vmatpush1.msra.mxu0 0.0
      %4607 = vmatprep.subr.mxu0 0.0
      %4608 = vmatpush1.msra.mxu0 0.0
      %4609 = vmatprep.subr.mxu0 0.0
      %4610 = vmatpush1.msra.mxu0 0.0
      %4611 = vmatprep.subr.mxu0 0.0
      %4612 = vmatpush1.msra.mxu0 0.0
      %4613 = vmatprep.subr.mxu0 0.0
      %4614 = vmatpush1.msra.mxu0 0.0
      %4615 = vmatprep.subr.mxu0 0.0
      %4616 = vmatpush1.msra.mxu0 0.0
      %4617 = vmatprep.subr.mxu0 0.0
      %4618 = vmatpush1.msra.mxu0 0.0
      %4619 = vmatprep.subr.mxu0 0.0
      %4620 = vmatpush1.msra.mxu0 0.0
      %4621 = vmatprep.subr.mxu0 0.0
      %4622 = vmatpush1.msra.mxu0 0.0
      %4623 = vmatprep.subr.mxu0 0.0
      %4624 = vmatpush1.msra.mxu0 0.0
      %4625 = vmatprep.mubr.f32.mxu0 0.0
      %4626 = vmatmul.mubr.f32.gmra.mrb[0].mxu0 %v4476
      %v4627 = vpop.f32.mrb[0].mxu0
      %v4628 = vadd.f32 0.0, %v4627
      %v4629 = vpop.f32.mrb[0].mxu0
      %v4630 = vadd.f32 0.0, %v4629
      %4631 = vdwg.mxu0
      %v4632 = vmul.f32 %v4557, %v1402
      %v4633 = vmul.f32 %v4559, %v1406
      %v4634 = vmul.f32 %v4628, %v1410
      %v4635 = vmul.f32 %v4630, %v1414
      %v4636 = vadd.f32 %v4447, %v4632
      %v4637 = vadd.f32 %v4448, %v4633
      %v4638 = vadd.f32 %v4449, %v4634
      %v4639 = vadd.f32 %v4450, %v4635
      %4640 = vrot.lane.b32.xlu0 %v3516, 113
      %v4641 = vpop.permute.xlu0 %4640
      %4642 = vrot.lane.b32.xlu0 %v3520, 113
      %v4643 = vpop.permute.xlu0 %4642
      %4644 = vrot.lane.b32.xlu0 %v3517, 113
      %v4645 = vpop.permute.xlu0 %4644
      %4646 = vrot.lane.b32.xlu0 %v3521, 113
      %v4647 = vpop.permute.xlu0 %4646
      %4648 = vrot.lane.b32.xlu0 %v3518, 113
      %v4649 = vpop.permute.xlu0 %4648
      %4650 = vrot.lane.b32.xlu0 %v3522, 113
      %v4651 = vpop.permute.xlu0 %4650
      %4652 = vrot.lane.b32.xlu0 %v3519, 113
      %v4653 = vpop.permute.xlu0 %4652
      %4654 = vrot.lane.b32.xlu0 %v3523, 113
      %v4655 = vpop.permute.xlu0 %4654
      %v4656 = vsel %vm1431, %v4649, %v4653
      %v4657 = vsel %vm1431, %v4651, %v4655
      %v4658 = vsel %vm1431, %v4645, %v4649
      %v4659 = vsel %vm1431, %v4647, %v4651
      %v4660 = vsel %vm1431, %v4641, %v4645
      %v4661 = vsel %vm1431, %v4643, %v4647
      %v4662 = vsel %vm1431, %v4653, %v4641
      %v4663 = vsel %vm1431, %v4655, %v4643
      %v4665 = vsel %vm3557, %v3530, 0
      %v4668 = vsel %vm307, %v4661, 0
      %v4671 = vsel %vm307, %v4659, 0
      %v4674 = vsel %vm307, %v4657, 0
      %v4677 = vsel %vm307, %v4663, 0
      %4679 = vmatprep.subr.mxu0 %v4658
      %4680 = vmatpush1.msra.mxu0 %v4660
      %4681 = vmatprep.subr.mxu0 %v4671
      %4682 = vmatpush1.msra.mxu0 %v4668
      %4683 = vmatprep.subr.mxu0 0.0
      %4684 = vmatpush1.msra.mxu0 0.0
      %4685 = vmatprep.subr.mxu0 0.0
      %4686 = vmatpush1.msra.mxu0 0.0
      %4687 = vmatprep.subr.mxu0 0.0
      %4688 = vmatpush1.msra.mxu0 0.0
      %4689 = vmatprep.subr.mxu0 0.0
      %4690 = vmatpush1.msra.mxu0 0.0
      %4691 = vmatprep.subr.mxu0 0.0
      %4692 = vmatpush1.msra.mxu0 0.0
      %4693 = vmatprep.subr.mxu0 0.0
      %4694 = vmatpush1.msra.mxu0 0.0
      %4695 = vmatprep.subr.mxu0 0.0
      %4696 = vmatpush1.msra.mxu0 0.0
      %4697 = vmatprep.subr.mxu0 0.0
      %4698 = vmatpush1.msra.mxu0 0.0
      %4699 = vmatprep.subr.mxu0 0.0
      %4700 = vmatpush1.msra.mxu0 0.0
      %4701 = vmatprep.subr.mxu0 0.0
      %4702 = vmatpush1.msra.mxu0 0.0
      %4703 = vmatprep.subr.mxu0 0.0
      %4704 = vmatpush1.msra.mxu0 0.0
      %4705 = vmatprep.subr.mxu0 0.0
      %4706 = vmatpush1.msra.mxu0 0.0
      %4707 = vmatprep.subr.mxu0 0.0
      %4708 = vmatpush1.msra.mxu0 0.0
      %4709 = vmatprep.subr.mxu0 0.0
      %4710 = vmatpush1.msra.mxu0 0.0
      %4711 = vmatprep.subr.mxu0 0.0
      %4712 = vmatpush1.msra.mxu0 0.0
      %4713 = vmatprep.subr.mxu0 0.0
      %4714 = vmatpush1.msra.mxu0 0.0
      %4715 = vmatprep.subr.mxu0 0.0
      %4716 = vmatpush1.msra.mxu0 0.0
      %4717 = vmatprep.subr.mxu0 0.0
      %4718 = vmatpush1.msra.mxu0 0.0
      %4719 = vmatprep.subr.mxu0 0.0
      %4720 = vmatpush1.msra.mxu0 0.0
      %4721 = vmatprep.subr.mxu0 0.0
      %4722 = vmatpush1.msra.mxu0 0.0
      %4723 = vmatprep.subr.mxu0 0.0
      %4724 = vmatpush1.msra.mxu0 0.0
      %4725 = vmatprep.subr.mxu0 0.0
      %4726 = vmatpush1.msra.mxu0 0.0
      %4727 = vmatprep.subr.mxu0 0.0
      %4728 = vmatpush1.msra.mxu0 0.0
      %4729 = vmatprep.subr.mxu0 0.0
      %4730 = vmatpush1.msra.mxu0 0.0
      %4731 = vmatprep.subr.mxu0 0.0
      %4732 = vmatpush1.msra.mxu0 0.0
      %4733 = vmatprep.subr.mxu0 0.0
      %4734 = vmatpush1.msra.mxu0 0.0
      %4735 = vmatprep.subr.mxu0 0.0
      %4736 = vmatpush1.msra.mxu0 0.0
      %4737 = vmatprep.subr.mxu0 0.0
      %4738 = vmatpush1.msra.mxu0 0.0
      %4739 = vmatprep.subr.mxu0 0.0
      %4740 = vmatpush1.msra.mxu0 0.0
      %4741 = vmatprep.subr.mxu0 0.0
      %4742 = vmatpush1.msra.mxu0 0.0
      %4743 = vmatprep.mubr.f32.mxu0 0.0
      %4744 = vmatmul.mubr.f32.gmra.mrb[0].mxu0 %v4665
      %v4745 = vpop.f32.mrb[0].mxu0
      %v4746 = vadd.f32 0.0, %v4745
      %v4747 = vpop.f32.mrb[0].mxu0
      %v4748 = vadd.f32 0.0, %v4747
      %4749 = vdwg.mxu0
      %4750 = vmatprep.subr.mxu0 %v4662
      %4751 = vmatpush1.msra.mxu0 %v4656
      %4752 = vmatprep.subr.mxu0 %v4677
      %4753 = vmatpush1.msra.mxu0 %v4674
      %4754 = vmatprep.subr.mxu0 0.0
      %4755 = vmatpush1.msra.mxu0 0.0
      %4756 = vmatprep.subr.mxu0 0.0
      %4757 = vmatpush1.msra.mxu0 0.0
      %4758 = vmatprep.subr.mxu0 0.0
      %4759 = vmatpush1.msra.mxu0 0.0
      %4760 = vmatprep.subr.mxu0 0.0
      %4761 = vmatpush1.msra.mxu0 0.0
      %4762 = vmatprep.subr.mxu0 0.0
      %4763 = vmatpush1.msra.mxu0 0.0
      %4764 = vmatprep.subr.mxu0 0.0
      %4765 = vmatpush1.msra.mxu0 0.0
      %4766 = vmatprep.subr.mxu0 0.0
      %4767 = vmatpush1.msra.mxu0 0.0
      %4768 = vmatprep.subr.mxu0 0.0
      %4769 = vmatpush1.msra.mxu0 0.0
      %4770 = vmatprep.subr.mxu0 0.0
      %4771 = vmatpush1.msra.mxu0 0.0
      %4772 = vmatprep.subr.mxu0 0.0
      %4773 = vmatpush1.msra.mxu0 0.0
      %4774 = vmatprep.subr.mxu0 0.0
      %4775 = vmatpush1.msra.mxu0 0.0
      %4776 = vmatprep.subr.mxu0 0.0
      %4777 = vmatpush1.msra.mxu0 0.0
      %4778 = vmatprep.subr.mxu0 0.0
      %4779 = vmatpush1.msra.mxu0 0.0
      %4780 = vmatprep.subr.mxu0 0.0
      %4781 = vmatpush1.msra.mxu0 0.0
      %4782 = vmatprep.subr.mxu0 0.0
      %4783 = vmatpush1.msra.mxu0 0.0
      %4784 = vmatprep.subr.mxu0 0.0
      %4785 = vmatpush1.msra.mxu0 0.0
      %4786 = vmatprep.subr.mxu0 0.0
      %4787 = vmatpush1.msra.mxu0 0.0
      %4788 = vmatprep.subr.mxu0 0.0
      %4789 = vmatpush1.msra.mxu0 0.0
      %4790 = vmatprep.subr.mxu0 0.0
      %4791 = vmatpush1.msra.mxu0 0.0
      %4792 = vmatprep.subr.mxu0 0.0
      %4793 = vmatpush1.msra.mxu0 0.0
      %4794 = vmatprep.subr.mxu0 0.0
      %4795 = vmatpush1.msra.mxu0 0.0
      %4796 = vmatprep.subr.mxu0 0.0
      %4797 = vmatpush1.msra.mxu0 0.0
      %4798 = vmatprep.subr.mxu0 0.0
      %4799 = vmatpush1.msra.mxu0 0.0
      %4800 = vmatprep.subr.mxu0 0.0
      %4801 = vmatpush1.msra.mxu0 0.0
      %4802 = vmatprep.subr.mxu0 0.0
      %4803 = vmatpush1.msra.mxu0 0.0
      %4804 = vmatprep.subr.mxu0 0.0
      %4805 = vmatpush1.msra.mxu0 0.0
      %4806 = vmatprep.subr.mxu0 0.0
      %4807 = vmatpush1.msra.mxu0 0.0
      %4808 = vmatprep.subr.mxu0 0.0
      %4809 = vmatpush1.msra.mxu0 0.0
      %4810 = vmatprep.subr.mxu0 0.0
      %4811 = vmatpush1.msra.mxu0 0.0
      %4812 = vmatprep.subr.mxu0 0.0
      %4813 = vmatpush1.msra.mxu0 0.0
      %4814 = vmatprep.mubr.f32.mxu0 0.0
      %4815 = vmatmul.mubr.f32.gmra.mrb[0].mxu0 %v4665
      %v4816 = vpop.f32.mrb[0].mxu0
      %v4817 = vadd.f32 0.0, %v4816
      %v4818 = vpop.f32.mrb[0].mxu0
      %v4819 = vadd.f32 0.0, %v4818
      %4820 = vdwg.mxu0
      %v4821 = vmul.f32 %v4746, %v1596
      %v4822 = vmul.f32 %v4748, %v1600
      %v4823 = vmul.f32 %v4817, %v1604
      %v4824 = vmul.f32 %v4819, %v1608
      %v4825 = vadd.f32 %v4636, %v4821
      %v4826 = vadd.f32 %v4637, %v4822
      %v4827 = vadd.f32 %v4638, %v4823
      %v4828 = vadd.f32 %v4639, %v4824
      %4829 = vrot.lane.b32.xlu0 %v3516, 112
      %v4830 = vpop.permute.xlu0 %4829
      %4831 = vrot.lane.b32.xlu0 %v3520, 112
      %v4832 = vpop.permute.xlu0 %4831
      %4833 = vrot.lane.b32.xlu0 %v3517, 112
      %v4834 = vpop.permute.xlu0 %4833
      %4835 = vrot.lane.b32.xlu0 %v3521, 112
      %v4836 = vpop.permute.xlu0 %4835
      %4837 = vrot.lane.b32.xlu0 %v3518, 112
      %v4838 = vpop.permute.xlu0 %4837
      %4839 = vrot.lane.b32.xlu0 %v3522, 112
      %v4840 = vpop.permute.xlu0 %4839
      %4841 = vrot.lane.b32.xlu0 %v3519, 112
      %v4842 = vpop.permute.xlu0 %4841
      %4843 = vrot.lane.b32.xlu0 %v3523, 112
      %v4844 = vpop.permute.xlu0 %4843
      %v4845 = vsel %vm1625, %v4838, %v4842
      %v4846 = vsel %vm1625, %v4840, %v4844
      %v4847 = vsel %vm1625, %v4834, %v4838
      %v4848 = vsel %vm1625, %v4836, %v4840
      %v4849 = vsel %vm1625, %v4830, %v4834
      %v4850 = vsel %vm1625, %v4832, %v4836
      %v4851 = vsel %vm1625, %v4842, %v4830
      %v4852 = vsel %vm1625, %v4844, %v4832
      %v4854 = vsel %vm3557, %v3531, 0
      %v4857 = vsel %vm307, %v4850, 0
      %v4860 = vsel %vm307, %v4848, 0
      %v4863 = vsel %vm307, %v4846, 0
      %v4866 = vsel %vm307, %v4852, 0
      %4868 = vmatprep.subr.mxu0 %v4847
      %4869 = vmatpush1.msra.mxu0 %v4849
      %4870 = vmatprep.subr.mxu0 %v4860
      %4871 = vmatpush1.msra.mxu0 %v4857
      %4872 = vmatprep.subr.mxu0 0.0
      %4873 = vmatpush1.msra.mxu0 0.0
      %4874 = vmatprep.subr.mxu0 0.0
      %4875 = vmatpush1.msra.mxu0 0.0
      %4876 = vmatprep.subr.mxu0 0.0
      %4877 = vmatpush1.msra.mxu0 0.0
      %4878 = vmatprep.subr.mxu0 0.0
      %4879 = vmatpush1.msra.mxu0 0.0
      %4880 = vmatprep.subr.mxu0 0.0
      %4881 = vmatpush1.msra.mxu0 0.0
      %4882 = vmatprep.subr.mxu0 0.0
      %4883 = vmatpush1.msra.mxu0 0.0
      %4884 = vmatprep.subr.mxu0 0.0
      %4885 = vmatpush1.msra.mxu0 0.0
      %4886 = vmatprep.subr.mxu0 0.0
      %4887 = vmatpush1.msra.mxu0 0.0
      %4888 = vmatprep.subr.mxu0 0.0
      %4889 = vmatpush1.msra.mxu0 0.0
      %4890 = vmatprep.subr.mxu0 0.0
      %4891 = vmatpush1.msra.mxu0 0.0
      %4892 = vmatprep.subr.mxu0 0.0
      %4893 = vmatpush1.msra.mxu0 0.0
      %4894 = vmatprep.subr.mxu0 0.0
      %4895 = vmatpush1.msra.mxu0 0.0
      %4896 = vmatprep.subr.mxu0 0.0
      %4897 = vmatpush1.msra.mxu0 0.0
      %4898 = vmatprep.subr.mxu0 0.0
      %4899 = vmatpush1.msra.mxu0 0.0
      %4900 = vmatprep.subr.mxu0 0.0
      %4901 = vmatpush1.msra.mxu0 0.0
      %4902 = vmatprep.subr.mxu0 0.0
      %4903 = vmatpush1.msra.mxu0 0.0
      %4904 = vmatprep.subr.mxu0 0.0
      %4905 = vmatpush1.msra.mxu0 0.0
      %4906 = vmatprep.subr.mxu0 0.0
      %4907 = vmatpush1.msra.mxu0 0.0
      %4908 = vmatprep.subr.mxu0 0.0
      %4909 = vmatpush1.msra.mxu0 0.0
      %4910 = vmatprep.subr.mxu0 0.0
      %4911 = vmatpush1.msra.mxu0 0.0
      %4912 = vmatprep.subr.mxu0 0.0
      %4913 = vmatpush1.msra.mxu0 0.0
      %4914 = vmatprep.subr.mxu0 0.0
      %4915 = vmatpush1.msra.mxu0 0.0
      %4916 = vmatprep.subr.mxu0 0.0
      %4917 = vmatpush1.msra.mxu0 0.0
      %4918 = vmatprep.subr.mxu0 0.0
      %4919 = vmatpush1.msra.mxu0 0.0
      %4920 = vmatprep.subr.mxu0 0.0
      %4921 = vmatpush1.msra.mxu0 0.0
      %4922 = vmatprep.subr.mxu0 0.0
      %4923 = vmatpush1.msra.mxu0 0.0
      %4924 = vmatprep.subr.mxu0 0.0
      %4925 = vmatpush1.msra.mxu0 0.0
      %4926 = vmatprep.subr.mxu0 0.0
      %4927 = vmatpush1.msra.mxu0 0.0
      %4928 = vmatprep.subr.mxu0 0.0
      %4929 = vmatpush1.msra.mxu0 0.0
      %4930 = vmatprep.subr.mxu0 0.0
      %4931 = vmatpush1.msra.mxu0 0.0
      %4932 = vmatprep.mubr.f32.mxu0 0.0
      %4933 = vmatmul.mubr.f32.gmra.mrb[0].mxu0 %v4854
      %v4934 = vpop.f32.mrb[0].mxu0
      %v4935 = vadd.f32 0.0, %v4934
      %v4936 = vpop.f32.mrb[0].mxu0
      %v4937 = vadd.f32 0.0, %v4936
      %4938 = vdwg.mxu0
      %4939 = vmatprep.subr.mxu0 %v4851
      %4940 = vmatpush1.msra.mxu0 %v4845
      %4941 = vmatprep.subr.mxu0 %v4866
      %4942 = vmatpush1.msra.mxu0 %v4863
      %4943 = vmatprep.subr.mxu0 0.0
      %4944 = vmatpush1.msra.mxu0 0.0
      %4945 = vmatprep.subr.mxu0 0.0
      %4946 = vmatpush1.msra.mxu0 0.0
      %4947 = vmatprep.subr.mxu0 0.0
      %4948 = vmatpush1.msra.mxu0 0.0
      %4949 = vmatprep.subr.mxu0 0.0
      %4950 = vmatpush1.msra.mxu0 0.0
      %4951 = vmatprep.subr.mxu0 0.0
      %4952 = vmatpush1.msra.mxu0 0.0
      %4953 = vmatprep.subr.mxu0 0.0
      %4954 = vmatpush1.msra.mxu0 0.0
      %4955 = vmatprep.subr.mxu0 0.0
      %4956 = vmatpush1.msra.mxu0 0.0
      %4957 = vmatprep.subr.mxu0 0.0
      %4958 = vmatpush1.msra.mxu0 0.0
      %4959 = vmatprep.subr.mxu0 0.0
      %4960 = vmatpush1.msra.mxu0 0.0
      %4961 = vmatprep.subr.mxu0 0.0
      %4962 = vmatpush1.msra.mxu0 0.0
      %4963 = vmatprep.subr.mxu0 0.0
      %4964 = vmatpush1.msra.mxu0 0.0
      %4965 = vmatprep.subr.mxu0 0.0
      %4966 = vmatpush1.msra.mxu0 0.0
      %4967 = vmatprep.subr.mxu0 0.0
      %4968 = vmatpush1.msra.mxu0 0.0
      %4969 = vmatprep.subr.mxu0 0.0
      %4970 = vmatpush1.msra.mxu0 0.0
      %4971 = vmatprep.subr.mxu0 0.0
      %4972 = vmatpush1.msra.mxu0 0.0
      %4973 = vmatprep.subr.mxu0 0.0
      %4974 = vmatpush1.msra.mxu0 0.0
      %4975 = vmatprep.subr.mxu0 0.0
      %4976 = vmatpush1.msra.mxu0 0.0
      %4977 = vmatprep.subr.mxu0 0.0
      %4978 = vmatpush1.msra.mxu0 0.0
      %4979 = vmatprep.subr.mxu0 0.0
      %4980 = vmatpush1.msra.mxu0 0.0
      %4981 = vmatprep.subr.mxu0 0.0
      %4982 = vmatpush1.msra.mxu0 0.0
      %4983 = vmatprep.subr.mxu0 0.0
      %4984 = vmatpush1.msra.mxu0 0.0
      %4985 = vmatprep.subr.mxu0 0.0
      %4986 = vmatpush1.msra.mxu0 0.0
      %4987 = vmatprep.subr.mxu0 0.0
      %4988 = vmatpush1.msra.mxu0 0.0
      %4989 = vmatprep.subr.mxu0 0.0
      %4990 = vmatpush1.msra.mxu0 0.0
      %4991 = vmatprep.subr.mxu0 0.0
      %4992 = vmatpush1.msra.mxu0 0.0
      %4993 = vmatprep.subr.mxu0 0.0
      %4994 = vmatpush1.msra.mxu0 0.0
      %4995 = vmatprep.subr.mxu0 0.0
      %4996 = vmatpush1.msra.mxu0 0.0
      %4997 = vmatprep.subr.mxu0 0.0
      %4998 = vmatpush1.msra.mxu0 0.0
      %4999 = vmatprep.subr.mxu0 0.0
      %5000 = vmatpush1.msra.mxu0 0.0
      %5001 = vmatprep.subr.mxu0 0.0
      %5002 = vmatpush1.msra.mxu0 0.0
      %5003 = vmatprep.mubr.f32.mxu0 0.0
      %5004 = vmatmul.mubr.f32.gmra.mrb[0].mxu0 %v4854
      %v5005 = vpop.f32.mrb[0].mxu0
      %v5006 = vadd.f32 0.0, %v5005
      %v5007 = vpop.f32.mrb[0].mxu0
      %v5008 = vadd.f32 0.0, %v5007
      %5009 = vdwg.mxu0
      %v5010 = vmul.f32 %v4935, %v1790
      %v5011 = vmul.f32 %v4937, %v1794
      %v5012 = vmul.f32 %v5006, %v1798
      %v5013 = vmul.f32 %v5008, %v1802
      %v5014 = vadd.f32 %v4825, %v5010
      %v5015 = vadd.f32 %v4826, %v5011
      %v5016 = vadd.f32 %v4827, %v5012
      %v5017 = vadd.f32 %v4828, %v5013
      %5018 = vrot.lane.b32.xlu0 %v3516, 111
      %v5019 = vpop.permute.xlu0 %5018
      %5020 = vrot.lane.b32.xlu0 %v3520, 111
      %v5021 = vpop.permute.xlu0 %5020
      %5022 = vrot.lane.b32.xlu0 %v3517, 111
      %v5023 = vpop.permute.xlu0 %5022
      %5024 = vrot.lane.b32.xlu0 %v3521, 111
      %v5025 = vpop.permute.xlu0 %5024
      %5026 = vrot.lane.b32.xlu0 %v3518, 111
      %v5027 = vpop.permute.xlu0 %5026
      %5028 = vrot.lane.b32.xlu0 %v3522, 111
      %v5029 = vpop.permute.xlu0 %5028
      %5030 = vrot.lane.b32.xlu0 %v3519, 111
      %v5031 = vpop.permute.xlu0 %5030
      %5032 = vrot.lane.b32.xlu0 %v3523, 111
      %v5033 = vpop.permute.xlu0 %5032
      %v5034 = vsel %vm1819, %v5027, %v5031
      %v5035 = vsel %vm1819, %v5029, %v5033
      %v5036 = vsel %vm1819, %v5023, %v5027
      %v5037 = vsel %vm1819, %v5025, %v5029
      %v5038 = vsel %vm1819, %v5019, %v5023
      %v5039 = vsel %vm1819, %v5021, %v5025
      %v5040 = vsel %vm1819, %v5031, %v5019
      %v5041 = vsel %vm1819, %v5033, %v5021
      %v5043 = vsel %vm3557, %v3532, 0
      %v5046 = vsel %vm307, %v5039, 0
      %v5049 = vsel %vm307, %v5037, 0
      %v5052 = vsel %vm307, %v5035, 0
      %v5055 = vsel %vm307, %v5041, 0
      %5057 = vmatprep.subr.mxu0 %v5036
      %5058 = vmatpush1.msra.mxu0 %v5038
      %5059 = vmatprep.subr.mxu0 %v5049
      %5060 = vmatpush1.msra.mxu0 %v5046
      %5061 = vmatprep.subr.mxu0 0.0
      %5062 = vmatpush1.msra.mxu0 0.0
      %5063 = vmatprep.subr.mxu0 0.0
      %5064 = vmatpush1.msra.mxu0 0.0
      %5065 = vmatprep.subr.mxu0 0.0
      %5066 = vmatpush1.msra.mxu0 0.0
      %5067 = vmatprep.subr.mxu0 0.0
      %5068 = vmatpush1.msra.mxu0 0.0
      %5069 = vmatprep.subr.mxu0 0.0
      %5070 = vmatpush1.msra.mxu0 0.0
      %5071 = vmatprep.subr.mxu0 0.0
      %5072 = vmatpush1.msra.mxu0 0.0
      %5073 = vmatprep.subr.mxu0 0.0
      %5074 = vmatpush1.msra.mxu0 0.0
      %5075 = vmatprep.subr.mxu0 0.0
      %5076 = vmatpush1.msra.mxu0 0.0
      %5077 = vmatprep.subr.mxu0 0.0
      %5078 = vmatpush1.msra.mxu0 0.0
      %5079 = vmatprep.subr.mxu0 0.0
      %5080 = vmatpush1.msra.mxu0 0.0
      %5081 = vmatprep.subr.mxu0 0.0
      %5082 = vmatpush1.msra.mxu0 0.0
      %5083 = vmatprep.subr.mxu0 0.0
      %5084 = vmatpush1.msra.mxu0 0.0
      %5085 = vmatprep.subr.mxu0 0.0
      %5086 = vmatpush1.msra.mxu0 0.0
      %5087 = vmatprep.subr.mxu0 0.0
      %5088 = vmatpush1.msra.mxu0 0.0
      %5089 = vmatprep.subr.mxu0 0.0
      %5090 = vmatpush1.msra.mxu0 0.0
      %5091 = vmatprep.subr.mxu0 0.0
      %5092 = vmatpush1.msra.mxu0 0.0
      %5093 = vmatprep.subr.mxu0 0.0
      %5094 = vmatpush1.msra.mxu0 0.0
      %5095 = vmatprep.subr.mxu0 0.0
      %5096 = vmatpush1.msra.mxu0 0.0
      %5097 = vmatprep.subr.mxu0 0.0
      %5098 = vmatpush1.msra.mxu0 0.0
      %5099 = vmatprep.subr.mxu0 0.0
      %5100 = vmatpush1.msra.mxu0 0.0
      %5101 = vmatprep.subr.mxu0 0.0
      %5102 = vmatpush1.msra.mxu0 0.0
      %5103 = vmatprep.subr.mxu0 0.0
      %5104 = vmatpush1.msra.mxu0 0.0
      %5105 = vmatprep.subr.mxu0 0.0
      %5106 = vmatpush1.msra.mxu0 0.0
      %5107 = vmatprep.subr.mxu0 0.0
      %5108 = vmatpush1.msra.mxu0 0.0
      %5109 = vmatprep.subr.mxu0 0.0
      %5110 = vmatpush1.msra.mxu0 0.0
      %5111 = vmatprep.subr.mxu0 0.0
      %5112 = vmatpush1.msra.mxu0 0.0
      %5113 = vmatprep.subr.mxu0 0.0
      %5114 = vmatpush1.msra.mxu0 0.0
      %5115 = vmatprep.subr.mxu0 0.0
      %5116 = vmatpush1.msra.mxu0 0.0
      %5117 = vmatprep.subr.mxu0 0.0
      %5118 = vmatpush1.msra.mxu0 0.0
      %5119 = vmatprep.subr.mxu0 0.0
      %5120 = vmatpush1.msra.mxu0 0.0
      %5121 = vmatprep.mubr.f32.mxu0 0.0
      %5122 = vmatmul.mubr.f32.gmra.mrb[0].mxu0 %v5043
      %v5123 = vpop.f32.mrb[0].mxu0
      %v5124 = vadd.f32 0.0, %v5123
      %v5125 = vpop.f32.mrb[0].mxu0
      %v5126 = vadd.f32 0.0, %v5125
      %5127 = vdwg.mxu0
      %5128 = vmatprep.subr.mxu0 %v5040
      %5129 = vmatpush1.msra.mxu0 %v5034
      %5130 = vmatprep.subr.mxu0 %v5055
      %5131 = vmatpush1.msra.mxu0 %v5052
      %5132 = vmatprep.subr.mxu0 0.0
      %5133 = vmatpush1.msra.mxu0 0.0
      %5134 = vmatprep.subr.mxu0 0.0
      %5135 = vmatpush1.msra.mxu0 0.0
      %5136 = vmatprep.subr.mxu0 0.0
      %5137 = vmatpush1.msra.mxu0 0.0
      %5138 = vmatprep.subr.mxu0 0.0
      %5139 = vmatpush1.msra.mxu0 0.0
      %5140 = vmatprep.subr.mxu0 0.0
      %5141 = vmatpush1.msra.mxu0 0.0
      %5142 = vmatprep.subr.mxu0 0.0
      %5143 = vmatpush1.msra.mxu0 0.0
      %5144 = vmatprep.subr.mxu0 0.0
      %5145 = vmatpush1.msra.mxu0 0.0
      %5146 = vmatprep.subr.mxu0 0.0
      %5147 = vmatpush1.msra.mxu0 0.0
      %5148 = vmatprep.subr.mxu0 0.0
      %5149 = vmatpush1.msra.mxu0 0.0
      %5150 = vmatprep.subr.mxu0 0.0
      %5151 = vmatpush1.msra.mxu0 0.0
      %5152 = vmatprep.subr.mxu0 0.0
      %5153 = vmatpush1.msra.mxu0 0.0
      %5154 = vmatprep.subr.mxu0 0.0
      %5155 = vmatpush1.msra.mxu0 0.0
      %5156 = vmatprep.subr.mxu0 0.0
      %5157 = vmatpush1.msra.mxu0 0.0
      %5158 = vmatprep.subr.mxu0 0.0
      %5159 = vmatpush1.msra.mxu0 0.0
      %5160 = vmatprep.subr.mxu0 0.0
      %5161 = vmatpush1.msra.mxu0 0.0
      %5162 = vmatprep.subr.mxu0 0.0
      %5163 = vmatpush1.msra.mxu0 0.0
      %5164 = vmatprep.subr.mxu0 0.0
      %5165 = vmatpush1.msra.mxu0 0.0
      %5166 = vmatprep.subr.mxu0 0.0
      %5167 = vmatpush1.msra.mxu0 0.0
      %5168 = vmatprep.subr.mxu0 0.0
      %5169 = vmatpush1.msra.mxu0 0.0
      %5170 = vmatprep.subr.mxu0 0.0
      %5171 = vmatpush1.msra.mxu0 0.0
      %5172 = vmatprep.subr.mxu0 0.0
      %5173 = vmatpush1.msra.mxu0 0.0
      %5174 = vmatprep.subr.mxu0 0.0
      %5175 = vmatpush1.msra.mxu0 0.0
      %5176 = vmatprep.subr.mxu0 0.0
      %5177 = vmatpush1.msra.mxu0 0.0
      %5178 = vmatprep.subr.mxu0 0.0
      %5179 = vmatpush1.msra.mxu0 0.0
      %5180 = vmatprep.subr.mxu0 0.0
      %5181 = vmatpush1.msra.mxu0 0.0
      %5182 = vmatprep.subr.mxu0 0.0
      %5183 = vmatpush1.msra.mxu0 0.0
      %5184 = vmatprep.subr.mxu0 0.0
      %5185 = vmatpush1.msra.mxu0 0.0
      %5186 = vmatprep.subr.mxu0 0.0
      %5187 = vmatpush1.msra.mxu0 0.0
      %5188 = vmatprep.subr.mxu0 0.0
      %5189 = vmatpush1.msra.mxu0 0.0
      %5190 = vmatprep.subr.mxu0 0.0
      %5191 = vmatpush1.msra.mxu0 0.0
      %5192 = vmatprep.mubr.f32.mxu0 0.0
      %5193 = vmatmul.mubr.f32.gmra.mrb[0].mxu0 %v5043
      %v5194 = vpop.f32.mrb[0].mxu0
      %v5195 = vadd.f32 0.0, %v5194
      %v5196 = vpop.f32.mrb[0].mxu0
      %v5197 = vadd.f32 0.0, %v5196
      %5198 = vdwg.mxu0
      %v5199 = vmul.f32 %v5124, %v1984
      %v5200 = vmul.f32 %v5126, %v1988
      %v5201 = vmul.f32 %v5195, %v1992
      %v5202 = vmul.f32 %v5197, %v1996
      %v5203 = vadd.f32 %v5014, %v5199
      %v5204 = vadd.f32 %v5015, %v5200
      %v5205 = vadd.f32 %v5016, %v5201
      %v5206 = vadd.f32 %v5017, %v5202
      %v5207 = vmax.f32 %v5203, 0.0
      %v5208 = vmax.f32 %v5204, 0.0
      %v5209 = vmax.f32 %v5205, 0.0
      %v5210 = vmax.f32 %v5206, 0.0
      %v5215 = vrot.slane %v5207, 4
      %v5216 = vrot.slane %v5208, 4
      %v5217 = vrot.slane %v5209, 4
      %v5218 = vrot.slane %v5210, 4
      %5223 = vst [vmem:[#allocation2 + $0x20] sm:$0xf0] %v5215
      %5224 = vst [vmem:[#allocation2 + $0x28] sm:$0xf0] %v5216
      %5225 = vst [vmem:[#allocation2 + $0x30] sm:$0xf0] %v5217
      %5226 = vst [vmem:[#allocation2 + $0x38] sm:$0xf0] %v5218
      %v5227 = vld [vmem:[%s2] sm:$0xf]
      %v5228 = vld [vmem:[#allocation2] sm:$0xff]
      %v5229 = vld [vmem:[#allocation2 + $0x8] sm:$0xff]
      %v5230 = vld [vmem:[#allocation2 + $0x10] sm:$0xff]
      %v5231 = vld [vmem:[#allocation2 + $0x18] sm:$0xff]
      %v5232 = vld [vmem:[#allocation2 + $0x20] sm:$0xff]
      %v5233 = vld [vmem:[#allocation2 + $0x28] sm:$0xff]
      %v5234 = vld [vmem:[#allocation2 + $0x30] sm:$0xff]
      %v5235 = vld [vmem:[#allocation2 + $0x38] sm:$0xff]
      %vm5236 = vcmask 130048
      %v5238 = vsel %vm5236, %v5227, 0
      %5240 = vmatprep.subr.mxu0 %v5229
      %5241 = vmatpush1.msra.mxu0 %v5228
      %5242 = vmatprep.subr.mxu0 %v5233
      %5243 = vmatpush1.msra.mxu0 %v5232
      %5244 = vmatprep.subr.mxu0 0.0
      %5245 = vmatpush1.msra.mxu0 0.0
      %5246 = vmatprep.subr.mxu0 0.0
      %5247 = vmatpush1.msra.mxu0 0.0
      %5248 = vmatprep.subr.mxu0 0.0
      %5249 = vmatpush1.msra.mxu0 0.0
      %5250 = vmatprep.subr.mxu0 0.0
      %5251 = vmatpush1.msra.mxu0 0.0
      %5252 = vmatprep.subr.mxu0 0.0
      %5253 = vmatpush1.msra.mxu0 0.0
      %5254 = vmatprep.subr.mxu0 0.0
      %5255 = vmatpush1.msra.mxu0 0.0
      %5256 = vmatprep.subr.mxu0 0.0
      %5257 = vmatpush1.msra.mxu0 0.0
      %5258 = vmatprep.subr.mxu0 0.0
      %5259 = vmatpush1.msra.mxu0 0.0
      %5260 = vmatprep.subr.mxu0 0.0
      %5261 = vmatpush1.msra.mxu0 0.0
      %5262 = vmatprep.subr.mxu0 0.0
      %5263 = vmatpush1.msra.mxu0 0.0
      %5264 = vmatprep.subr.mxu0 0.0
      %5265 = vmatpush1.msra.mxu0 0.0
      %5266 = vmatprep.subr.mxu0 0.0
      %5267 = vmatpush1.msra.mxu0 0.0
      %5268 = vmatprep.subr.mxu0 0.0
      %5269 = vmatpush1.msra.mxu0 0.0
      %5270 = vmatprep.subr.mxu0 0.0
      %5271 = vmatpush1.msra.mxu0 0.0
      %5272 = vmatprep.subr.mxu0 0.0
      %5273 = vmatpush1.msra.mxu0 0.0
      %5274 = vmatprep.subr.mxu0 0.0
      %5275 = vmatpush1.msra.mxu0 0.0
      %5276 = vmatprep.subr.mxu0 0.0
      %5277 = vmatpush1.msra.mxu0 0.0
      %5278 = vmatprep.subr.mxu0 0.0
      %5279 = vmatpush1.msra.mxu0 0.0
      %5280 = vmatprep.subr.mxu0 0.0
      %5281 = vmatpush1.msra.mxu0 0.0
      %5282 = vmatprep.subr.mxu0 0.0
      %5283 = vmatpush1.msra.mxu0 0.0
      %5284 = vmatprep.subr.mxu0 0.0
      %5285 = vmatpush1.msra.mxu0 0.0
      %5286 = vmatprep.subr.mxu0 0.0
      %5287 = vmatpush1.msra.mxu0 0.0
      %5288 = vmatprep.subr.mxu0 0.0
      %5289 = vmatpush1.msra.mxu0 0.0
      %5290 = vmatprep.subr.mxu0 0.0
      %5291 = vmatpush1.msra.mxu0 0.0
      %5292 = vmatprep.subr.mxu0 0.0
      %5293 = vmatpush1.msra.mxu0 0.0
      %5294 = vmatprep.subr.mxu0 0.0
      %5295 = vmatpush1.msra.mxu0 0.0
      %5296 = vmatprep.subr.mxu0 0.0
      %5297 = vmatpush1.msra.mxu0 0.0
      %5298 = vmatprep.subr.mxu0 0.0
      %5299 = vmatpush1.msra.mxu0 0.0
      %5300 = vmatprep.subr.mxu0 0.0
      %5301 = vmatpush1.msra.mxu0 0.0
      %5302 = vmatprep.subr.mxu0 0.0
      %5303 = vmatpush1.msra.mxu0 0.0
      %5304 = vmatprep.mubr.f32.mxu0 0.0
      %5305 = vmatmul.mubr.f32.gmra.mrb[0].mxu0 %v5238
      %v5306 = vpop.f32.mrb[0].mxu0
      %v5307 = vadd.f32 %v255, %v5306
      %v5308 = vpop.f32.mrb[0].mxu0
      %v5309 = vadd.f32 %v259, %v5308
      %5310 = vdwg.mxu0
      %5311 = vmatprep.subr.mxu0 %v5231
      %5312 = vmatpush1.msra.mxu0 %v5230
      %5313 = vmatprep.subr.mxu0 %v5235
      %5314 = vmatpush1.msra.mxu0 %v5234
      %5315 = vmatprep.subr.mxu0 0.0
      %5316 = vmatpush1.msra.mxu0 0.0
      %5317 = vmatprep.subr.mxu0 0.0
      %5318 = vmatpush1.msra.mxu0 0.0
      %5319 = vmatprep.subr.mxu0 0.0
      %5320 = vmatpush1.msra.mxu0 0.0
      %5321 = vmatprep.subr.mxu0 0.0
      %5322 = vmatpush1.msra.mxu0 0.0
      %5323 = vmatprep.subr.mxu0 0.0
      %5324 = vmatpush1.msra.mxu0 0.0
      %5325 = vmatprep.subr.mxu0 0.0
      %5326 = vmatpush1.msra.mxu0 0.0
      %5327 = vmatprep.subr.mxu0 0.0
      %5328 = vmatpush1.msra.mxu0 0.0
      %5329 = vmatprep.subr.mxu0 0.0
      %5330 = vmatpush1.msra.mxu0 0.0
      %5331 = vmatprep.subr.mxu0 0.0
      %5332 = vmatpush1.msra.mxu0 0.0
      %5333 = vmatprep.subr.mxu0 0.0
      %5334 = vmatpush1.msra.mxu0 0.0
      %5335 = vmatprep.subr.mxu0 0.0
      %5336 = vmatpush1.msra.mxu0 0.0
      %5337 = vmatprep.subr.mxu0 0.0
      %5338 = vmatpush1.msra.mxu0 0.0
      %5339 = vmatprep.subr.mxu0 0.0
      %5340 = vmatpush1.msra.mxu0 0.0
      %5341 = vmatprep.subr.mxu0 0.0
      %5342 = vmatpush1.msra.mxu0 0.0
      %5343 = vmatprep.subr.mxu0 0.0
      %5344 = vmatpush1.msra.mxu0 0.0
      %5345 = vmatprep.subr.mxu0 0.0
      %5346 = vmatpush1.msra.mxu0 0.0
      %5347 = vmatprep.subr.mxu0 0.0
      %5348 = vmatpush1.msra.mxu0 0.0
      %5349 = vmatprep.subr.mxu0 0.0
      %5350 = vmatpush1.msra.mxu0 0.0
      %5351 = vmatprep.subr.mxu0 0.0
      %5352 = vmatpush1.msra.mxu0 0.0
      %5353 = vmatprep.subr.mxu0 0.0
      %5354 = vmatpush1.msra.mxu0 0.0
      %5355 = vmatprep.subr.mxu0 0.0
      %5356 = vmatpush1.msra.mxu0 0.0
      %5357 = vmatprep.subr.mxu0 0.0
      %5358 = vmatpush1.msra.mxu0 0.0
      %5359 = vmatprep.subr.mxu0 0.0
      %5360 = vmatpush1.msra.mxu0 0.0
      %5361 = vmatprep.subr.mxu0 0.0
      %5362 = vmatpush1.msra.mxu0 0.0
      %5363 = vmatprep.subr.mxu0 0.0
      %5364 = vmatpush1.msra.mxu0 0.0
      %5365 = vmatprep.subr.mxu0 0.0
      %5366 = vmatpush1.msra.mxu0 0.0
      %5367 = vmatprep.subr.mxu0 0.0
      %5368 = vmatpush1.msra.mxu0 0.0
      %5369 = vmatprep.subr.mxu0 0.0
      %5370 = vmatpush1.msra.mxu0 0.0
      %5371 = vmatprep.subr.mxu0 0.0
      %5372 = vmatpush1.msra.mxu0 0.0
      %5373 = vmatprep.subr.mxu0 0.0
      %5374 = vmatpush1.msra.mxu0 0.0
      %5375 = vmatprep.mubr.f32.mxu0 0.0
      %5376 = vmatmul.mubr.f32.gmra.mrb[0].mxu0 %v5238
      %v5377 = vpop.f32.mrb[0].mxu0
      %v5378 = vadd.f32 %v256, %v5377
      %v5379 = vpop.f32.mrb[0].mxu0
      %v5380 = vadd.f32 %v260, %v5379
      %5381 = vdwg.mxu0
      %v5386 = vcombine.low %v5307, %v5309
      %v5387 = vcombine.low %v5378, %v5380
      %5390 = vst [vmem:[%s253] sm:$0xff] %v5386
      %5391 = vst [vmem:[%s253 + $0x8] sm:$0xff] %v5387
      %s5392 = smul.u32 4, %s17
      %p5393 = scmp.lt.s32.totalorder %s5392, 7
      %s5394 = scalar_select %p5393, %s5392, 7
      %s5395 = smul.addr %s5394, 4
      %s5396 = scalar_lea.vmem %s6, %s5395
      // Predicated region
      $region45: #{rdb_forward.1} parent=43 // pred_check
        %p5397 = pneg %p166
      $region46: #{rdb_forward.1} parent=43 // pred_check_branch
        %5399 = sbr.rel (%p5397) target = $region48
      $region47: #{rdb_forward.1} parent=43 // pred_region
        %s5400 = smul.u32 4, %s17
      $region48: #{rdb_forward.1} parent=43 // pred_fallthru
        _
    $region44: #{rdb_forward.1} parent=5 // pred_fallthru
      _
    %p5401 = scmp.le.s32.totalorder 2, %s12
    // Predicated region
    $region49: #{rdb_forward.1} parent=5 // pred_check
      %p5402 = pneg %p5401
    $region50: #{rdb_forward.1} parent=5 // pred_check_branch
      %5404 = sbr.rel (%p5402) target = $region52
    $region51: #{rdb_forward.1} parent=5 // pred_region
      %s5405 = ssub.s32 %s12, 2
      // Predicated region
      $region53: #{rdb_forward.1} parent=51 // pred_check
        %p5406 = pneg %p172
      $region54: #{rdb_forward.1} parent=51 // pred_check_branch
        %5408 = sbr.rel (%p5406) target = $region56
      $region55: #{rdb_forward.1} parent=51 // pred_region
        %s5409 = smul.u32 4, %s18
        %p5410 = scmp.lt.s32.totalorder %s5409, 7
        %s5411 = scalar_select %p5410, %s5409, 7
        %s5412 = smul.addr %s5411, 4
        %s5413 = scalar_lea.vmem %s6, %s5412
      $region56: #{rdb_forward.1} parent=51 // pred_fallthru
        _
    $region52: #{rdb_forward.1} parent=5 // pred_fallthru
      _
  $region6: #{rdb_forward.1} parent=0 // loop_footer
    %s16 = sadd.s32 1, %s12
  $region7: #{rdb_forward.1} parent=0 // loop_footer_branch
    %11 = sbr.rel target = $region3
  $region8: #{rdb_forward.1} parent=0 // loop_exit
    _

</llo_original>
